<compile_context>
chip_gen: v7x
topology: tpu7x:2x2x1
jax: 0.10.0
libtpu: 0.0.40
codegen_flags: <defaults>
</compile_context>

<pallas_src>
import jax
import jax.numpy as jnp
import numpy as np
from jax.experimental import pallas as pl
from jax.experimental.pallas import tpu as pltpu


def _round_up(v, m):
    return (v + m - 1) // m * m


# ----------------------------- Pallas kernel -------------------------------

def _bottleneck_kernel(x_ref, w1_ref, b1_ref, w2_ref, b2_ref, w3_ref, b3_ref,
                       o_ref):
    """Fused Bottleneck forward for one batch image.

    x_ref  : (1, H, W, Cin)  f32   input (also the residual)
    w1_ref : (Cin, Cp)       bf16  conv1 weight, bn1 scale folded into columns
    b1_ref : (1, Cp)         f32   folded bn1 bias
    w2_ref : (9, Cp, Cp)     bf16  conv2 taps (kh*3+kw), bn2 scale folded in
    b2_ref : (1, Cp)         f32   folded bn2 bias
    w3_ref : (Cp, Cout)      bf16  conv3 weight, bn3 scale folded into columns
    b3_ref : (1, Cout)       f32   folded bn3 bias
    o_ref  : (1, H, W, Cout) f32   output
    """
    _, H, W, Cin = x_ref.shape
    Cp = w1_ref.shape[1]
    Cout = o_ref.shape[3]

    x = x_ref[0]                                    # (H, W, Cin) f32
    x2d = x.reshape(H * W, Cin)

    # ---- conv1 (1x1) + folded BN + ReLU  (bf16 matmul, f32 accumulate) -----
    t1 = jnp.dot(x2d.astype(jnp.bfloat16), w1_ref[...],
                 preferred_element_type=jnp.float32)
    t1 = jnp.maximum(t1 + b1_ref[...], 0.0)         # (H*W, Cp) f32

    # Build a zero halo around the conv1 output (== conv2's pad=1) as VMEM
    # values; nothing is ever written back to HBM for the intermediates.
    t1hw = t1.reshape(H, W, Cp)
    zrow = jnp.zeros((1, W, Cp), jnp.float32)
    t1h = jnp.concatenate([zrow, t1hw, zrow], axis=0)     # (H+2, W, Cp)
    zcol = jnp.zeros((H + 2, 1, Cp), jnp.float32)
    t1p = jnp.concatenate([zcol, t1h, zcol], axis=1)      # (H+2, W+2, Cp)

    # ---- conv2 (3x3, stride 1, pad 1) as 9 accumulating MXU matmuls --------
    acc = None
    for kh in range(3):
        for kw in range(3):
            tap = t1p[kh:kh + H, kw:kw + W, :].reshape(H * W, Cp)
            part = jnp.dot(tap.astype(jnp.bfloat16), w2_ref[kh * 3 + kw],
                           preferred_element_type=jnp.float32)
            acc = part if acc is None else acc + part
    t2 = jnp.maximum(acc + b2_ref[...], 0.0)        # (H*W, Cp) f32

    # ---- conv3 (1x1) + folded BN + residual add + ReLU ---------------------
    y = jnp.dot(t2.astype(jnp.bfloat16), w3_ref[...],
                preferred_element_type=jnp.float32)
    y = y + b3_ref[...] + x2d                       # residual kept in f32 (Cin == Cout)
    o_ref[0] = jnp.maximum(y, 0.0).reshape(H, W, Cout).astype(o_ref.dtype)


# ------------------------------- JAX glue ----------------------------------

def _fold_bn(bn, eps=1e-5):
    gamma, beta, mean, var = bn
    scale = gamma / jnp.sqrt(var + eps)
    return scale, beta - mean * scale


def bottleneck_forward_nhwc(x_nhwc, params):
    """Fused Bottleneck forward, NHWC in / NHWC out (stride=1, no downsample)."""
    B, H, W, Cin = x_nhwc.shape
    planes = params["w1"].shape[0]
    Cout = params["w3"].shape[0]                     # planes * expansion
    assert Cin == Cout, "stride=1 / downsample=None path requires Cin == planes*expansion"

    Cp = _round_up(planes, 128)                      # lane-dense intermediates (VMEM only)
    pad_c = Cp - planes

    s1, b1 = _fold_bn(params["bn1"])
    s2, b2 = _fold_bn(params["bn2"])
    s3, b3 = _fold_bn(params["bn3"])

    # conv1: OIHW (planes, Cin, 1, 1) -> (Cin, Cp); bn1 scale folded into columns.
    w1 = params["w1"][:, :, 0, 0].T * s1[None, :]
    w1 = jnp.pad(w1, ((0, 0), (0, pad_c))).astype(jnp.bfloat16)
    b1p = jnp.pad(b1, (0, pad_c)).reshape(1, Cp).astype(jnp.float32)

    # conv2: OIHW (planes, planes, 3, 3) -> (9, Cp, Cp) in (kh, kw, in, out) order.
    w2 = jnp.transpose(params["w2"], (2, 3, 1, 0)) * s2[None, None, None, :]
    w2 = jnp.pad(w2, ((0, 0), (0, 0), (0, pad_c), (0, pad_c)))
    w2 = w2.reshape(9, Cp, Cp).astype(jnp.bfloat16)
    b2p = jnp.pad(b2, (0, pad_c)).reshape(1, Cp).astype(jnp.float32)

    # conv3: OIHW (Cout, planes, 1, 1) -> (Cp, Cout); bn3 scale folded into columns.
    w3 = params["w3"][:, :, 0, 0].T * s3[None, :]
    w3 = jnp.pad(w3, ((0, pad_c), (0, 0))).astype(jnp.bfloat16)
    b3p = b3.reshape(1, Cout).astype(jnp.float32)

    # Explicit VMEM budget: double-buffered blocks + in-kernel value headroom.
    f32b, bf16b = 4, 2
    est = (2 * H * W * (Cin + Cout) * f32b                       # x / out blocks
           + 2 * (Cin * Cp + 9 * Cp * Cp + Cp * Cout) * bf16b    # weights
           + 2 * (2 * Cp + Cout) * f32b                          # biases
           + (H + 2) * (W + 2) * Cp * f32b                       # halo'd t1
           + 6 * H * W * Cp * f32b)                              # temporaries
    vmem_limit = int(min(48 * 2 ** 20, max(16 * 2 ** 20, 2 * est)))

    return pl.pallas_call(
        _bottleneck_kernel,
        out_shape=jax.ShapeDtypeStruct((B, H, W, Cout), jnp.float32),
        grid=(B,),
        in_specs=[
            pl.BlockSpec((1, H, W, Cin), lambda b: (b, 0, 0, 0)),
            pl.BlockSpec((Cin, Cp), lambda b: (0, 0)),
            pl.BlockSpec((1, Cp), lambda b: (0, 0)),
            pl.BlockSpec((9, Cp, Cp), lambda b: (0, 0, 0)),
            pl.BlockSpec((1, Cp), lambda b: (0, 0)),
            pl.BlockSpec((Cp, Cout), lambda b: (0, 0)),
            pl.BlockSpec((1, Cout), lambda b: (0, 0)),
        ],
        out_specs=pl.BlockSpec((1, H, W, Cout), lambda b: (b, 0, 0, 0)),
        compiler_params=pltpu.CompilerParams(
            dimension_semantics=("parallel",),
            vmem_limit_bytes=vmem_limit),
    )(x_nhwc.astype(jnp.float32), w1, b1p, w2, b2p, w3, b3p)


@jax.jit
def bottleneck_forward(x_nchw, params):
    """PyTorch-style NCHW boundary; NHWC internally (lane dim = channels)."""
    # TODO(synk): at network scope, stay NHWC end-to-end and call
    #             bottleneck_forward_nhwc directly to drop these transposes.
    x = jnp.transpose(x_nchw, (0, 2, 3, 1))
    out = bottleneck_forward_nhwc(x, params)
    return jnp.transpose(out, (0, 3, 1, 2))


# ----------------------------- pure-JAX reference ---------------------------

def reference_forward(x, params):
    def conv(inp, w, stride=1, pad=0):
        return jax.lax.conv_general_dilated(
            inp, w, window_strides=(stride, stride),
            padding=[(pad, pad), (pad, pad)],
            dimension_numbers=("NCHW", "OIHW", "NCHW"))

    def bn(inp, p):
        g, b, m, v = p
        s = g / jnp.sqrt(v + 1e-5)
        return inp * s[None, :, None, None] + (b - m * s)[None, :, None, None]

    relu = lambda t: jnp.maximum(t, 0.0)
    out = relu(bn(conv(x, params["w1"]), params["bn1"]))
    out = relu(bn(conv(out, params["w2"], stride=1, pad=1), params["bn2"]))
    out = bn(conv(out, params["w3"]), params["bn3"])
    return relu(out + x)


# --------------------------------- main -------------------------------------

if __name__ == "__main__":
    key = jax.random.PRNGKey(0)
    keys = jax.random.split(key, 8)

    inplanes, planes, expansion = 16, 4, 4   # inplanes == planes*expansion -> no downsample
    B, H, W = 2, 16, 16

    def bn_params(k, c):
        k1, k2, k3, k4 = jax.random.split(k, 4)
        gamma = jax.random.uniform(k1, (c,), jnp.float32, 0.5, 1.5)
        beta = jax.random.normal(k2, (c,), jnp.float32) * 0.1
        mean = jax.random.normal(k3, (c,), jnp.float32) * 0.1
        var = jax.random.uniform(k4, (c,), jnp.float32, 0.5, 1.5)
        return (gamma, beta, mean, var)

    params = {
        "w1": jax.random.normal(keys[0], (planes, inplanes, 1, 1), jnp.float32) * 0.1,
        "bn1": bn_params(keys[1], planes),
        "w2": jax.random.normal(keys[2], (planes, planes, 3, 3), jnp.float32) * 0.1,
        "bn2": bn_params(keys[3], planes),
        "w3": jax.random.normal(keys[4], (planes * expansion, planes, 1, 1), jnp.float32) * 0.1,
        "bn3": bn_params(keys[5], planes * expansion),
    }

    x = jax.random.normal(keys[6], (B, inplanes, H, W), jnp.float32)

    out = bottleneck_forward(x, params)
    out = jax.block_until_ready(out)

    ref = reference_forward(x, params)
    assert out.shape == ref.shape == (B, planes * expansion, H, W)
    # bf16 matmul operands (f32 accumulation, f32 residual/epilogue) -> slightly
    # looser tolerance than the pure-f32 version.
    np.testing.assert_allclose(np.asarray(out), np.asarray(ref), rtol=2e-2, atol=2e-2)

    print("KERNEL_OK")
</pallas_src>

<mosaic_0001>
module attributes {stable_mosaic.version = 11 : i64} {
  func.func @_bottleneck_kernel(%arg0: i32, %arg1: memref<1x16x16x16xf32, #tpu.memory_space<vmem>>, %arg2: memref<16x128xbf16, #tpu.memory_space<vmem>>, %arg3: memref<1x128xf32, #tpu.memory_space<vmem>>, %arg4: memref<9x128x128xbf16, #tpu.memory_space<vmem>>, %arg5: memref<1x128xf32, #tpu.memory_space<vmem>>, %arg6: memref<128x16xbf16, #tpu.memory_space<vmem>>, %arg7: memref<1x16xf32, #tpu.memory_space<vmem>>, %arg8: memref<1x16x16x16xf32, #tpu.memory_space<vmem>>) attributes {dimension_semantics = [#tpu.dimension_semantics<parallel>], iteration_bounds = array<i64: 2>, scalar_prefetch = 0 : i64, scratch_operands = 0 : i64, tpu.core_type = #tpu.core_type<tc>, window_params = [{transform_indices = @transform_0, window_bounds = array<i64: 1, 16, 16, 16>}, {pipeline_mode = #tpu.pipeline_mode<synchronous>, transform_indices = @transform_1, window_bounds = array<i64: 16, 128>}, {pipeline_mode = #tpu.pipeline_mode<synchronous>, transform_indices = @transform_2, window_bounds = array<i64: 1, 128>}, {pipeline_mode = #tpu.pipeline_mode<synchronous>, transform_indices = @transform_3, window_bounds = array<i64: 9, 128, 128>}, {pipeline_mode = #tpu.pipeline_mode<synchronous>, transform_indices = @transform_4, window_bounds = array<i64: 1, 128>}, {pipeline_mode = #tpu.pipeline_mode<synchronous>, transform_indices = @transform_5, window_bounds = array<i64: 128, 16>}, {pipeline_mode = #tpu.pipeline_mode<synchronous>, transform_indices = @transform_6, window_bounds = array<i64: 1, 16>}, {transform_indices = @transform_7, window_bounds = array<i64: 1, 16, 16, 16>}]} {
    %c0 = arith.constant 0 : index
    %c0_0 = arith.constant 0 : index
    %c0_1 = arith.constant 0 : index
    %c0_2 = arith.constant 0 : index
    %0 = vector.load %arg1[%c0, %c0_0, %c0_1, %c0_2] : memref<1x16x16x16xf32, #tpu.memory_space<vmem>>, vector<1x16x16x16xf32>
    %1 = vector.shape_cast %0 : vector<1x16x16x16xf32> to vector<16x16x16xf32>
    %2 = vector.shape_cast %1 : vector<16x16x16xf32> to vector<256x16xf32>
    %3 = arith.truncf %2 : vector<256x16xf32> to vector<256x16xbf16>
    %c0_3 = arith.constant 0 : index
    %c0_4 = arith.constant 0 : index
    %4 = vector.load %arg2[%c0_3, %c0_4] : memref<16x128xbf16, #tpu.memory_space<vmem>>, vector<16x128xbf16>
    %cst = arith.constant dense<0.000000e+00> : vector<256x128xf32>
    %5 = tpu.matmul %3, %4, %cst {dimension_numbers = #tpu.dot_dimension_numbers<[1], [0], [0], [1], [0, 0, 1, 1], [], []>} : vector<256x16xbf16>, vector<16x128xbf16>, vector<256x128xf32> -> vector<256x128xf32>
    %c0_5 = arith.constant 0 : index
    %c0_6 = arith.constant 0 : index
    %6 = vector.load %arg3[%c0_5, %c0_6] : memref<1x128xf32, #tpu.memory_space<vmem>>, vector<1x128xf32>
    %7 = vector.broadcast %6 : vector<1x128xf32> to vector<256x128xf32>
    %8 = arith.addf %5, %7 : vector<256x128xf32>
    %cst_7 = arith.constant 0.000000e+00 : f32
    %9 = vector.broadcast %cst_7 : f32 to vector<256x128xf32>
    %10 = arith.maximumf %8, %9 : vector<256x128xf32>
    %11 = vector.shape_cast %10 : vector<256x128xf32> to vector<16x16x128xf32>
    %cst_8 = arith.constant 0.000000e+00 : f32
    %12 = vector.broadcast %cst_8 : f32 to vector<1x16x128xf32>
    %13 = tpu.concatenate %12, %11, %12 in 0 : vector<1x16x128xf32>, vector<16x16x128xf32>, vector<1x16x128xf32> -> vector<18x16x128xf32>
    %cst_9 = arith.constant 0.000000e+00 : f32
    %14 = vector.broadcast %cst_9 : f32 to vector<18x1x128xf32>
    %15 = tpu.concatenate %14, %13, %14 in 1 : vector<18x1x128xf32>, vector<18x16x128xf32>, vector<18x1x128xf32> -> vector<18x18x128xf32>
    %16 = vector.extract_strided_slice %15 {offsets = [0, 0, 0], sizes = [16, 16, 128], strides = [1, 1, 1]} : vector<18x18x128xf32> to vector<16x16x128xf32>
    %17 = vector.shape_cast %16 : vector<16x16x128xf32> to vector<256x128xf32>
    %18 = arith.truncf %17 : vector<256x128xf32> to vector<256x128xbf16>
    %c0_10 = arith.constant 0 : index
    %c0_11 = arith.constant 0 : index
    %c0_12 = arith.constant 0 : index
    %19 = vector.load %arg4[%c0_10, %c0_11, %c0_12] : memref<9x128x128xbf16, #tpu.memory_space<vmem>>, vector<1x128x128xbf16>
    %20 = vector.shape_cast %19 : vector<1x128x128xbf16> to vector<128x128xbf16>
    %cst_13 = arith.constant dense<0.000000e+00> : vector<256x128xf32>
    %21 = tpu.matmul %18, %20, %cst_13 {dimension_numbers = #tpu.dot_dimension_numbers<[1], [0], [0], [1], [0, 0, 1, 1], [], []>} : vector<256x128xbf16>, vector<128x128xbf16>, vector<256x128xf32> -> vector<256x128xf32>
    %22 = vector.extract_strided_slice %15 {offsets = [0, 1, 0], sizes = [16, 16, 128], strides = [1, 1, 1]} : vector<18x18x128xf32> to vector<16x16x128xf32>
    %23 = vector.shape_cast %22 : vector<16x16x128xf32> to vector<256x128xf32>
    %24 = arith.truncf %23 : vector<256x128xf32> to vector<256x128xbf16>
    %c1 = arith.constant 1 : index
    %c0_14 = arith.constant 0 : index
    %c0_15 = arith.constant 0 : index
    %25 = vector.load %arg4[%c1, %c0_14, %c0_15] : memref<9x128x128xbf16, #tpu.memory_space<vmem>>, vector<1x128x128xbf16>
    %26 = vector.shape_cast %25 : vector<1x128x128xbf16> to vector<128x128xbf16>
    %cst_16 = arith.constant dense<0.000000e+00> : vector<256x128xf32>
    %27 = tpu.matmul %24, %26, %cst_16 {dimension_numbers = #tpu.dot_dimension_numbers<[1], [0], [0], [1], [0, 0, 1, 1], [], []>} : vector<256x128xbf16>, vector<128x128xbf16>, vector<256x128xf32> -> vector<256x128xf32>
    %28 = arith.addf %21, %27 : vector<256x128xf32>
    %29 = vector.extract_strided_slice %15 {offsets = [0, 2, 0], sizes = [16, 16, 128], strides = [1, 1, 1]} : vector<18x18x128xf32> to vector<16x16x128xf32>
    %30 = vector.shape_cast %29 : vector<16x16x128xf32> to vector<256x128xf32>
    %31 = arith.truncf %30 : vector<256x128xf32> to vector<256x128xbf16>
    %c2 = arith.constant 2 : index
    %c0_17 = arith.constant 0 : index
    %c0_18 = arith.constant 0 : index
    %32 = vector.load %arg4[%c2, %c0_17, %c0_18] : memref<9x128x128xbf16, #tpu.memory_space<vmem>>, vector<1x128x128xbf16>
    %33 = vector.shape_cast %32 : vector<1x128x128xbf16> to vector<128x128xbf16>
    %cst_19 = arith.constant dense<0.000000e+00> : vector<256x128xf32>
    %34 = tpu.matmul %31, %33, %cst_19 {dimension_numbers = #tpu.dot_dimension_numbers<[1], [0], [0], [1], [0, 0, 1, 1], [], []>} : vector<256x128xbf16>, vector<128x128xbf16>, vector<256x128xf32> -> vector<256x128xf32>
    %35 = arith.addf %28, %34 : vector<256x128xf32>
    %36 = vector.extract_strided_slice %15 {offsets = [1, 0, 0], sizes = [16, 16, 128], strides = [1, 1, 1]} : vector<18x18x128xf32> to vector<16x16x128xf32>
    %37 = vector.shape_cast %36 : vector<16x16x128xf32> to vector<256x128xf32>
    %38 = arith.truncf %37 : vector<256x128xf32> to vector<256x128xbf16>
    %c3 = arith.constant 3 : index
    %c0_20 = arith.constant 0 : index
    %c0_21 = arith.constant 0 : index
    %39 = vector.load %arg4[%c3, %c0_20, %c0_21] : memref<9x128x128xbf16, #tpu.memory_space<vmem>>, vector<1x128x128xbf16>
    %40 = vector.shape_cast %39 : vector<1x128x128xbf16> to vector<128x128xbf16>
    %cst_22 = arith.constant dense<0.000000e+00> : vector<256x128xf32>
    %41 = tpu.matmul %38, %40, %cst_22 {dimension_numbers = #tpu.dot_dimension_numbers<[1], [0], [0], [1], [0, 0, 1, 1], [], []>} : vector<256x128xbf16>, vector<128x128xbf16>, vector<256x128xf32> -> vector<256x128xf32>
    %42 = arith.addf %35, %41 : vector<256x128xf32>
    %43 = vector.extract_strided_slice %15 {offsets = [1, 1, 0], sizes = [16, 16, 128], strides = [1, 1, 1]} : vector<18x18x128xf32> to vector<16x16x128xf32>
    %44 = vector.shape_cast %43 : vector<16x16x128xf32> to vector<256x128xf32>
    %45 = arith.truncf %44 : vector<256x128xf32> to vector<256x128xbf16>
    %c4 = arith.constant 4 : index
    %c0_23 = arith.constant 0 : index
    %c0_24 = arith.constant 0 : index
    %46 = vector.load %arg4[%c4, %c0_23, %c0_24] : memref<9x128x128xbf16, #tpu.memory_space<vmem>>, vector<1x128x128xbf16>
    %47 = vector.shape_cast %46 : vector<1x128x128xbf16> to vector<128x128xbf16>
    %cst_25 = arith.constant dense<0.000000e+00> : vector<256x128xf32>
    %48 = tpu.matmul %45, %47, %cst_25 {dimension_numbers = #tpu.dot_dimension_numbers<[1], [0], [0], [1], [0, 0, 1, 1], [], []>} : vector<256x128xbf16>, vector<128x128xbf16>, vector<256x128xf32> -> vector<256x128xf32>
    %49 = arith.addf %42, %48 : vector<256x128xf32>
    %50 = vector.extract_strided_slice %15 {offsets = [1, 2, 0], sizes = [16, 16, 128], strides = [1, 1, 1]} : vector<18x18x128xf32> to vector<16x16x128xf32>
    %51 = vector.shape_cast %50 : vector<16x16x128xf32> to vector<256x128xf32>
    %52 = arith.truncf %51 : vector<256x128xf32> to vector<256x128xbf16>
    %c5 = arith.constant 5 : index
    %c0_26 = arith.constant 0 : index
    %c0_27 = arith.constant 0 : index
    %53 = vector.load %arg4[%c5, %c0_26, %c0_27] : memref<9x128x128xbf16, #tpu.memory_space<vmem>>, vector<1x128x128xbf16>
    %54 = vector.shape_cast %53 : vector<1x128x128xbf16> to vector<128x128xbf16>
    %cst_28 = arith.constant dense<0.000000e+00> : vector<256x128xf32>
    %55 = tpu.matmul %52, %54, %cst_28 {dimension_numbers = #tpu.dot_dimension_numbers<[1], [0], [0], [1], [0, 0, 1, 1], [], []>} : vector<256x128xbf16>, vector<128x128xbf16>, vector<256x128xf32> -> vector<256x128xf32>
    %56 = arith.addf %49, %55 : vector<256x128xf32>
    %57 = vector.extract_strided_slice %15 {offsets = [2, 0, 0], sizes = [16, 16, 128], strides = [1, 1, 1]} : vector<18x18x128xf32> to vector<16x16x128xf32>
    %58 = vector.shape_cast %57 : vector<16x16x128xf32> to vector<256x128xf32>
    %59 = arith.truncf %58 : vector<256x128xf32> to vector<256x128xbf16>
    %c6 = arith.constant 6 : index
    %c0_29 = arith.constant 0 : index
    %c0_30 = arith.constant 0 : index
    %60 = vector.load %arg4[%c6, %c0_29, %c0_30] : memref<9x128x128xbf16, #tpu.memory_space<vmem>>, vector<1x128x128xbf16>
    %61 = vector.shape_cast %60 : vector<1x128x128xbf16> to vector<128x128xbf16>
    %cst_31 = arith.constant dense<0.000000e+00> : vector<256x128xf32>
    %62 = tpu.matmul %59, %61, %cst_31 {dimension_numbers = #tpu.dot_dimension_numbers<[1], [0], [0], [1], [0, 0, 1, 1], [], []>} : vector<256x128xbf16>, vector<128x128xbf16>, vector<256x128xf32> -> vector<256x128xf32>
    %63 = arith.addf %56, %62 : vector<256x128xf32>
    %64 = vector.extract_strided_slice %15 {offsets = [2, 1, 0], sizes = [16, 16, 128], strides = [1, 1, 1]} : vector<18x18x128xf32> to vector<16x16x128xf32>
    %65 = vector.shape_cast %64 : vector<16x16x128xf32> to vector<256x128xf32>
    %66 = arith.truncf %65 : vector<256x128xf32> to vector<256x128xbf16>
    %c7 = arith.constant 7 : index
    %c0_32 = arith.constant 0 : index
    %c0_33 = arith.constant 0 : index
    %67 = vector.load %arg4[%c7, %c0_32, %c0_33] : memref<9x128x128xbf16, #tpu.memory_space<vmem>>, vector<1x128x128xbf16>
    %68 = vector.shape_cast %67 : vector<1x128x128xbf16> to vector<128x128xbf16>
    %cst_34 = arith.constant dense<0.000000e+00> : vector<256x128xf32>
    %69 = tpu.matmul %66, %68, %cst_34 {dimension_numbers = #tpu.dot_dimension_numbers<[1], [0], [0], [1], [0, 0, 1, 1], [], []>} : vector<256x128xbf16>, vector<128x128xbf16>, vector<256x128xf32> -> vector<256x128xf32>
    %70 = arith.addf %63, %69 : vector<256x128xf32>
    %71 = vector.extract_strided_slice %15 {offsets = [2, 2, 0], sizes = [16, 16, 128], strides = [1, 1, 1]} : vector<18x18x128xf32> to vector<16x16x128xf32>
    %72 = vector.shape_cast %71 : vector<16x16x128xf32> to vector<256x128xf32>
    %73 = arith.truncf %72 : vector<256x128xf32> to vector<256x128xbf16>
    %c8 = arith.constant 8 : index
    %c0_35 = arith.constant 0 : index
    %c0_36 = arith.constant 0 : index
    %74 = vector.load %arg4[%c8, %c0_35, %c0_36] : memref<9x128x128xbf16, #tpu.memory_space<vmem>>, vector<1x128x128xbf16>
    %75 = vector.shape_cast %74 : vector<1x128x128xbf16> to vector<128x128xbf16>
    %cst_37 = arith.constant dense<0.000000e+00> : vector<256x128xf32>
    %76 = tpu.matmul %73, %75, %cst_37 {dimension_numbers = #tpu.dot_dimension_numbers<[1], [0], [0], [1], [0, 0, 1, 1], [], []>} : vector<256x128xbf16>, vector<128x128xbf16>, vector<256x128xf32> -> vector<256x128xf32>
    %77 = arith.addf %70, %76 : vector<256x128xf32>
    %c0_38 = arith.constant 0 : index
    %c0_39 = arith.constant 0 : index
    %78 = vector.load %arg5[%c0_38, %c0_39] : memref<1x128xf32, #tpu.memory_space<vmem>>, vector<1x128xf32>
    %79 = vector.broadcast %78 : vector<1x128xf32> to vector<256x128xf32>
    %80 = arith.addf %77, %79 : vector<256x128xf32>
    %cst_40 = arith.constant 0.000000e+00 : f32
    %81 = vector.broadcast %cst_40 : f32 to vector<256x128xf32>
    %82 = arith.maximumf %80, %81 : vector<256x128xf32>
    %83 = arith.truncf %82 : vector<256x128xf32> to vector<256x128xbf16>
    %c0_41 = arith.constant 0 : index
    %c0_42 = arith.constant 0 : index
    %84 = vector.load %arg6[%c0_41, %c0_42] : memref<128x16xbf16, #tpu.memory_space<vmem>>, vector<128x16xbf16>
    %cst_43 = arith.constant dense<0.000000e+00> : vector<256x16xf32>
    %85 = tpu.matmul %83, %84, %cst_43 {dimension_numbers = #tpu.dot_dimension_numbers<[1], [0], [0], [1], [0, 0, 1, 1], [], []>} : vector<256x128xbf16>, vector<128x16xbf16>, vector<256x16xf32> -> vector<256x16xf32>
    %c0_44 = arith.constant 0 : index
    %c0_45 = arith.constant 0 : index
    %86 = vector.load %arg7[%c0_44, %c0_45] : memref<1x16xf32, #tpu.memory_space<vmem>>, vector<1x16xf32>
    %87 = vector.broadcast %86 : vector<1x16xf32> to vector<256x16xf32>
    %88 = arith.addf %85, %87 : vector<256x16xf32>
    %89 = arith.addf %88, %2 : vector<256x16xf32>
    %cst_46 = arith.constant 0.000000e+00 : f32
    %90 = vector.broadcast %cst_46 : f32 to vector<256x16xf32>
    %91 = arith.maximumf %89, %90 : vector<256x16xf32>
    %92 = vector.shape_cast %91 : vector<256x16xf32> to vector<16x16x16xf32>
    %c0_47 = arith.constant 0 : index
    %c0_48 = arith.constant 0 : index
    %c0_49 = arith.constant 0 : index
    %c0_50 = arith.constant 0 : index
    %93 = vector.load %arg8[%c0_47, %c0_48, %c0_49, %c0_50] : memref<1x16x16x16xf32, #tpu.memory_space<vmem>>, vector<1x16x16x16xf32>
    %94 = vector.shape_cast %93 : vector<1x16x16x16xf32> to vector<16x16x16xf32>
    %95 = vector.shape_cast %92 : vector<16x16x16xf32> to vector<1x16x16x16xf32>
    tpu.vector_store %arg8[%c0_47, %c0_48, %c0_49, %c0_50], %95 {strides = array<i32>} : memref<1x16x16x16xf32, #tpu.memory_space<vmem>>, vector<1x16x16x16xf32>,
    return
  }
  func.func @transform_0(%arg0: i32) -> (i32, i32, i32, i32) {
    %c0_i32 = arith.constant 0 : i32
    %c0_i32_0 = arith.constant 0 : i32
    %c0_i32_1 = arith.constant 0 : i32
    %c0_i32_2 = arith.constant 0 : i32
    return %arg0, %c0_i32, %c0_i32_0, %c0_i32_1 : i32, i32, i32, i32
  }
  func.func @transform_1(%arg0: i32) -> (i32, i32) {
    %c0_i32 = arith.constant 0 : i32
    %c0_i32_0 = arith.constant 0 : i32
    %c0_i32_1 = arith.constant 0 : i32
    return %c0_i32, %c0_i32_0 : i32, i32
  }
  func.func @transform_2(%arg0: i32) -> (i32, i32) {
    %c0_i32 = arith.constant 0 : i32
    %c0_i32_0 = arith.constant 0 : i32
    %c0_i32_1 = arith.constant 0 : i32
    return %c0_i32, %c0_i32_0 : i32, i32
  }
  func.func @transform_3(%arg0: i32) -> (i32, i32, i32) {
    %c0_i32 = arith.constant 0 : i32
    %c0_i32_0 = arith.constant 0 : i32
    %c0_i32_1 = arith.constant 0 : i32
    %c0_i32_2 = arith.constant 0 : i32
    return %c0_i32, %c0_i32_0, %c0_i32_1 : i32, i32, i32
  }
  func.func @transform_4(%arg0: i32) -> (i32, i32) {
    %c0_i32 = arith.constant 0 : i32
    %c0_i32_0 = arith.constant 0 : i32
    %c0_i32_1 = arith.constant 0 : i32
    return %c0_i32, %c0_i32_0 : i32, i32
  }
  func.func @transform_5(%arg0: i32) -> (i32, i32) {
    %c0_i32 = arith.constant 0 : i32
    %c0_i32_0 = arith.constant 0 : i32
    %c0_i32_1 = arith.constant 0 : i32
    return %c0_i32, %c0_i32_0 : i32, i32
  }
  func.func @transform_6(%arg0: i32) -> (i32, i32) {
    %c0_i32 = arith.constant 0 : i32
    %c0_i32_0 = arith.constant 0 : i32
    %c0_i32_1 = arith.constant 0 : i32
    return %c0_i32, %c0_i32_0 : i32, i32
  }
  func.func @transform_7(%arg0: i32) -> (i32, i32, i32, i32) {
    %c0_i32 = arith.constant 0 : i32
    %c0_i32_0 = arith.constant 0 : i32
    %c0_i32_1 = arith.constant 0 : i32
    %c0_i32_2 = arith.constant 0 : i32
    return %arg0, %c0_i32, %c0_i32_0, %c0_i32_1 : i32, i32, i32, i32
  }
}

</mosaic_0001>

<llo_original>
// kernel: bottleneck_forward.1
$region0: #{bottleneck_forward.1}
  #allocation0 [shape = 'u32[]', space=smem, size = 0x4, offset = 0x4, fixed_abs, tag = 'smem constant byte address 0x4 - core index']
  #allocation1 [shape = 'u32[144,128]{1,0:T(1,128)}', space=vmem, size = 0x12000, scoped, tag = 'internal scratch']
  %s0 = inlined_call_operand.vmem [shape: f32[2,16,16,16], index: 0, kind: input, shape index: {}]
  %s1 = inlined_call_operand.vmem [shape: bf16[16,128], index: 1, kind: input, shape index: {}]
  %s2 = inlined_call_operand.vmem [shape: f32[1,128], index: 2, kind: input, shape index: {}]
  %s3 = inlined_call_operand.vmem [shape: bf16[9,128,128], index: 3, kind: input, shape index: {}]
  %s4 = inlined_call_operand.vmem [shape: f32[1,128], index: 4, kind: input, shape index: {}]
  %s5 = inlined_call_operand.vmem [shape: bf16[128,16], index: 5, kind: input, shape index: {}]
  %s6 = inlined_call_operand.vmem [shape: f32[1,16], index: 6, kind: input, shape index: {}]
  %s7 = inlined_call_operand.vmem [shape: f32[2,16,16,16], index: 7, kind: output, shape index: {}]
  %s8 = sld [smem:[#allocation0]]
  $region61: #{bottleneck_forward.1} parent=0
    _
  %s10 = ssub.s32 1, %s8
  %s11 = scalar_select 0, %s10, %s8
  loop: start=0, step=1, limit=4
  $region2: #{bottleneck_forward.1} parent=0 // loop_pre_header
    _
  $region3: #{bottleneck_forward.1} parent=0 // loop_header
    %s13 = sphi 0, %s17
    %p14 = scmp.ge.s32.totalorder %s13, 4
    %s23 = sphi 0, %s25
    %s26 = sphi 0, %s23
    %s27 = sphi 0, %s26
    %s43 = sphi 0, %s27
    %s47 = sphi 0, %s47
    %s49 = sphi 0, %s47
    %s50 = sphi 0, %s49
    %s64 = sphi 0, %s50
    %s68 = sphi 0, %s68
    %s70 = sphi 0, %s68
    %s71 = sphi 0, %s70
    %s85 = sphi 0, %s71
    %s89 = sphi 0, %s89
    %s91 = sphi 0, %s89
    %s92 = sphi 0, %s91
    %s106 = sphi 0, %s92
    %s110 = sphi 0, %s110
    %s112 = sphi 0, %s110
    %s113 = sphi 0, %s112
    %s127 = sphi 0, %s113
    %s131 = sphi 0, %s131
    %s133 = sphi 0, %s131
    %s134 = sphi 0, %s133
    %s148 = sphi 0, %s134
    %s152 = sphi 0, %s152
    %s154 = sphi 0, %s152
    %s155 = sphi 0, %s154
    %s169 = sphi 0, %s155
    %s175 = sphi 0, %s177
    %s178 = sphi 0, %s175
    %s179 = sphi 0, %s178
    %s195 = sphi 0, %s179
  $region4: #{bottleneck_forward.1} parent=0 // loop_header_branch
    %16 = sbr.rel (%p14) target = $region8
  $region5: #{bottleneck_forward.1} parent=0 // loop_body
    %s18 = ssub.s32 %s13, 1
    %s19 = ssub.s32 %s13, 2
    %s20 = sadd.s32 %s13, 1
    %s21 = ssub.s32 %s13, %s20
    %p22 = scmp.eq.s32.totalorder %s21, 0
    %s24 = sadd.s32 %s23, 1
    %s25 = scalar_select %p22, %s23, %s24
    %p28 = pneg %p22
    %p29 = scmp.eq.s32.totalorder %s13, 1
    %p30 = por %p28, %p29
    %p31 = scmp.ne.s32.totalorder %s23, %s26
    %p32 = scmp.eq.s32.totalorder %s13, 0
    %p33 = por %p31, %p32
    %p34 = scmp.ne.s32.totalorder %s23, %s26
    %p35 = scmp.eq.s32.totalorder %s18, 1
    %p36 = por %p34, %p35
    %p37 = scmp.ne.s32.totalorder %s26, %s27
    %p38 = scmp.eq.s32.totalorder %s18, 0
    %p39 = por %p37, %p38
    %p40 = scmp.ne.s32.totalorder %s26, %s27
    %p41 = scmp.eq.s32.totalorder %s19, 1
    %p42 = por %p40, %p41
    %p44 = scmp.ne.s32.totalorder %s27, %s43
    %p45 = scmp.eq.s32.totalorder %s19, 0
    %p46 = por %p44, %p45
    %s48 = sadd.s32 %s47, 1
    %p51 = scmp.eq.s32.totalorder %s13, 1
    %p52 = scmp.ne.s32.totalorder %s47, %s49
    %p53 = scmp.eq.s32.totalorder %s13, 0
    %p54 = por %p52, %p53
    %p55 = scmp.ne.s32.totalorder %s47, %s49
    %p56 = scmp.eq.s32.totalorder %s18, 1
    %p57 = por %p55, %p56
    %p58 = scmp.ne.s32.totalorder %s49, %s50
    %p59 = scmp.eq.s32.totalorder %s18, 0
    %p60 = por %p58, %p59
    %p61 = scmp.ne.s32.totalorder %s49, %s50
    %p62 = scmp.eq.s32.totalorder %s19, 1
    %p63 = por %p61, %p62
    %p65 = scmp.ne.s32.totalorder %s50, %s64
    %p66 = scmp.eq.s32.totalorder %s19, 0
    %p67 = por %p65, %p66
    %s69 = sadd.s32 %s68, 1
    %p72 = scmp.eq.s32.totalorder %s13, 1
    %p73 = scmp.ne.s32.totalorder %s68, %s70
    %p74 = scmp.eq.s32.totalorder %s13, 0
    %p75 = por %p73, %p74
    %p76 = scmp.ne.s32.totalorder %s68, %s70
    %p77 = scmp.eq.s32.totalorder %s18, 1
    %p78 = por %p76, %p77
    %p79 = scmp.ne.s32.totalorder %s70, %s71
    %p80 = scmp.eq.s32.totalorder %s18, 0
    %p81 = por %p79, %p80
    %p82 = scmp.ne.s32.totalorder %s70, %s71
    %p83 = scmp.eq.s32.totalorder %s19, 1
    %p84 = por %p82, %p83
    %p86 = scmp.ne.s32.totalorder %s71, %s85
    %p87 = scmp.eq.s32.totalorder %s19, 0
    %p88 = por %p86, %p87
    %s90 = sadd.s32 %s89, 1
    %p93 = scmp.eq.s32.totalorder %s13, 1
    %p94 = scmp.ne.s32.totalorder %s89, %s91
    %p95 = scmp.eq.s32.totalorder %s13, 0
    %p96 = por %p94, %p95
    %p97 = scmp.ne.s32.totalorder %s89, %s91
    %p98 = scmp.eq.s32.totalorder %s18, 1
    %p99 = por %p97, %p98
    %p100 = scmp.ne.s32.totalorder %s91, %s92
    %p101 = scmp.eq.s32.totalorder %s18, 0
    %p102 = por %p100, %p101
    %p103 = scmp.ne.s32.totalorder %s91, %s92
    %p104 = scmp.eq.s32.totalorder %s19, 1
    %p105 = por %p103, %p104
    %p107 = scmp.ne.s32.totalorder %s92, %s106
    %p108 = scmp.eq.s32.totalorder %s19, 0
    %p109 = por %p107, %p108
    %s111 = sadd.s32 %s110, 1
    %p114 = scmp.eq.s32.totalorder %s13, 1
    %p115 = scmp.ne.s32.totalorder %s110, %s112
    %p116 = scmp.eq.s32.totalorder %s13, 0
    %p117 = por %p115, %p116
    %p118 = scmp.ne.s32.totalorder %s110, %s112
    %p119 = scmp.eq.s32.totalorder %s18, 1
    %p120 = por %p118, %p119
    %p121 = scmp.ne.s32.totalorder %s112, %s113
    %p122 = scmp.eq.s32.totalorder %s18, 0
    %p123 = por %p121, %p122
    %p124 = scmp.ne.s32.totalorder %s112, %s113
    %p125 = scmp.eq.s32.totalorder %s19, 1
    %p126 = por %p124, %p125
    %p128 = scmp.ne.s32.totalorder %s113, %s127
    %p129 = scmp.eq.s32.totalorder %s19, 0
    %p130 = por %p128, %p129
    %s132 = sadd.s32 %s131, 1
    %p135 = scmp.eq.s32.totalorder %s13, 1
    %p136 = scmp.ne.s32.totalorder %s131, %s133
    %p137 = scmp.eq.s32.totalorder %s13, 0
    %p138 = por %p136, %p137
    %p139 = scmp.ne.s32.totalorder %s131, %s133
    %p140 = scmp.eq.s32.totalorder %s18, 1
    %p141 = por %p139, %p140
    %p142 = scmp.ne.s32.totalorder %s133, %s134
    %p143 = scmp.eq.s32.totalorder %s18, 0
    %p144 = por %p142, %p143
    %p145 = scmp.ne.s32.totalorder %s133, %s134
    %p146 = scmp.eq.s32.totalorder %s19, 1
    %p147 = por %p145, %p146
    %p149 = scmp.ne.s32.totalorder %s134, %s148
    %p150 = scmp.eq.s32.totalorder %s19, 0
    %p151 = por %p149, %p150
    %s153 = sadd.s32 %s152, 1
    %p156 = scmp.eq.s32.totalorder %s13, 1
    %p157 = scmp.ne.s32.totalorder %s152, %s154
    %p158 = scmp.eq.s32.totalorder %s13, 0
    %p159 = por %p157, %p158
    %p160 = scmp.ne.s32.totalorder %s152, %s154
    %p161 = scmp.eq.s32.totalorder %s18, 1
    %p162 = por %p160, %p161
    %p163 = scmp.ne.s32.totalorder %s154, %s155
    %p164 = scmp.eq.s32.totalorder %s18, 0
    %p165 = por %p163, %p164
    %p166 = scmp.ne.s32.totalorder %s154, %s155
    %p167 = scmp.eq.s32.totalorder %s19, 1
    %p168 = por %p166, %p167
    %p170 = scmp.ne.s32.totalorder %s155, %s169
    %p171 = scmp.eq.s32.totalorder %s19, 0
    %p172 = por %p170, %p171
    %s173 = ssub.s32 %s13, %s20
    %p174 = scmp.eq.s32.totalorder %s173, 0
    %s176 = sadd.s32 %s175, 1
    %s177 = scalar_select %p174, %s175, %s176
    %p180 = pneg %p174
    %p181 = scmp.eq.s32.totalorder %s13, 1
    %p182 = por %p180, %p181
    %p183 = scmp.ne.s32.totalorder %s175, %s178
    %p184 = scmp.eq.s32.totalorder %s13, 0
    %p185 = por %p183, %p184
    %p186 = scmp.ne.s32.totalorder %s175, %s178
    %p187 = scmp.eq.s32.totalorder %s18, 1
    %p188 = por %p186, %p187
    %p189 = scmp.ne.s32.totalorder %s178, %s179
    %p190 = scmp.eq.s32.totalorder %s18, 0
    %p191 = por %p189, %p190
    %p192 = scmp.ne.s32.totalorder %s178, %s179
    %p193 = scmp.eq.s32.totalorder %s19, 1
    %p194 = por %p192, %p193
    %p196 = scmp.ne.s32.totalorder %s179, %s195
    %p197 = scmp.eq.s32.totalorder %s19, 0
    %p198 = por %p196, %p197
    %p199 = scmp.le.s32.totalorder 1, %s13
    %p200 = scmp.lt.s32.totalorder %s13, 3
    %p201 = pnand %p199, %p200
    %p202 = pneg %p201
    // Predicated region
    $region9: #{bottleneck_forward.1} parent=5 // pred_check
      _
    $region10: #{bottleneck_forward.1} parent=5 // pred_check_branch
      %204 = sbr.rel (%p201) target = $region12
    $region11: #{bottleneck_forward.1} parent=5 // pred_region
      %s205 = ssub.s32 %s13, 1
      // Predicated region
      $region13: #{bottleneck_forward.1} parent=11 // pred_check
        %p206 = pneg %p60
      $region14: #{bottleneck_forward.1} parent=11 // pred_check_branch
        %208 = sbr.rel (%p206) target = $region16
      $region15: #{bottleneck_forward.1} parent=11 // pred_region
        _
      $region16: #{bottleneck_forward.1} parent=11 // pred_fallthru
        _
      // Predicated region
      $region17: #{bottleneck_forward.1} parent=11 // pred_check
        %p209 = pneg %p81
      $region18: #{bottleneck_forward.1} parent=11 // pred_check_branch
        %211 = sbr.rel (%p209) target = $region20
      $region19: #{bottleneck_forward.1} parent=11 // pred_region
        _
      $region20: #{bottleneck_forward.1} parent=11 // pred_fallthru
        _
      // Predicated region
      $region21: #{bottleneck_forward.1} parent=11 // pred_check
        %p212 = pneg %p102
      $region22: #{bottleneck_forward.1} parent=11 // pred_check_branch
        %214 = sbr.rel (%p212) target = $region24
      $region23: #{bottleneck_forward.1} parent=11 // pred_region
        _
      $region24: #{bottleneck_forward.1} parent=11 // pred_fallthru
        _
      // Predicated region
      $region25: #{bottleneck_forward.1} parent=11 // pred_check
        %p215 = pneg %p123
      $region26: #{bottleneck_forward.1} parent=11 // pred_check_branch
        %217 = sbr.rel (%p215) target = $region28
      $region27: #{bottleneck_forward.1} parent=11 // pred_region
        _
      $region28: #{bottleneck_forward.1} parent=11 // pred_fallthru
        _
      // Predicated region
      $region29: #{bottleneck_forward.1} parent=11 // pred_check
        %p218 = pneg %p144
      $region30: #{bottleneck_forward.1} parent=11 // pred_check_branch
        %220 = sbr.rel (%p218) target = $region32
      $region31: #{bottleneck_forward.1} parent=11 // pred_region
        _
      $region32: #{bottleneck_forward.1} parent=11 // pred_fallthru
        _
      // Predicated region
      $region33: #{bottleneck_forward.1} parent=11 // pred_check
        %p221 = pneg %p165
      $region34: #{bottleneck_forward.1} parent=11 // pred_check_branch
        %223 = sbr.rel (%p221) target = $region36
      $region35: #{bottleneck_forward.1} parent=11 // pred_region
        _
      $region36: #{bottleneck_forward.1} parent=11 // pred_fallthru
        _
    $region12: #{bottleneck_forward.1} parent=5 // pred_fallthru
      _
    %p224 = scmp.lt.s32.totalorder %s13, 2
    // Predicated region
    $region37: #{bottleneck_forward.1} parent=5 // pred_check
      %p225 = pneg %p224
    $region38: #{bottleneck_forward.1} parent=5 // pred_check_branch
      %227 = sbr.rel (%p225) target = $region40
    $region39: #{bottleneck_forward.1} parent=5 // pred_region
      // Predicated region
      $region41: #{bottleneck_forward.1} parent=39 // pred_check
        %p228 = pneg %p33
      $region42: #{bottleneck_forward.1} parent=39 // pred_check_branch
        %230 = sbr.rel (%p228) target = $region44
      $region43: #{bottleneck_forward.1} parent=39 // pred_region
        %p231 = scmp.lt.s32.totalorder %s13, 1
        %s232 = scalar_select %p231, %s13, 1
        %s233 = smul.addr %s232, 32
        %s234 = smul.addr %s233, 8
        %s235 = scalar_lea.vmem %s0, %s234
      $region44: #{bottleneck_forward.1} parent=39 // pred_fallthru
        _
    $region40: #{bottleneck_forward.1} parent=5 // pred_fallthru
      _
    %p236 = scmp.le.s32.totalorder 1, %s13
    %p237 = scmp.lt.s32.totalorder %s13, 3
    %p238 = pnand %p236, %p237
    %p239 = pneg %p238
    // Predicated region
    $region45: #{bottleneck_forward.1} parent=5 // pred_check
      _
    $region46: #{bottleneck_forward.1} parent=5 // pred_check_branch
      %241 = sbr.rel (%p238) target = $region48
    $region47: #{bottleneck_forward.1} parent=5 // pred_region
      %s242 = ssub.s32 %s13, 1
      %p243 = scmp.lt.s32.totalorder %s18, 1
      %s244 = scalar_select %p243, %s18, 1
      %s245 = smul.addr %s244, 32
      %s246 = smul.addr %s245, 8
      %s247 = scalar_lea.vmem %s0, %s246
      %p248 = pneg %p39
      %p249 = pneg %p36
      %p250 = pneg %p60
      %p251 = pneg %p57
      %p252 = pneg %p81
      %p253 = pneg %p78
      %p254 = pneg %p102
      %p255 = pneg %p99
      %p256 = pneg %p123
      %p257 = pneg %p120
      %p258 = pneg %p144
      %p259 = pneg %p141
      %p260 = pneg %p165
      %p261 = pneg %p162
      %p262 = pneg %p191
      %p263 = pneg %p188
      %p264 = scmp.lt.s32.totalorder %s18, 1
      %s265 = scalar_select %p264, %s18, 1
      %s266 = smul.addr %s265, 32
      %s267 = smul.addr %s266, 8
      %s268 = scalar_lea.vmem %s7, %s267
      %p269 = scmp.lt.s32.totalorder %s18, 1
      %s270 = scalar_select %p269, %s18, 1
      %s271 = smul.addr %s270, 32
      %s272 = smul.addr %s271, 8
      %s273 = scalar_lea.vmem %s0, %s272
      %p274 = scmp.lt.s32.totalorder %s18, 1
      %s275 = scalar_select %p274, %s18, 1
      %s276 = smul.addr %s275, 32
      %s277 = smul.addr %s276, 8
      %s278 = scalar_lea.vmem %s7, %s277
      %v280 = vld [vmem:[%s273] sm:$0xff]
      %v281 = vld [vmem:[%s273 + $0x8] sm:$0xff]
      %v282 = vld [vmem:[%s273 + $0x10] sm:$0xff]
      %v283 = vld [vmem:[%s273 + $0x18] sm:$0xff]
      %v284 = vld [vmem:[%s273 + $0x20] sm:$0xff]
      %v285 = vld [vmem:[%s273 + $0x28] sm:$0xff]
      %v286 = vld [vmem:[%s273 + $0x30] sm:$0xff]
      %v287 = vld [vmem:[%s273 + $0x38] sm:$0xff]
      %v288 = vld [vmem:[%s273 + $0x40] sm:$0xff]
      %v289 = vld [vmem:[%s273 + $0x48] sm:$0xff]
      %v290 = vld [vmem:[%s273 + $0x50] sm:$0xff]
      %v291 = vld [vmem:[%s273 + $0x58] sm:$0xff]
      %v292 = vld [vmem:[%s273 + $0x60] sm:$0xff]
      %v293 = vld [vmem:[%s273 + $0x68] sm:$0xff]
      %v294 = vld [vmem:[%s273 + $0x70] sm:$0xff]
      %v295 = vld [vmem:[%s273 + $0x78] sm:$0xff]
      %v296 = vld [vmem:[%s273 + $0x80] sm:$0xff]
      %v297 = vld [vmem:[%s273 + $0x88] sm:$0xff]
      %v298 = vld [vmem:[%s273 + $0x90] sm:$0xff]
      %v299 = vld [vmem:[%s273 + $0x98] sm:$0xff]
      %v300 = vld [vmem:[%s273 + $0xa0] sm:$0xff]
      %v301 = vld [vmem:[%s273 + $0xa8] sm:$0xff]
      %v302 = vld [vmem:[%s273 + $0xb0] sm:$0xff]
      %v303 = vld [vmem:[%s273 + $0xb8] sm:$0xff]
      %v304 = vld [vmem:[%s273 + $0xc0] sm:$0xff]
      %v305 = vld [vmem:[%s273 + $0xc8] sm:$0xff]
      %v306 = vld [vmem:[%s273 + $0xd0] sm:$0xff]
      %v307 = vld [vmem:[%s273 + $0xd8] sm:$0xff]
      %v308 = vld [vmem:[%s273 + $0xe0] sm:$0xff]
      %v309 = vld [vmem:[%s273 + $0xe8] sm:$0xff]
      %v310 = vld [vmem:[%s273 + $0xf0] sm:$0xff]
      %v311 = vld [vmem:[%s273 + $0xf8] sm:$0xff]
      %v312 = vpack.c.bf16 %v281, %v280
      %v313 = vpack.c.bf16 %v283, %v282
      %v314 = vpack.c.bf16 %v285, %v284
      %v315 = vpack.c.bf16 %v287, %v286
      %v316 = vpack.c.bf16 %v289, %v288
      %v317 = vpack.c.bf16 %v291, %v290
      %v318 = vpack.c.bf16 %v293, %v292
      %v319 = vpack.c.bf16 %v295, %v294
      %v320 = vpack.c.bf16 %v297, %v296
      %v321 = vpack.c.bf16 %v299, %v298
      %v322 = vpack.c.bf16 %v301, %v300
      %v323 = vpack.c.bf16 %v303, %v302
      %v324 = vpack.c.bf16 %v305, %v304
      %v325 = vpack.c.bf16 %v307, %v306
      %v326 = vpack.c.bf16 %v309, %v308
      %v327 = vpack.c.bf16 %v311, %v310
      %v328 = vld [vmem:[%s1] sm:$0xf]
      %v329 = vld [vmem:[%s1 + $0x4] sm:$0xf]
      %v330 = vld [vmem:[%s2] sm:$0x1]
      %v332 = vlaneseq
      %v333 = vshrl.u32 %v332, 7
      %v334 = vsub.s32 0, %v333
      %v335 = vrot.slane %v330, %v334
      %v339 = vunpack.c.l.b16 %v328
      %v340 = vunpack.c.l.b16 %v329
      %v341 = vpack.c.b16 %v340, %v339
      %vm343 = vcmask 130048
      %v345 = vsel %vm343, %v312, 0
      %v348 = vsel %vm343, %v313, 0
      %v351 = vsel %vm343, %v314, 0
      %v354 = vsel %vm343, %v315, 0
      %v357 = vsel %vm343, %v316, 0
      %v360 = vsel %vm343, %v317, 0
      %v363 = vsel %vm343, %v318, 0
      %v366 = vsel %vm343, %v319, 0
      %v369 = vsel %vm343, %v320, 0
      %v372 = vsel %vm343, %v321, 0
      %v375 = vsel %vm343, %v322, 0
      %v378 = vsel %vm343, %v323, 0
      %v381 = vsel %vm343, %v324, 0
      %v384 = vsel %vm343, %v325, 0
      %v387 = vsel %vm343, %v326, 0
      %v390 = vsel %vm343, %v327, 0
      %392 = vmatprep.subr.bf16.mxu0 0
      %393 = vmatpush1.bf16.msra.mxu0 %v341
      %394 = vmatprep.subr.bf16.mxu0 0
      %395 = vmatpush1.bf16.msra.mxu0 0
      %396 = vmatprep.subr.bf16.mxu0 0
      %397 = vmatpush1.bf16.msra.mxu0 0
      %398 = vmatprep.subr.bf16.mxu0 0
      %399 = vmatpush1.bf16.msra.mxu0 0
      %400 = vmatprep.subr.bf16.mxu0 0
      %401 = vmatpush1.bf16.msra.mxu0 0
      %402 = vmatprep.subr.bf16.mxu0 0
      %403 = vmatpush1.bf16.msra.mxu0 0
      %404 = vmatprep.subr.bf16.mxu0 0
      %405 = vmatpush1.bf16.msra.mxu0 0
      %406 = vmatprep.subr.bf16.mxu0 0
      %407 = vmatpush1.bf16.msra.mxu0 0
      %408 = vmatprep.subr.bf16.mxu0 0
      %409 = vmatpush1.bf16.msra.mxu0 0
      %410 = vmatprep.subr.bf16.mxu0 0
      %411 = vmatpush1.bf16.msra.mxu0 0
      %412 = vmatprep.subr.bf16.mxu0 0
      %413 = vmatpush1.bf16.msra.mxu0 0
      %414 = vmatprep.subr.bf16.mxu0 0
      %415 = vmatpush1.bf16.msra.mxu0 0
      %416 = vmatprep.subr.bf16.mxu0 0
      %417 = vmatpush1.bf16.msra.mxu0 0
      %418 = vmatprep.subr.bf16.mxu0 0
      %419 = vmatpush1.bf16.msra.mxu0 0
      %420 = vmatprep.subr.bf16.mxu0 0
      %421 = vmatpush1.bf16.msra.mxu0 0
      %422 = vmatprep.subr.bf16.mxu0 0
      %423 = vmatpush1.bf16.msra.mxu0 0
      %424 = vmatprep.mubr.bf16.mxu0 0
      %425 = vmatmul.mubr.bf16.gmra.mrb[0].mxu0 %v345
      %v426 = vpop.f32.mrb[0].mxu0
      %v427 = vadd.f32 %v335, %v426
      %v428 = vpop.f32.mrb[0].mxu0
      %v429 = vpop.f32.mrb[0].mxu0
      %v430 = vadd.f32 %v335, %v429
      %v431 = vpop.f32.mrb[0].mxu0
      %432 = vmatprep.mubr.bf16.mxu0 0
      %433 = vmatmul.mubr.bf16.gmra.mrb[0].mxu0 %v348
      %v434 = vpop.f32.mrb[0].mxu0
      %v435 = vadd.f32 %v335, %v434
      %v436 = vpop.f32.mrb[0].mxu0
      %v437 = vpop.f32.mrb[0].mxu0
      %v438 = vadd.f32 %v335, %v437
      %v439 = vpop.f32.mrb[0].mxu0
      %440 = vmatprep.mubr.bf16.mxu0 0
      %441 = vmatmul.mubr.bf16.gmra.mrb[0].mxu0 %v351
      %v442 = vpop.f32.mrb[0].mxu0
      %v443 = vadd.f32 %v335, %v442
      %v444 = vpop.f32.mrb[0].mxu0
      %v445 = vpop.f32.mrb[0].mxu0
      %v446 = vadd.f32 %v335, %v445
      %v447 = vpop.f32.mrb[0].mxu0
      %448 = vmatprep.mubr.bf16.mxu0 0
      %449 = vmatmul.mubr.bf16.gmra.mrb[0].mxu0 %v354
      %v450 = vpop.f32.mrb[0].mxu0
      %v451 = vadd.f32 %v335, %v450
      %v452 = vpop.f32.mrb[0].mxu0
      %v453 = vpop.f32.mrb[0].mxu0
      %v454 = vadd.f32 %v335, %v453
      %v455 = vpop.f32.mrb[0].mxu0
      %456 = vmatprep.mubr.bf16.mxu0 0
      %457 = vmatmul.mubr.bf16.gmra.mrb[0].mxu0 %v357
      %v458 = vpop.f32.mrb[0].mxu0
      %v459 = vadd.f32 %v335, %v458
      %v460 = vpop.f32.mrb[0].mxu0
      %v461 = vpop.f32.mrb[0].mxu0
      %v462 = vadd.f32 %v335, %v461
      %v463 = vpop.f32.mrb[0].mxu0
      %464 = vmatprep.mubr.bf16.mxu0 0
      %465 = vmatmul.mubr.bf16.gmra.mrb[0].mxu0 %v360
      %v466 = vpop.f32.mrb[0].mxu0
      %v467 = vadd.f32 %v335, %v466
      %v468 = vpop.f32.mrb[0].mxu0
      %v469 = vpop.f32.mrb[0].mxu0
      %v470 = vadd.f32 %v335, %v469
      %v471 = vpop.f32.mrb[0].mxu0
      %472 = vmatprep.mubr.bf16.mxu0 0
      %473 = vmatmul.mubr.bf16.gmra.mrb[0].mxu0 %v363
      %v474 = vpop.f32.mrb[0].mxu0
      %v475 = vadd.f32 %v335, %v474
      %v476 = vpop.f32.mrb[0].mxu0
      %v477 = vpop.f32.mrb[0].mxu0
      %v478 = vadd.f32 %v335, %v477
      %v479 = vpop.f32.mrb[0].mxu0
      %480 = vmatprep.mubr.bf16.mxu0 0
      %481 = vmatmul.mubr.bf16.gmra.mrb[0].mxu0 %v366
      %v482 = vpop.f32.mrb[0].mxu0
      %v483 = vadd.f32 %v335, %v482
      %v484 = vpop.f32.mrb[0].mxu0
      %v485 = vpop.f32.mrb[0].mxu0
      %v486 = vadd.f32 %v335, %v485
      %v487 = vpop.f32.mrb[0].mxu0
      %488 = vmatprep.mubr.bf16.mxu0 0
      %489 = vmatmul.mubr.bf16.gmra.mrb[0].mxu0 %v369
      %v490 = vpop.f32.mrb[0].mxu0
      %v491 = vadd.f32 %v335, %v490
      %v492 = vpop.f32.mrb[0].mxu0
      %v493 = vpop.f32.mrb[0].mxu0
      %v494 = vadd.f32 %v335, %v493
      %v495 = vpop.f32.mrb[0].mxu0
      %496 = vmatprep.mubr.bf16.mxu0 0
      %497 = vmatmul.mubr.bf16.gmra.mrb[0].mxu0 %v372
      %v498 = vpop.f32.mrb[0].mxu0
      %v499 = vadd.f32 %v335, %v498
      %v500 = vpop.f32.mrb[0].mxu0
      %v501 = vpop.f32.mrb[0].mxu0
      %v502 = vadd.f32 %v335, %v501
      %v503 = vpop.f32.mrb[0].mxu0
      %504 = vmatprep.mubr.bf16.mxu0 0
      %505 = vmatmul.mubr.bf16.gmra.mrb[0].mxu0 %v375
      %v506 = vpop.f32.mrb[0].mxu0
      %v507 = vadd.f32 %v335, %v506
      %v508 = vpop.f32.mrb[0].mxu0
      %v509 = vpop.f32.mrb[0].mxu0
      %v510 = vadd.f32 %v335, %v509
      %v511 = vpop.f32.mrb[0].mxu0
      %512 = vmatprep.mubr.bf16.mxu0 0
      %513 = vmatmul.mubr.bf16.gmra.mrb[0].mxu0 %v378
      %v514 = vpop.f32.mrb[0].mxu0
      %v515 = vadd.f32 %v335, %v514
      %v516 = vpop.f32.mrb[0].mxu0
      %v517 = vpop.f32.mrb[0].mxu0
      %v518 = vadd.f32 %v335, %v517
      %v519 = vpop.f32.mrb[0].mxu0
      %520 = vmatprep.mubr.bf16.mxu0 0
      %521 = vmatmul.mubr.bf16.gmra.mrb[0].mxu0 %v381
      %v522 = vpop.f32.mrb[0].mxu0
      %v523 = vadd.f32 %v335, %v522
      %v524 = vpop.f32.mrb[0].mxu0
      %v525 = vpop.f32.mrb[0].mxu0
      %v526 = vadd.f32 %v335, %v525
      %v527 = vpop.f32.mrb[0].mxu0
      %528 = vmatprep.mubr.bf16.mxu0 0
      %529 = vmatmul.mubr.bf16.gmra.mrb[0].mxu0 %v384
      %v530 = vpop.f32.mrb[0].mxu0
      %v531 = vadd.f32 %v335, %v530
      %v532 = vpop.f32.mrb[0].mxu0
      %v533 = vpop.f32.mrb[0].mxu0
      %v534 = vadd.f32 %v335, %v533
      %v535 = vpop.f32.mrb[0].mxu0
      %536 = vmatprep.mubr.bf16.mxu0 0
      %537 = vmatmul.mubr.bf16.gmra.mrb[0].mxu0 %v387
      %v538 = vpop.f32.mrb[0].mxu0
      %v539 = vadd.f32 %v335, %v538
      %v540 = vpop.f32.mrb[0].mxu0
      %v541 = vpop.f32.mrb[0].mxu0
      %v542 = vadd.f32 %v335, %v541
      %v543 = vpop.f32.mrb[0].mxu0
      %544 = vmatprep.mubr.bf16.mxu0 0
      %545 = vmatmul.mubr.bf16.gmra.mrb[0].mxu0 %v390
      %v546 = vpop.f32.mrb[0].mxu0
      %v547 = vadd.f32 %v335, %v546
      %v548 = vpop.f32.mrb[0].mxu0
      %v549 = vpop.f32.mrb[0].mxu0
      %v550 = vadd.f32 %v335, %v549
      %v551 = vpop.f32.mrb[0].mxu0
      %552 = vdwg.mxu0
      %v553 = vmax.f32 %v427, 0.0
      %v554 = vmax.f32 %v430, 0.0
      %v555 = vmax.f32 %v435, 0.0
      %v556 = vmax.f32 %v438, 0.0
      %v557 = vmax.f32 %v443, 0.0
      %v558 = vmax.f32 %v446, 0.0
      %v559 = vmax.f32 %v451, 0.0
      %v560 = vmax.f32 %v454, 0.0
      %v561 = vmax.f32 %v459, 0.0
      %v562 = vmax.f32 %v462, 0.0
      %v563 = vmax.f32 %v467, 0.0
      %v564 = vmax.f32 %v470, 0.0
      %v565 = vmax.f32 %v475, 0.0
      %v566 = vmax.f32 %v478, 0.0
      %v567 = vmax.f32 %v483, 0.0
      %v568 = vmax.f32 %v486, 0.0
      %v569 = vmax.f32 %v491, 0.0
      %v570 = vmax.f32 %v494, 0.0
      %v571 = vmax.f32 %v499, 0.0
      %v572 = vmax.f32 %v502, 0.0
      %v573 = vmax.f32 %v507, 0.0
      %v574 = vmax.f32 %v510, 0.0
      %v575 = vmax.f32 %v515, 0.0
      %v576 = vmax.f32 %v518, 0.0
      %v577 = vmax.f32 %v523, 0.0
      %v578 = vmax.f32 %v526, 0.0
      %v579 = vmax.f32 %v531, 0.0
      %v580 = vmax.f32 %v534, 0.0
      %v581 = vmax.f32 %v539, 0.0
      %v582 = vmax.f32 %v542, 0.0
      %v583 = vmax.f32 %v547, 0.0
      %v584 = vmax.f32 %v550, 0.0
      %vm618 = vcmask 1040384
      %v619 = vrot.slane 0.0, 7
      %v620 = vsel %vm618, %v619, %v619
      %v621 = vrot.slane %v553, 7
      %v622 = vrot.slane %v554, 7
      %v623 = vsel %vm618, %v621, %v622
      %v624 = vrot.slane %v555, 7
      %v625 = vrot.slane %v556, 7
      %v626 = vsel %vm618, %v624, %v625
      %v627 = vrot.slane %v557, 7
      %v628 = vrot.slane %v558, 7
      %v629 = vsel %vm618, %v627, %v628
      %v630 = vrot.slane %v559, 7
      %v631 = vrot.slane %v560, 7
      %v632 = vsel %vm618, %v630, %v631
      %v633 = vrot.slane %v561, 7
      %v634 = vrot.slane %v562, 7
      %v635 = vsel %vm618, %v633, %v634
      %v636 = vrot.slane %v563, 7
      %v637 = vrot.slane %v564, 7
      %v638 = vsel %vm618, %v636, %v637
      %v639 = vrot.slane %v565, 7
      %v640 = vrot.slane %v566, 7
      %v641 = vsel %vm618, %v639, %v640
      %v642 = vrot.slane %v567, 7
      %v643 = vrot.slane %v568, 7
      %v644 = vsel %vm618, %v642, %v643
      %v645 = vrot.slane %v569, 7
      %v646 = vrot.slane %v570, 7
      %v647 = vsel %vm618, %v645, %v646
      %v648 = vrot.slane %v571, 7
      %v649 = vrot.slane %v572, 7
      %v650 = vsel %vm618, %v648, %v649
      %v651 = vrot.slane %v573, 7
      %v652 = vrot.slane %v574, 7
      %v653 = vsel %vm618, %v651, %v652
      %v654 = vrot.slane %v575, 7
      %v655 = vrot.slane %v576, 7
      %v656 = vsel %vm618, %v654, %v655
      %v657 = vrot.slane %v577, 7
      %v658 = vrot.slane %v578, 7
      %v659 = vsel %vm618, %v657, %v658
      %v660 = vrot.slane %v579, 7
      %v661 = vrot.slane %v580, 7
      %v662 = vsel %vm618, %v660, %v661
      %v663 = vrot.slane %v581, 7
      %v664 = vrot.slane %v582, 7
      %v665 = vsel %vm618, %v663, %v664
      %v666 = vrot.slane %v583, 7
      %v667 = vrot.slane %v584, 7
      %v668 = vsel %vm618, %v666, %v667
      %v719 = vsel %vm618, 0.0, %v619
      %v720 = vsel %vm618, 0.0, %v621
      %v721 = vsel %vm618, 0.0, %v624
      %v722 = vsel %vm618, 0.0, %v627
      %v723 = vsel %vm618, 0.0, %v630
      %v724 = vsel %vm618, 0.0, %v633
      %v725 = vsel %vm618, 0.0, %v636
      %v726 = vsel %vm618, 0.0, %v639
      %v727 = vsel %vm618, 0.0, %v642
      %v728 = vsel %vm618, 0.0, %v645
      %v729 = vsel %vm618, 0.0, %v648
      %v730 = vsel %vm618, 0.0, %v651
      %v731 = vsel %vm618, 0.0, %v654
      %v732 = vsel %vm618, 0.0, %v657
      %v733 = vsel %vm618, 0.0, %v660
      %v734 = vsel %vm618, 0.0, %v663
      %v735 = vsel %vm618, 0.0, %v666
      %v736 = vsel %vm618, %v619, 0.0
      %v737 = vsel %vm618, %v622, 0.0
      %v738 = vsel %vm618, %v625, 0.0
      %v739 = vsel %vm618, %v628, 0.0
      %v740 = vsel %vm618, %v631, 0.0
      %v741 = vsel %vm618, %v634, 0.0
      %v742 = vsel %vm618, %v637, 0.0
      %v743 = vsel %vm618, %v640, 0.0
      %v744 = vsel %vm618, %v643, 0.0
      %v745 = vsel %vm618, %v646, 0.0
      %v746 = vsel %vm618, %v649, 0.0
      %v747 = vsel %vm618, %v652, 0.0
      %v748 = vsel %vm618, %v655, 0.0
      %v749 = vsel %vm618, %v658, 0.0
      %v750 = vsel %vm618, %v661, 0.0
      %v751 = vsel %vm618, %v664, 0.0
      %v752 = vsel %vm618, %v667, 0.0
      %v753 = vpack.c.bf16 %v620, %v719
      %v754 = vpack.c.bf16 %v623, %v720
      %v755 = vpack.c.bf16 %v626, %v721
      %v756 = vpack.c.bf16 %v629, %v722
      %v757 = vpack.c.bf16 %v632, %v723
      %v758 = vpack.c.bf16 %v635, %v724
      %v759 = vpack.c.bf16 %v638, %v725
      %v760 = vpack.c.bf16 %v641, %v726
      %v761 = vpack.c.bf16 %v644, %v727
      %v762 = vpack.c.bf16 %v647, %v728
      %v763 = vpack.c.bf16 %v650, %v729
      %v764 = vpack.c.bf16 %v653, %v730
      %v765 = vpack.c.bf16 %v656, %v731
      %v766 = vpack.c.bf16 %v659, %v732
      %v767 = vpack.c.bf16 %v662, %v733
      %v768 = vpack.c.bf16 %v665, %v734
      %v769 = vld [vmem:[%s3] sm:$0xf]
      %v770 = vld [vmem:[%s3 + $0x4] sm:$0xf]
      %v771 = vld [vmem:[%s3 + $0x8] sm:$0xf]
      %v772 = vld [vmem:[%s3 + $0xc] sm:$0xf]
      %v773 = vld [vmem:[%s3 + $0x10] sm:$0xf]
      %v774 = vld [vmem:[%s3 + $0x14] sm:$0xf]
      %v775 = vld [vmem:[%s3 + $0x18] sm:$0xf]
      %v776 = vld [vmem:[%s3 + $0x1c] sm:$0xf]
      %v777 = vld [vmem:[%s3 + $0x20] sm:$0xf]
      %v778 = vld [vmem:[%s3 + $0x24] sm:$0xf]
      %v779 = vld [vmem:[%s3 + $0x28] sm:$0xf]
      %v780 = vld [vmem:[%s3 + $0x2c] sm:$0xf]
      %v781 = vld [vmem:[%s3 + $0x30] sm:$0xf]
      %v782 = vld [vmem:[%s3 + $0x34] sm:$0xf]
      %v783 = vld [vmem:[%s3 + $0x38] sm:$0xf]
      %v784 = vld [vmem:[%s3 + $0x3c] sm:$0xf]
      %vm817 = vcmask 1046528
      %v818 = vrot.slane %v719, 1
      %v819 = vrot.slane %v620, 1
      %v820 = vsel %vm817, %v818, %v819
      %v821 = vrot.slane %v736, 1
      %v822 = vsel %vm817, %v819, %v821
      %v823 = vrot.slane %v720, 1
      %v824 = vrot.slane %v623, 1
      %v825 = vsel %vm817, %v823, %v824
      %v826 = vrot.slane %v737, 1
      %v827 = vsel %vm817, %v824, %v826
      %v828 = vrot.slane %v721, 1
      %v829 = vrot.slane %v626, 1
      %v830 = vsel %vm817, %v828, %v829
      %v831 = vrot.slane %v738, 1
      %v832 = vsel %vm817, %v829, %v831
      %v833 = vrot.slane %v722, 1
      %v834 = vrot.slane %v629, 1
      %v835 = vsel %vm817, %v833, %v834
      %v836 = vrot.slane %v739, 1
      %v837 = vsel %vm817, %v834, %v836
      %v838 = vrot.slane %v723, 1
      %v839 = vrot.slane %v632, 1
      %v840 = vsel %vm817, %v838, %v839
      %v841 = vrot.slane %v740, 1
      %v842 = vsel %vm817, %v839, %v841
      %v843 = vrot.slane %v724, 1
      %v844 = vrot.slane %v635, 1
      %v845 = vsel %vm817, %v843, %v844
      %v846 = vrot.slane %v741, 1
      %v847 = vsel %vm817, %v844, %v846
      %v848 = vrot.slane %v725, 1
      %v849 = vrot.slane %v638, 1
      %v850 = vsel %vm817, %v848, %v849
      %v851 = vrot.slane %v742, 1
      %v852 = vsel %vm817, %v849, %v851
      %v853 = vrot.slane %v726, 1
      %v854 = vrot.slane %v641, 1
      %v855 = vsel %vm817, %v853, %v854
      %v856 = vrot.slane %v743, 1
      %v857 = vsel %vm817, %v854, %v856
      %v858 = vrot.slane %v727, 1
      %v859 = vrot.slane %v644, 1
      %v860 = vsel %vm817, %v858, %v859
      %v861 = vrot.slane %v744, 1
      %v862 = vsel %vm817, %v859, %v861
      %v863 = vrot.slane %v728, 1
      %v864 = vrot.slane %v647, 1
      %v865 = vsel %vm817, %v863, %v864
      %v866 = vrot.slane %v745, 1
      %v867 = vsel %vm817, %v864, %v866
      %v868 = vrot.slane %v729, 1
      %v869 = vrot.slane %v650, 1
      %v870 = vsel %vm817, %v868, %v869
      %v871 = vrot.slane %v746, 1
      %v872 = vsel %vm817, %v869, %v871
      %v873 = vrot.slane %v730, 1
      %v874 = vrot.slane %v653, 1
      %v875 = vsel %vm817, %v873, %v874
      %v876 = vrot.slane %v747, 1
      %v877 = vsel %vm817, %v874, %v876
      %v878 = vrot.slane %v731, 1
      %v879 = vrot.slane %v656, 1
      %v880 = vsel %vm817, %v878, %v879
      %v881 = vrot.slane %v748, 1
      %v882 = vsel %vm817, %v879, %v881
      %v883 = vrot.slane %v732, 1
      %v884 = vrot.slane %v659, 1
      %v885 = vsel %vm817, %v883, %v884
      %v886 = vrot.slane %v749, 1
      %v887 = vsel %vm817, %v884, %v886
      %v888 = vrot.slane %v733, 1
      %v889 = vrot.slane %v662, 1
      %v890 = vsel %vm817, %v888, %v889
      %v891 = vrot.slane %v750, 1
      %v892 = vsel %vm817, %v889, %v891
      %v893 = vrot.slane %v734, 1
      %v894 = vrot.slane %v665, 1
      %v895 = vsel %vm817, %v893, %v894
      %v896 = vrot.slane %v751, 1
      %v897 = vsel %vm817, %v894, %v896
      %v930 = vpack.c.bf16 %v822, %v820
      %v931 = vpack.c.bf16 %v827, %v825
      %v932 = vpack.c.bf16 %v832, %v830
      %v933 = vpack.c.bf16 %v837, %v835
      %v934 = vpack.c.bf16 %v842, %v840
      %v935 = vpack.c.bf16 %v847, %v845
      %v936 = vpack.c.bf16 %v852, %v850
      %v937 = vpack.c.bf16 %v857, %v855
      %v938 = vpack.c.bf16 %v862, %v860
      %v939 = vpack.c.bf16 %v867, %v865
      %v940 = vpack.c.bf16 %v872, %v870
      %v941 = vpack.c.bf16 %v877, %v875
      %v942 = vpack.c.bf16 %v882, %v880
      %v943 = vpack.c.bf16 %v887, %v885
      %v944 = vpack.c.bf16 %v892, %v890
      %v945 = vpack.c.bf16 %v897, %v895
      %s946 = scalar_lea.vmem %s3, 64
      %v947 = vld [vmem:[%s946] sm:$0xf]
      %v948 = vld [vmem:[%s946 + $0x4] sm:$0xf]
      %v949 = vld [vmem:[%s946 + $0x8] sm:$0xf]
      %v950 = vld [vmem:[%s946 + $0xc] sm:$0xf]
      %v951 = vld [vmem:[%s946 + $0x10] sm:$0xf]
      %v952 = vld [vmem:[%s946 + $0x14] sm:$0xf]
      %v953 = vld [vmem:[%s946 + $0x18] sm:$0xf]
      %v954 = vld [vmem:[%s946 + $0x1c] sm:$0xf]
      %v955 = vld [vmem:[%s946 + $0x20] sm:$0xf]
      %v956 = vld [vmem:[%s946 + $0x24] sm:$0xf]
      %v957 = vld [vmem:[%s946 + $0x28] sm:$0xf]
      %v958 = vld [vmem:[%s946 + $0x2c] sm:$0xf]
      %v959 = vld [vmem:[%s946 + $0x30] sm:$0xf]
      %v960 = vld [vmem:[%s946 + $0x34] sm:$0xf]
      %v961 = vld [vmem:[%s946 + $0x38] sm:$0xf]
      %v962 = vld [vmem:[%s946 + $0x3c] sm:$0xf]
      %v979 = vunpack.c.l.b16 %v947
      %v980 = vunpack.c.l.b16 %v948
      %v981 = vunpack.c.l.b16 %v949
      %v982 = vunpack.c.l.b16 %v950
      %v983 = vunpack.c.l.b16 %v951
      %v984 = vunpack.c.l.b16 %v952
      %v985 = vunpack.c.l.b16 %v953
      %v986 = vunpack.c.l.b16 %v954
      %v987 = vunpack.c.l.b16 %v955
      %v988 = vunpack.c.l.b16 %v956
      %v989 = vunpack.c.l.b16 %v957
      %v990 = vunpack.c.l.b16 %v958
      %v991 = vunpack.c.l.b16 %v959
      %v992 = vunpack.c.l.b16 %v960
      %v993 = vunpack.c.l.b16 %v961
      %v994 = vunpack.c.l.b16 %v962
      %v995 = vpack.c.b16 %v980, %v979
      %v996 = vpack.c.b16 %v982, %v981
      %v997 = vpack.c.b16 %v984, %v983
      %v998 = vpack.c.b16 %v986, %v985
      %v999 = vpack.c.b16 %v988, %v987
      %v1000 = vpack.c.b16 %v990, %v989
      %v1001 = vpack.c.b16 %v992, %v991
      %v1002 = vpack.c.b16 %v994, %v993
      %1011 = vmatprep.subr.bf16.mxu0 0
      %1012 = vmatpush1.bf16.msra.mxu0 %v995
      %1013 = vmatprep.subr.bf16.mxu0 0
      %1014 = vmatpush1.bf16.msra.mxu0 %v996
      %1015 = vmatprep.subr.bf16.mxu0 0
      %1016 = vmatpush1.bf16.msra.mxu0 %v997
      %1017 = vmatprep.subr.bf16.mxu0 0
      %1018 = vmatpush1.bf16.msra.mxu0 %v998
      %1019 = vmatprep.subr.bf16.mxu0 0
      %1020 = vmatpush1.bf16.msra.mxu0 %v999
      %1021 = vmatprep.subr.bf16.mxu0 0
      %1022 = vmatpush1.bf16.msra.mxu0 %v1000
      %1023 = vmatprep.subr.bf16.mxu0 0
      %1024 = vmatpush1.bf16.msra.mxu0 %v1001
      %1025 = vmatprep.subr.bf16.mxu0 0
      %1026 = vmatpush1.bf16.msra.mxu0 %v1002
      %1027 = vmatprep.subr.bf16.mxu0 0
      %1028 = vmatpush1.bf16.msra.mxu0 0
      %1029 = vmatprep.subr.bf16.mxu0 0
      %1030 = vmatpush1.bf16.msra.mxu0 0
      %1031 = vmatprep.subr.bf16.mxu0 0
      %1032 = vmatpush1.bf16.msra.mxu0 0
      %1033 = vmatprep.subr.bf16.mxu0 0
      %1034 = vmatpush1.bf16.msra.mxu0 0
      %1035 = vmatprep.subr.bf16.mxu0 0
      %1036 = vmatpush1.bf16.msra.mxu0 0
      %1037 = vmatprep.subr.bf16.mxu0 0
      %1038 = vmatpush1.bf16.msra.mxu0 0
      %1039 = vmatprep.subr.bf16.mxu0 0
      %1040 = vmatpush1.bf16.msra.mxu0 0
      %1041 = vmatprep.subr.bf16.mxu0 0
      %1042 = vmatpush1.bf16.msra.mxu0 0
      %1043 = vmatprep.mubr.bf16.mxu0 0
      %1044 = vmatmul.mubr.bf16.gmra.mrb[0].mxu0 %v930
      %v1045 = vpop.f32.mrb[0].mxu0
      %v1046 = vadd.f32 0.0, %v1045
      %v1047 = vpop.f32.mrb[0].mxu0
      %v1048 = vpop.f32.mrb[0].mxu0
      %v1049 = vadd.f32 0.0, %v1048
      %v1050 = vpop.f32.mrb[0].mxu0
      %1051 = vmatprep.mubr.bf16.mxu0 0
      %1052 = vmatmul.mubr.bf16.gmra.mrb[0].mxu0 %v931
      %v1053 = vpop.f32.mrb[0].mxu0
      %v1054 = vadd.f32 0.0, %v1053
      %v1055 = vpop.f32.mrb[0].mxu0
      %v1056 = vpop.f32.mrb[0].mxu0
      %v1057 = vadd.f32 0.0, %v1056
      %v1058 = vpop.f32.mrb[0].mxu0
      %1059 = vmatprep.mubr.bf16.mxu0 0
      %1060 = vmatmul.mubr.bf16.gmra.mrb[0].mxu0 %v932
      %v1061 = vpop.f32.mrb[0].mxu0
      %v1062 = vadd.f32 0.0, %v1061
      %v1063 = vpop.f32.mrb[0].mxu0
      %v1064 = vpop.f32.mrb[0].mxu0
      %v1065 = vadd.f32 0.0, %v1064
      %v1066 = vpop.f32.mrb[0].mxu0
      %1067 = vmatprep.mubr.bf16.mxu0 0
      %1068 = vmatmul.mubr.bf16.gmra.mrb[0].mxu0 %v933
      %v1069 = vpop.f32.mrb[0].mxu0
      %v1070 = vadd.f32 0.0, %v1069
      %v1071 = vpop.f32.mrb[0].mxu0
      %v1072 = vpop.f32.mrb[0].mxu0
      %v1073 = vadd.f32 0.0, %v1072
      %v1074 = vpop.f32.mrb[0].mxu0
      %1075 = vmatprep.mubr.bf16.mxu0 0
      %1076 = vmatmul.mubr.bf16.gmra.mrb[0].mxu0 %v934
      %v1077 = vpop.f32.mrb[0].mxu0
      %v1078 = vadd.f32 0.0, %v1077
      %v1079 = vpop.f32.mrb[0].mxu0
      %v1080 = vpop.f32.mrb[0].mxu0
      %v1081 = vadd.f32 0.0, %v1080
      %v1082 = vpop.f32.mrb[0].mxu0
      %1083 = vmatprep.mubr.bf16.mxu0 0
      %1084 = vmatmul.mubr.bf16.gmra.mrb[0].mxu0 %v935
      %v1085 = vpop.f32.mrb[0].mxu0
      %v1086 = vadd.f32 0.0, %v1085
      %v1087 = vpop.f32.mrb[0].mxu0
      %v1088 = vpop.f32.mrb[0].mxu0
      %v1089 = vadd.f32 0.0, %v1088
      %v1090 = vpop.f32.mrb[0].mxu0
      %1091 = vmatprep.mubr.bf16.mxu0 0
      %1092 = vmatmul.mubr.bf16.gmra.mrb[0].mxu0 %v936
      %v1093 = vpop.f32.mrb[0].mxu0
      %v1094 = vadd.f32 0.0, %v1093
      %v1095 = vpop.f32.mrb[0].mxu0
      %v1096 = vpop.f32.mrb[0].mxu0
      %v1097 = vadd.f32 0.0, %v1096
      %v1098 = vpop.f32.mrb[0].mxu0
      %1099 = vmatprep.mubr.bf16.mxu0 0
      %1100 = vmatmul.mubr.bf16.gmra.mrb[0].mxu0 %v937
      %v1101 = vpop.f32.mrb[0].mxu0
      %v1102 = vadd.f32 0.0, %v1101
      %v1103 = vpop.f32.mrb[0].mxu0
      %v1104 = vpop.f32.mrb[0].mxu0
      %v1105 = vadd.f32 0.0, %v1104
      %v1106 = vpop.f32.mrb[0].mxu0
      %1107 = vmatprep.mubr.bf16.mxu0 0
      %1108 = vmatmul.mubr.bf16.gmra.mrb[0].mxu0 %v938
      %v1109 = vpop.f32.mrb[0].mxu0
      %v1110 = vadd.f32 0.0, %v1109
      %v1111 = vpop.f32.mrb[0].mxu0
      %v1112 = vpop.f32.mrb[0].mxu0
      %v1113 = vadd.f32 0.0, %v1112
      %v1114 = vpop.f32.mrb[0].mxu0
      %1115 = vmatprep.mubr.bf16.mxu0 0
      %1116 = vmatmul.mubr.bf16.gmra.mrb[0].mxu0 %v939
      %v1117 = vpop.f32.mrb[0].mxu0
      %v1118 = vadd.f32 0.0, %v1117
      %v1119 = vpop.f32.mrb[0].mxu0
      %v1120 = vpop.f32.mrb[0].mxu0
      %v1121 = vadd.f32 0.0, %v1120
      %v1122 = vpop.f32.mrb[0].mxu0
      %1123 = vmatprep.mubr.bf16.mxu0 0
      %1124 = vmatmul.mubr.bf16.gmra.mrb[0].mxu0 %v940
      %v1125 = vpop.f32.mrb[0].mxu0
      %v1126 = vadd.f32 0.0, %v1125
      %v1127 = vpop.f32.mrb[0].mxu0
      %v1128 = vpop.f32.mrb[0].mxu0
      %v1129 = vadd.f32 0.0, %v1128
      %v1130 = vpop.f32.mrb[0].mxu0
      %1131 = vmatprep.mubr.bf16.mxu0 0
      %1132 = vmatmul.mubr.bf16.gmra.mrb[0].mxu0 %v941
      %v1133 = vpop.f32.mrb[0].mxu0
      %v1134 = vadd.f32 0.0, %v1133
      %v1135 = vpop.f32.mrb[0].mxu0
      %v1136 = vpop.f32.mrb[0].mxu0
      %v1137 = vadd.f32 0.0, %v1136
      %v1138 = vpop.f32.mrb[0].mxu0
      %1139 = vmatprep.mubr.bf16.mxu0 0
      %1140 = vmatmul.mubr.bf16.gmra.mrb[0].mxu0 %v942
      %v1141 = vpop.f32.mrb[0].mxu0
      %v1142 = vadd.f32 0.0, %v1141
      %v1143 = vpop.f32.mrb[0].mxu0
      %v1144 = vpop.f32.mrb[0].mxu0
      %v1145 = vadd.f32 0.0, %v1144
      %v1146 = vpop.f32.mrb[0].mxu0
      %1147 = vmatprep.mubr.bf16.mxu0 0
      %1148 = vmatmul.mubr.bf16.gmra.mrb[0].mxu0 %v943
      %v1149 = vpop.f32.mrb[0].mxu0
      %v1150 = vadd.f32 0.0, %v1149
      %v1151 = vpop.f32.mrb[0].mxu0
      %v1152 = vpop.f32.mrb[0].mxu0
      %v1153 = vadd.f32 0.0, %v1152
      %v1154 = vpop.f32.mrb[0].mxu0
      %1155 = vmatprep.mubr.bf16.mxu0 0
      %1156 = vmatmul.mubr.bf16.gmra.mrb[0].mxu0 %v944
      %v1157 = vpop.f32.mrb[0].mxu0
      %v1158 = vadd.f32 0.0, %v1157
      %v1159 = vpop.f32.mrb[0].mxu0
      %v1160 = vpop.f32.mrb[0].mxu0
      %v1161 = vadd.f32 0.0, %v1160
      %v1162 = vpop.f32.mrb[0].mxu0
      %1163 = vmatprep.mubr.bf16.mxu0 0
      %1164 = vmatmul.mubr.bf16.gmra.mrb[0].mxu0 %v945
      %v1165 = vpop.f32.mrb[0].mxu0
      %v1166 = vadd.f32 0.0, %v1165
      %v1167 = vpop.f32.mrb[0].mxu0
      %v1168 = vpop.f32.mrb[0].mxu0
      %v1169 = vadd.f32 0.0, %v1168
      %v1170 = vpop.f32.mrb[0].mxu0
      %1171 = vdwg.mxu0
      %v1188 = vunpack.c.l.b16 %v769
      %v1189 = vunpack.c.l.b16 %v770
      %v1190 = vunpack.c.l.b16 %v771
      %v1191 = vunpack.c.l.b16 %v772
      %v1192 = vunpack.c.l.b16 %v773
      %v1193 = vunpack.c.l.b16 %v774
      %v1194 = vunpack.c.l.b16 %v775
      %v1195 = vunpack.c.l.b16 %v776
      %v1196 = vunpack.c.l.b16 %v777
      %v1197 = vunpack.c.l.b16 %v778
      %v1198 = vunpack.c.l.b16 %v779
      %v1199 = vunpack.c.l.b16 %v780
      %v1200 = vunpack.c.l.b16 %v781
      %v1201 = vunpack.c.l.b16 %v782
      %v1202 = vunpack.c.l.b16 %v783
      %v1203 = vunpack.c.l.b16 %v784
      %v1204 = vpack.c.b16 %v1189, %v1188
      %v1205 = vpack.c.b16 %v1191, %v1190
      %v1206 = vpack.c.b16 %v1193, %v1192
      %v1207 = vpack.c.b16 %v1195, %v1194
      %v1208 = vpack.c.b16 %v1197, %v1196
      %v1209 = vpack.c.b16 %v1199, %v1198
      %v1210 = vpack.c.b16 %v1201, %v1200
      %v1211 = vpack.c.b16 %v1203, %v1202
      %1220 = vmatprep.subr.bf16.mxu0 0
      %1221 = vmatpush1.bf16.msra.mxu0 %v1204
      %1222 = vmatprep.subr.bf16.mxu0 0
      %1223 = vmatpush1.bf16.msra.mxu0 %v1205
      %1224 = vmatprep.subr.bf16.mxu0 0
      %1225 = vmatpush1.bf16.msra.mxu0 %v1206
      %1226 = vmatprep.subr.bf16.mxu0 0
      %1227 = vmatpush1.bf16.msra.mxu0 %v1207
      %1228 = vmatprep.subr.bf16.mxu0 0
      %1229 = vmatpush1.bf16.msra.mxu0 %v1208
      %1230 = vmatprep.subr.bf16.mxu0 0
      %1231 = vmatpush1.bf16.msra.mxu0 %v1209
      %1232 = vmatprep.subr.bf16.mxu0 0
      %1233 = vmatpush1.bf16.msra.mxu0 %v1210
      %1234 = vmatprep.subr.bf16.mxu0 0
      %1235 = vmatpush1.bf16.msra.mxu0 %v1211
      %1236 = vmatprep.subr.bf16.mxu0 0
      %1237 = vmatpush1.bf16.msra.mxu0 0
      %1238 = vmatprep.subr.bf16.mxu0 0
      %1239 = vmatpush1.bf16.msra.mxu0 0
      %1240 = vmatprep.subr.bf16.mxu0 0
      %1241 = vmatpush1.bf16.msra.mxu0 0
      %1242 = vmatprep.subr.bf16.mxu0 0
      %1243 = vmatpush1.bf16.msra.mxu0 0
      %1244 = vmatprep.subr.bf16.mxu0 0
      %1245 = vmatpush1.bf16.msra.mxu0 0
      %1246 = vmatprep.subr.bf16.mxu0 0
      %1247 = vmatpush1.bf16.msra.mxu0 0
      %1248 = vmatprep.subr.bf16.mxu0 0
      %1249 = vmatpush1.bf16.msra.mxu0 0
      %1250 = vmatprep.subr.bf16.mxu0 0
      %1251 = vmatpush1.bf16.msra.mxu0 0
      %1252 = vmatprep.mubr.bf16.mxu0 0
      %1253 = vmatmul.mubr.bf16.gmra.mrb[0].mxu0 %v753
      %v1254 = vpop.f32.mrb[0].mxu0
      %v1255 = vadd.f32 %v1046, %v1254
      %v1256 = vpop.f32.mrb[0].mxu0
      %v1257 = vpop.f32.mrb[0].mxu0
      %v1258 = vadd.f32 %v1049, %v1257
      %v1259 = vpop.f32.mrb[0].mxu0
      %1260 = vmatprep.mubr.bf16.mxu0 0
      %1261 = vmatmul.mubr.bf16.gmra.mrb[0].mxu0 %v754
      %v1262 = vpop.f32.mrb[0].mxu0
      %v1263 = vadd.f32 %v1054, %v1262
      %v1264 = vpop.f32.mrb[0].mxu0
      %v1265 = vpop.f32.mrb[0].mxu0
      %v1266 = vadd.f32 %v1057, %v1265
      %v1267 = vpop.f32.mrb[0].mxu0
      %1268 = vmatprep.mubr.bf16.mxu0 0
      %1269 = vmatmul.mubr.bf16.gmra.mrb[0].mxu0 %v755
      %v1270 = vpop.f32.mrb[0].mxu0
      %v1271 = vadd.f32 %v1062, %v1270
      %v1272 = vpop.f32.mrb[0].mxu0
      %v1273 = vpop.f32.mrb[0].mxu0
      %v1274 = vadd.f32 %v1065, %v1273
      %v1275 = vpop.f32.mrb[0].mxu0
      %1276 = vmatprep.mubr.bf16.mxu0 0
      %1277 = vmatmul.mubr.bf16.gmra.mrb[0].mxu0 %v756
      %v1278 = vpop.f32.mrb[0].mxu0
      %v1279 = vadd.f32 %v1070, %v1278
      %v1280 = vpop.f32.mrb[0].mxu0
      %v1281 = vpop.f32.mrb[0].mxu0
      %v1282 = vadd.f32 %v1073, %v1281
      %v1283 = vpop.f32.mrb[0].mxu0
      %1284 = vmatprep.mubr.bf16.mxu0 0
      %1285 = vmatmul.mubr.bf16.gmra.mrb[0].mxu0 %v757
      %v1286 = vpop.f32.mrb[0].mxu0
      %v1287 = vadd.f32 %v1078, %v1286
      %v1288 = vpop.f32.mrb[0].mxu0
      %v1289 = vpop.f32.mrb[0].mxu0
      %v1290 = vadd.f32 %v1081, %v1289
      %v1291 = vpop.f32.mrb[0].mxu0
      %1292 = vmatprep.mubr.bf16.mxu0 0
      %1293 = vmatmul.mubr.bf16.gmra.mrb[0].mxu0 %v758
      %v1294 = vpop.f32.mrb[0].mxu0
      %v1295 = vadd.f32 %v1086, %v1294
      %v1296 = vpop.f32.mrb[0].mxu0
      %v1297 = vpop.f32.mrb[0].mxu0
      %v1298 = vadd.f32 %v1089, %v1297
      %v1299 = vpop.f32.mrb[0].mxu0
      %1300 = vmatprep.mubr.bf16.mxu0 0
      %1301 = vmatmul.mubr.bf16.gmra.mrb[0].mxu0 %v759
      %v1302 = vpop.f32.mrb[0].mxu0
      %v1303 = vadd.f32 %v1094, %v1302
      %v1304 = vpop.f32.mrb[0].mxu0
      %v1305 = vpop.f32.mrb[0].mxu0
      %v1306 = vadd.f32 %v1097, %v1305
      %v1307 = vpop.f32.mrb[0].mxu0
      %1308 = vmatprep.mubr.bf16.mxu0 0
      %1309 = vmatmul.mubr.bf16.gmra.mrb[0].mxu0 %v760
      %v1310 = vpop.f32.mrb[0].mxu0
      %v1311 = vadd.f32 %v1102, %v1310
      %v1312 = vpop.f32.mrb[0].mxu0
      %v1313 = vpop.f32.mrb[0].mxu0
      %v1314 = vadd.f32 %v1105, %v1313
      %v1315 = vpop.f32.mrb[0].mxu0
      %1316 = vmatprep.mubr.bf16.mxu0 0
      %1317 = vmatmul.mubr.bf16.gmra.mrb[0].mxu0 %v761
      %v1318 = vpop.f32.mrb[0].mxu0
      %v1319 = vadd.f32 %v1110, %v1318
      %v1320 = vpop.f32.mrb[0].mxu0
      %v1321 = vpop.f32.mrb[0].mxu0
      %v1322 = vadd.f32 %v1113, %v1321
      %v1323 = vpop.f32.mrb[0].mxu0
      %1324 = vmatprep.mubr.bf16.mxu0 0
      %1325 = vmatmul.mubr.bf16.gmra.mrb[0].mxu0 %v762
      %v1326 = vpop.f32.mrb[0].mxu0
      %v1327 = vadd.f32 %v1118, %v1326
      %v1328 = vpop.f32.mrb[0].mxu0
      %v1329 = vpop.f32.mrb[0].mxu0
      %v1330 = vadd.f32 %v1121, %v1329
      %v1331 = vpop.f32.mrb[0].mxu0
      %1332 = vmatprep.mubr.bf16.mxu0 0
      %1333 = vmatmul.mubr.bf16.gmra.mrb[0].mxu0 %v763
      %v1334 = vpop.f32.mrb[0].mxu0
      %v1335 = vadd.f32 %v1126, %v1334
      %v1336 = vpop.f32.mrb[0].mxu0
      %v1337 = vpop.f32.mrb[0].mxu0
      %v1338 = vadd.f32 %v1129, %v1337
      %v1339 = vpop.f32.mrb[0].mxu0
      %1340 = vmatprep.mubr.bf16.mxu0 0
      %1341 = vmatmul.mubr.bf16.gmra.mrb[0].mxu0 %v764
      %v1342 = vpop.f32.mrb[0].mxu0
      %v1343 = vadd.f32 %v1134, %v1342
      %v1344 = vpop.f32.mrb[0].mxu0
      %v1345 = vpop.f32.mrb[0].mxu0
      %v1346 = vadd.f32 %v1137, %v1345
      %v1347 = vpop.f32.mrb[0].mxu0
      %1348 = vmatprep.mubr.bf16.mxu0 0
      %1349 = vmatmul.mubr.bf16.gmra.mrb[0].mxu0 %v765
      %v1350 = vpop.f32.mrb[0].mxu0
      %v1351 = vadd.f32 %v1142, %v1350
      %v1352 = vpop.f32.mrb[0].mxu0
      %v1353 = vpop.f32.mrb[0].mxu0
      %v1354 = vadd.f32 %v1145, %v1353
      %v1355 = vpop.f32.mrb[0].mxu0
      %1356 = vmatprep.mubr.bf16.mxu0 0
      %1357 = vmatmul.mubr.bf16.gmra.mrb[0].mxu0 %v766
      %v1358 = vpop.f32.mrb[0].mxu0
      %v1359 = vadd.f32 %v1150, %v1358
      %v1360 = vpop.f32.mrb[0].mxu0
      %v1361 = vpop.f32.mrb[0].mxu0
      %v1362 = vadd.f32 %v1153, %v1361
      %v1363 = vpop.f32.mrb[0].mxu0
      %1364 = vmatprep.mubr.bf16.mxu0 0
      %1365 = vmatmul.mubr.bf16.gmra.mrb[0].mxu0 %v767
      %v1366 = vpop.f32.mrb[0].mxu0
      %v1367 = vadd.f32 %v1158, %v1366
      %v1368 = vpop.f32.mrb[0].mxu0
      %v1369 = vpop.f32.mrb[0].mxu0
      %v1370 = vadd.f32 %v1161, %v1369
      %v1371 = vpop.f32.mrb[0].mxu0
      %1372 = vmatprep.mubr.bf16.mxu0 0
      %1373 = vmatmul.mubr.bf16.gmra.mrb[0].mxu0 %v768
      %v1374 = vpop.f32.mrb[0].mxu0
      %v1375 = vadd.f32 %v1166, %v1374
      %v1376 = vpop.f32.mrb[0].mxu0
      %v1377 = vpop.f32.mrb[0].mxu0
      %v1378 = vadd.f32 %v1169, %v1377
      %v1379 = vpop.f32.mrb[0].mxu0
      %1380 = vdwg.mxu0
      %vm1381 = vcmask 1045504
      %v1382 = vrot.slane %v719, 2
      %v1383 = vrot.slane %v620, 2
      %v1384 = vsel %vm1381, %v1382, %v1383
      %v1385 = vrot.slane %v736, 2
      %v1386 = vsel %vm1381, %v1383, %v1385
      %v1387 = vrot.slane %v720, 2
      %v1388 = vrot.slane %v623, 2
      %v1389 = vsel %vm1381, %v1387, %v1388
      %v1390 = vrot.slane %v737, 2
      %v1391 = vsel %vm1381, %v1388, %v1390
      %v1392 = vrot.slane %v721, 2
      %v1393 = vrot.slane %v626, 2
      %v1394 = vsel %vm1381, %v1392, %v1393
      %v1395 = vrot.slane %v738, 2
      %v1396 = vsel %vm1381, %v1393, %v1395
      %v1397 = vrot.slane %v722, 2
      %v1398 = vrot.slane %v629, 2
      %v1399 = vsel %vm1381, %v1397, %v1398
      %v1400 = vrot.slane %v739, 2
      %v1401 = vsel %vm1381, %v1398, %v1400
      %v1402 = vrot.slane %v723, 2
      %v1403 = vrot.slane %v632, 2
      %v1404 = vsel %vm1381, %v1402, %v1403
      %v1405 = vrot.slane %v740, 2
      %v1406 = vsel %vm1381, %v1403, %v1405
      %v1407 = vrot.slane %v724, 2
      %v1408 = vrot.slane %v635, 2
      %v1409 = vsel %vm1381, %v1407, %v1408
      %v1410 = vrot.slane %v741, 2
      %v1411 = vsel %vm1381, %v1408, %v1410
      %v1412 = vrot.slane %v725, 2
      %v1413 = vrot.slane %v638, 2
      %v1414 = vsel %vm1381, %v1412, %v1413
      %v1415 = vrot.slane %v742, 2
      %v1416 = vsel %vm1381, %v1413, %v1415
      %v1417 = vrot.slane %v726, 2
      %v1418 = vrot.slane %v641, 2
      %v1419 = vsel %vm1381, %v1417, %v1418
      %v1420 = vrot.slane %v743, 2
      %v1421 = vsel %vm1381, %v1418, %v1420
      %v1422 = vrot.slane %v727, 2
      %v1423 = vrot.slane %v644, 2
      %v1424 = vsel %vm1381, %v1422, %v1423
      %v1425 = vrot.slane %v744, 2
      %v1426 = vsel %vm1381, %v1423, %v1425
      %v1427 = vrot.slane %v728, 2
      %v1428 = vrot.slane %v647, 2
      %v1429 = vsel %vm1381, %v1427, %v1428
      %v1430 = vrot.slane %v745, 2
      %v1431 = vsel %vm1381, %v1428, %v1430
      %v1432 = vrot.slane %v729, 2
      %v1433 = vrot.slane %v650, 2
      %v1434 = vsel %vm1381, %v1432, %v1433
      %v1435 = vrot.slane %v746, 2
      %v1436 = vsel %vm1381, %v1433, %v1435
      %v1437 = vrot.slane %v730, 2
      %v1438 = vrot.slane %v653, 2
      %v1439 = vsel %vm1381, %v1437, %v1438
      %v1440 = vrot.slane %v747, 2
      %v1441 = vsel %vm1381, %v1438, %v1440
      %v1442 = vrot.slane %v731, 2
      %v1443 = vrot.slane %v656, 2
      %v1444 = vsel %vm1381, %v1442, %v1443
      %v1445 = vrot.slane %v748, 2
      %v1446 = vsel %vm1381, %v1443, %v1445
      %v1447 = vrot.slane %v732, 2
      %v1448 = vrot.slane %v659, 2
      %v1449 = vsel %vm1381, %v1447, %v1448
      %v1450 = vrot.slane %v749, 2
      %v1451 = vsel %vm1381, %v1448, %v1450
      %v1452 = vrot.slane %v733, 2
      %v1453 = vrot.slane %v662, 2
      %v1454 = vsel %vm1381, %v1452, %v1453
      %v1455 = vrot.slane %v750, 2
      %v1456 = vsel %vm1381, %v1453, %v1455
      %v1457 = vrot.slane %v734, 2
      %v1458 = vrot.slane %v665, 2
      %v1459 = vsel %vm1381, %v1457, %v1458
      %v1460 = vrot.slane %v751, 2
      %v1461 = vsel %vm1381, %v1458, %v1460
      %v1494 = vpack.c.bf16 %v1386, %v1384
      %v1495 = vpack.c.bf16 %v1391, %v1389
      %v1496 = vpack.c.bf16 %v1396, %v1394
      %v1497 = vpack.c.bf16 %v1401, %v1399
      %v1498 = vpack.c.bf16 %v1406, %v1404
      %v1499 = vpack.c.bf16 %v1411, %v1409
      %v1500 = vpack.c.bf16 %v1416, %v1414
      %v1501 = vpack.c.bf16 %v1421, %v1419
      %v1502 = vpack.c.bf16 %v1426, %v1424
      %v1503 = vpack.c.bf16 %v1431, %v1429
      %v1504 = vpack.c.bf16 %v1436, %v1434
      %v1505 = vpack.c.bf16 %v1441, %v1439
      %v1506 = vpack.c.bf16 %v1446, %v1444
      %v1507 = vpack.c.bf16 %v1451, %v1449
      %v1508 = vpack.c.bf16 %v1456, %v1454
      %v1509 = vpack.c.bf16 %v1461, %v1459
      %s1510 = scalar_lea.vmem %s3, 128
      %v1511 = vld [vmem:[%s1510] sm:$0xf]
      %v1512 = vld [vmem:[%s1510 + $0x4] sm:$0xf]
      %v1513 = vld [vmem:[%s1510 + $0x8] sm:$0xf]
      %v1514 = vld [vmem:[%s1510 + $0xc] sm:$0xf]
      %v1515 = vld [vmem:[%s1510 + $0x10] sm:$0xf]
      %v1516 = vld [vmem:[%s1510 + $0x14] sm:$0xf]
      %v1517 = vld [vmem:[%s1510 + $0x18] sm:$0xf]
      %v1518 = vld [vmem:[%s1510 + $0x1c] sm:$0xf]
      %v1519 = vld [vmem:[%s1510 + $0x20] sm:$0xf]
      %v1520 = vld [vmem:[%s1510 + $0x24] sm:$0xf]
      %v1521 = vld [vmem:[%s1510 + $0x28] sm:$0xf]
      %v1522 = vld [vmem:[%s1510 + $0x2c] sm:$0xf]
      %v1523 = vld [vmem:[%s1510 + $0x30] sm:$0xf]
      %v1524 = vld [vmem:[%s1510 + $0x34] sm:$0xf]
      %v1525 = vld [vmem:[%s1510 + $0x38] sm:$0xf]
      %v1526 = vld [vmem:[%s1510 + $0x3c] sm:$0xf]
      %v1543 = vunpack.c.l.b16 %v1511
      %v1544 = vunpack.c.l.b16 %v1512
      %v1545 = vunpack.c.l.b16 %v1513
      %v1546 = vunpack.c.l.b16 %v1514
      %v1547 = vunpack.c.l.b16 %v1515
      %v1548 = vunpack.c.l.b16 %v1516
      %v1549 = vunpack.c.l.b16 %v1517
      %v1550 = vunpack.c.l.b16 %v1518
      %v1551 = vunpack.c.l.b16 %v1519
      %v1552 = vunpack.c.l.b16 %v1520
      %v1553 = vunpack.c.l.b16 %v1521
      %v1554 = vunpack.c.l.b16 %v1522
      %v1555 = vunpack.c.l.b16 %v1523
      %v1556 = vunpack.c.l.b16 %v1524
      %v1557 = vunpack.c.l.b16 %v1525
      %v1558 = vunpack.c.l.b16 %v1526
      %v1559 = vpack.c.b16 %v1544, %v1543
      %v1560 = vpack.c.b16 %v1546, %v1545
      %v1561 = vpack.c.b16 %v1548, %v1547
      %v1562 = vpack.c.b16 %v1550, %v1549
      %v1563 = vpack.c.b16 %v1552, %v1551
      %v1564 = vpack.c.b16 %v1554, %v1553
      %v1565 = vpack.c.b16 %v1556, %v1555
      %v1566 = vpack.c.b16 %v1558, %v1557
      %1575 = vmatprep.subr.bf16.mxu0 0
      %1576 = vmatpush1.bf16.msra.mxu0 %v1559
      %1577 = vmatprep.subr.bf16.mxu0 0
      %1578 = vmatpush1.bf16.msra.mxu0 %v1560
      %1579 = vmatprep.subr.bf16.mxu0 0
      %1580 = vmatpush1.bf16.msra.mxu0 %v1561
      %1581 = vmatprep.subr.bf16.mxu0 0
      %1582 = vmatpush1.bf16.msra.mxu0 %v1562
      %1583 = vmatprep.subr.bf16.mxu0 0
      %1584 = vmatpush1.bf16.msra.mxu0 %v1563
      %1585 = vmatprep.subr.bf16.mxu0 0
      %1586 = vmatpush1.bf16.msra.mxu0 %v1564
      %1587 = vmatprep.subr.bf16.mxu0 0
      %1588 = vmatpush1.bf16.msra.mxu0 %v1565
      %1589 = vmatprep.subr.bf16.mxu0 0
      %1590 = vmatpush1.bf16.msra.mxu0 %v1566
      %1591 = vmatprep.subr.bf16.mxu0 0
      %1592 = vmatpush1.bf16.msra.mxu0 0
      %1593 = vmatprep.subr.bf16.mxu0 0
      %1594 = vmatpush1.bf16.msra.mxu0 0
      %1595 = vmatprep.subr.bf16.mxu0 0
      %1596 = vmatpush1.bf16.msra.mxu0 0
      %1597 = vmatprep.subr.bf16.mxu0 0
      %1598 = vmatpush1.bf16.msra.mxu0 0
      %1599 = vmatprep.subr.bf16.mxu0 0
      %1600 = vmatpush1.bf16.msra.mxu0 0
      %1601 = vmatprep.subr.bf16.mxu0 0
      %1602 = vmatpush1.bf16.msra.mxu0 0
      %1603 = vmatprep.subr.bf16.mxu0 0
      %1604 = vmatpush1.bf16.msra.mxu0 0
      %1605 = vmatprep.subr.bf16.mxu0 0
      %1606 = vmatpush1.bf16.msra.mxu0 0
      %1607 = vmatprep.mubr.bf16.mxu0 0
      %1608 = vmatmul.mubr.bf16.gmra.mrb[0].mxu0 %v1494
      %v1609 = vpop.f32.mrb[0].mxu0
      %v1610 = vadd.f32 0.0, %v1609
      %v1611 = vpop.f32.mrb[0].mxu0
      %v1612 = vpop.f32.mrb[0].mxu0
      %v1613 = vadd.f32 0.0, %v1612
      %v1614 = vpop.f32.mrb[0].mxu0
      %1615 = vmatprep.mubr.bf16.mxu0 0
      %1616 = vmatmul.mubr.bf16.gmra.mrb[0].mxu0 %v1495
      %v1617 = vpop.f32.mrb[0].mxu0
      %v1618 = vadd.f32 0.0, %v1617
      %v1619 = vpop.f32.mrb[0].mxu0
      %v1620 = vpop.f32.mrb[0].mxu0
      %v1621 = vadd.f32 0.0, %v1620
      %v1622 = vpop.f32.mrb[0].mxu0
      %1623 = vmatprep.mubr.bf16.mxu0 0
      %1624 = vmatmul.mubr.bf16.gmra.mrb[0].mxu0 %v1496
      %v1625 = vpop.f32.mrb[0].mxu0
      %v1626 = vadd.f32 0.0, %v1625
      %v1627 = vpop.f32.mrb[0].mxu0
      %v1628 = vpop.f32.mrb[0].mxu0
      %v1629 = vadd.f32 0.0, %v1628
      %v1630 = vpop.f32.mrb[0].mxu0
      %1631 = vmatprep.mubr.bf16.mxu0 0
      %1632 = vmatmul.mubr.bf16.gmra.mrb[0].mxu0 %v1497
      %v1633 = vpop.f32.mrb[0].mxu0
      %v1634 = vadd.f32 0.0, %v1633
      %v1635 = vpop.f32.mrb[0].mxu0
      %v1636 = vpop.f32.mrb[0].mxu0
      %v1637 = vadd.f32 0.0, %v1636
      %v1638 = vpop.f32.mrb[0].mxu0
      %1639 = vmatprep.mubr.bf16.mxu0 0
      %1640 = vmatmul.mubr.bf16.gmra.mrb[0].mxu0 %v1498
      %v1641 = vpop.f32.mrb[0].mxu0
      %v1642 = vadd.f32 0.0, %v1641
      %v1643 = vpop.f32.mrb[0].mxu0
      %v1644 = vpop.f32.mrb[0].mxu0
      %v1645 = vadd.f32 0.0, %v1644
      %v1646 = vpop.f32.mrb[0].mxu0
      %1647 = vmatprep.mubr.bf16.mxu0 0
      %1648 = vmatmul.mubr.bf16.gmra.mrb[0].mxu0 %v1499
      %v1649 = vpop.f32.mrb[0].mxu0
      %v1650 = vadd.f32 0.0, %v1649
      %v1651 = vpop.f32.mrb[0].mxu0
      %v1652 = vpop.f32.mrb[0].mxu0
      %v1653 = vadd.f32 0.0, %v1652
      %v1654 = vpop.f32.mrb[0].mxu0
      %1655 = vmatprep.mubr.bf16.mxu0 0
      %1656 = vmatmul.mubr.bf16.gmra.mrb[0].mxu0 %v1500
      %v1657 = vpop.f32.mrb[0].mxu0
      %v1658 = vadd.f32 0.0, %v1657
      %v1659 = vpop.f32.mrb[0].mxu0
      %v1660 = vpop.f32.mrb[0].mxu0
      %v1661 = vadd.f32 0.0, %v1660
      %v1662 = vpop.f32.mrb[0].mxu0
      %1663 = vmatprep.mubr.bf16.mxu0 0
      %1664 = vmatmul.mubr.bf16.gmra.mrb[0].mxu0 %v1501
      %v1665 = vpop.f32.mrb[0].mxu0
      %v1666 = vadd.f32 0.0, %v1665
      %v1667 = vpop.f32.mrb[0].mxu0
      %v1668 = vpop.f32.mrb[0].mxu0
      %v1669 = vadd.f32 0.0, %v1668
      %v1670 = vpop.f32.mrb[0].mxu0
      %1671 = vmatprep.mubr.bf16.mxu0 0
      %1672 = vmatmul.mubr.bf16.gmra.mrb[0].mxu0 %v1502
      %v1673 = vpop.f32.mrb[0].mxu0
      %v1674 = vadd.f32 0.0, %v1673
      %v1675 = vpop.f32.mrb[0].mxu0
      %v1676 = vpop.f32.mrb[0].mxu0
      %v1677 = vadd.f32 0.0, %v1676
      %v1678 = vpop.f32.mrb[0].mxu0
      %1679 = vmatprep.mubr.bf16.mxu0 0
      %1680 = vmatmul.mubr.bf16.gmra.mrb[0].mxu0 %v1503
      %v1681 = vpop.f32.mrb[0].mxu0
      %v1682 = vadd.f32 0.0, %v1681
      %v1683 = vpop.f32.mrb[0].mxu0
      %v1684 = vpop.f32.mrb[0].mxu0
      %v1685 = vadd.f32 0.0, %v1684
      %v1686 = vpop.f32.mrb[0].mxu0
      %1687 = vmatprep.mubr.bf16.mxu0 0
      %1688 = vmatmul.mubr.bf16.gmra.mrb[0].mxu0 %v1504
      %v1689 = vpop.f32.mrb[0].mxu0
      %v1690 = vadd.f32 0.0, %v1689
      %v1691 = vpop.f32.mrb[0].mxu0
      %v1692 = vpop.f32.mrb[0].mxu0
      %v1693 = vadd.f32 0.0, %v1692
      %v1694 = vpop.f32.mrb[0].mxu0
      %1695 = vmatprep.mubr.bf16.mxu0 0
      %1696 = vmatmul.mubr.bf16.gmra.mrb[0].mxu0 %v1505
      %v1697 = vpop.f32.mrb[0].mxu0
      %v1698 = vadd.f32 0.0, %v1697
      %v1699 = vpop.f32.mrb[0].mxu0
      %v1700 = vpop.f32.mrb[0].mxu0
      %v1701 = vadd.f32 0.0, %v1700
      %v1702 = vpop.f32.mrb[0].mxu0
      %1703 = vmatprep.mubr.bf16.mxu0 0
      %1704 = vmatmul.mubr.bf16.gmra.mrb[0].mxu0 %v1506
      %v1705 = vpop.f32.mrb[0].mxu0
      %v1706 = vadd.f32 0.0, %v1705
      %v1707 = vpop.f32.mrb[0].mxu0
      %v1708 = vpop.f32.mrb[0].mxu0
      %v1709 = vadd.f32 0.0, %v1708
      %v1710 = vpop.f32.mrb[0].mxu0
      %1711 = vmatprep.mubr.bf16.mxu0 0
      %1712 = vmatmul.mubr.bf16.gmra.mrb[0].mxu0 %v1507
      %v1713 = vpop.f32.mrb[0].mxu0
      %v1714 = vadd.f32 0.0, %v1713
      %v1715 = vpop.f32.mrb[0].mxu0
      %v1716 = vpop.f32.mrb[0].mxu0
      %v1717 = vadd.f32 0.0, %v1716
      %v1718 = vpop.f32.mrb[0].mxu0
      %1719 = vmatprep.mubr.bf16.mxu0 0
      %1720 = vmatmul.mubr.bf16.gmra.mrb[0].mxu0 %v1508
      %v1721 = vpop.f32.mrb[0].mxu0
      %v1722 = vadd.f32 0.0, %v1721
      %v1723 = vpop.f32.mrb[0].mxu0
      %v1724 = vpop.f32.mrb[0].mxu0
      %v1725 = vadd.f32 0.0, %v1724
      %v1726 = vpop.f32.mrb[0].mxu0
      %1727 = vmatprep.mubr.bf16.mxu0 0
      %1728 = vmatmul.mubr.bf16.gmra.mrb[0].mxu0 %v1509
      %v1729 = vpop.f32.mrb[0].mxu0
      %v1730 = vadd.f32 0.0, %v1729
      %v1731 = vpop.f32.mrb[0].mxu0
      %v1732 = vpop.f32.mrb[0].mxu0
      %v1733 = vadd.f32 0.0, %v1732
      %v1734 = vpop.f32.mrb[0].mxu0
      %1735 = vdwg.mxu0
      %v1736 = vadd.f32 %v1255, %v1610
      %v1737 = vadd.f32 %v1258, %v1613
      %v1738 = vadd.f32 %v1263, %v1618
      %v1739 = vadd.f32 %v1266, %v1621
      %v1740 = vadd.f32 %v1271, %v1626
      %v1741 = vadd.f32 %v1274, %v1629
      %v1742 = vadd.f32 %v1279, %v1634
      %v1743 = vadd.f32 %v1282, %v1637
      %v1744 = vadd.f32 %v1287, %v1642
      %v1745 = vadd.f32 %v1290, %v1645
      %v1746 = vadd.f32 %v1295, %v1650
      %v1747 = vadd.f32 %v1298, %v1653
      %v1748 = vadd.f32 %v1303, %v1658
      %v1749 = vadd.f32 %v1306, %v1661
      %v1750 = vadd.f32 %v1311, %v1666
      %v1751 = vadd.f32 %v1314, %v1669
      %v1752 = vadd.f32 %v1319, %v1674
      %v1753 = vadd.f32 %v1322, %v1677
      %v1754 = vadd.f32 %v1327, %v1682
      %v1755 = vadd.f32 %v1330, %v1685
      %v1756 = vadd.f32 %v1335, %v1690
      %v1757 = vadd.f32 %v1338, %v1693
      %v1758 = vadd.f32 %v1343, %v1698
      %v1759 = vadd.f32 %v1346, %v1701
      %v1760 = vadd.f32 %v1351, %v1706
      %v1761 = vadd.f32 %v1354, %v1709
      %v1762 = vadd.f32 %v1359, %v1714
      %v1763 = vadd.f32 %v1362, %v1717
      %v1764 = vadd.f32 %v1367, %v1722
      %v1765 = vadd.f32 %v1370, %v1725
      %v1766 = vadd.f32 %v1375, %v1730
      %v1767 = vadd.f32 %v1378, %v1733
      %v1768 = vpack.c.bf16 %v668, %v735
      %s1769 = scalar_lea.vmem %s3, 192
      %v1770 = vld [vmem:[%s1769] sm:$0xf]
      %v1771 = vld [vmem:[%s1769 + $0x4] sm:$0xf]
      %v1772 = vld [vmem:[%s1769 + $0x8] sm:$0xf]
      %v1773 = vld [vmem:[%s1769 + $0xc] sm:$0xf]
      %v1774 = vld [vmem:[%s1769 + $0x10] sm:$0xf]
      %v1775 = vld [vmem:[%s1769 + $0x14] sm:$0xf]
      %v1776 = vld [vmem:[%s1769 + $0x18] sm:$0xf]
      %v1777 = vld [vmem:[%s1769 + $0x1c] sm:$0xf]
      %v1778 = vld [vmem:[%s1769 + $0x20] sm:$0xf]
      %v1779 = vld [vmem:[%s1769 + $0x24] sm:$0xf]
      %v1780 = vld [vmem:[%s1769 + $0x28] sm:$0xf]
      %v1781 = vld [vmem:[%s1769 + $0x2c] sm:$0xf]
      %v1782 = vld [vmem:[%s1769 + $0x30] sm:$0xf]
      %v1783 = vld [vmem:[%s1769 + $0x34] sm:$0xf]
      %v1784 = vld [vmem:[%s1769 + $0x38] sm:$0xf]
      %v1785 = vld [vmem:[%s1769 + $0x3c] sm:$0xf]
      %v1802 = vunpack.c.l.b16 %v1770
      %v1803 = vunpack.c.l.b16 %v1771
      %v1804 = vunpack.c.l.b16 %v1772
      %v1805 = vunpack.c.l.b16 %v1773
      %v1806 = vunpack.c.l.b16 %v1774
      %v1807 = vunpack.c.l.b16 %v1775
      %v1808 = vunpack.c.l.b16 %v1776
      %v1809 = vunpack.c.l.b16 %v1777
      %v1810 = vunpack.c.l.b16 %v1778
      %v1811 = vunpack.c.l.b16 %v1779
      %v1812 = vunpack.c.l.b16 %v1780
      %v1813 = vunpack.c.l.b16 %v1781
      %v1814 = vunpack.c.l.b16 %v1782
      %v1815 = vunpack.c.l.b16 %v1783
      %v1816 = vunpack.c.l.b16 %v1784
      %v1817 = vunpack.c.l.b16 %v1785
      %v1818 = vpack.c.b16 %v1803, %v1802
      %v1819 = vpack.c.b16 %v1805, %v1804
      %v1820 = vpack.c.b16 %v1807, %v1806
      %v1821 = vpack.c.b16 %v1809, %v1808
      %v1822 = vpack.c.b16 %v1811, %v1810
      %v1823 = vpack.c.b16 %v1813, %v1812
      %v1824 = vpack.c.b16 %v1815, %v1814
      %v1825 = vpack.c.b16 %v1817, %v1816
      %1834 = vmatprep.subr.bf16.mxu0 0
      %1835 = vmatpush1.bf16.msra.mxu0 %v1818
      %1836 = vmatprep.subr.bf16.mxu0 0
      %1837 = vmatpush1.bf16.msra.mxu0 %v1819
      %1838 = vmatprep.subr.bf16.mxu0 0
      %1839 = vmatpush1.bf16.msra.mxu0 %v1820
      %1840 = vmatprep.subr.bf16.mxu0 0
      %1841 = vmatpush1.bf16.msra.mxu0 %v1821
      %1842 = vmatprep.subr.bf16.mxu0 0
      %1843 = vmatpush1.bf16.msra.mxu0 %v1822
      %1844 = vmatprep.subr.bf16.mxu0 0
      %1845 = vmatpush1.bf16.msra.mxu0 %v1823
      %1846 = vmatprep.subr.bf16.mxu0 0
      %1847 = vmatpush1.bf16.msra.mxu0 %v1824
      %1848 = vmatprep.subr.bf16.mxu0 0
      %1849 = vmatpush1.bf16.msra.mxu0 %v1825
      %1850 = vmatprep.subr.bf16.mxu0 0
      %1851 = vmatpush1.bf16.msra.mxu0 0
      %1852 = vmatprep.subr.bf16.mxu0 0
      %1853 = vmatpush1.bf16.msra.mxu0 0
      %1854 = vmatprep.subr.bf16.mxu0 0
      %1855 = vmatpush1.bf16.msra.mxu0 0
      %1856 = vmatprep.subr.bf16.mxu0 0
      %1857 = vmatpush1.bf16.msra.mxu0 0
      %1858 = vmatprep.subr.bf16.mxu0 0
      %1859 = vmatpush1.bf16.msra.mxu0 0
      %1860 = vmatprep.subr.bf16.mxu0 0
      %1861 = vmatpush1.bf16.msra.mxu0 0
      %1862 = vmatprep.subr.bf16.mxu0 0
      %1863 = vmatpush1.bf16.msra.mxu0 0
      %1864 = vmatprep.subr.bf16.mxu0 0
      %1865 = vmatpush1.bf16.msra.mxu0 0
      %1866 = vmatprep.mubr.bf16.mxu0 0
      %1867 = vmatmul.mubr.bf16.gmra.mrb[0].mxu0 %v754
      %v1868 = vpop.f32.mrb[0].mxu0
      %v1869 = vadd.f32 0.0, %v1868
      %v1870 = vpop.f32.mrb[0].mxu0
      %v1871 = vpop.f32.mrb[0].mxu0
      %v1872 = vadd.f32 0.0, %v1871
      %v1873 = vpop.f32.mrb[0].mxu0
      %1874 = vmatprep.mubr.bf16.mxu0 0
      %1875 = vmatmul.mubr.bf16.gmra.mrb[0].mxu0 %v755
      %v1876 = vpop.f32.mrb[0].mxu0
      %v1877 = vadd.f32 0.0, %v1876
      %v1878 = vpop.f32.mrb[0].mxu0
      %v1879 = vpop.f32.mrb[0].mxu0
      %v1880 = vadd.f32 0.0, %v1879
      %v1881 = vpop.f32.mrb[0].mxu0
      %1882 = vmatprep.mubr.bf16.mxu0 0
      %1883 = vmatmul.mubr.bf16.gmra.mrb[0].mxu0 %v756
      %v1884 = vpop.f32.mrb[0].mxu0
      %v1885 = vadd.f32 0.0, %v1884
      %v1886 = vpop.f32.mrb[0].mxu0
      %v1887 = vpop.f32.mrb[0].mxu0
      %v1888 = vadd.f32 0.0, %v1887
      %v1889 = vpop.f32.mrb[0].mxu0
      %1890 = vmatprep.mubr.bf16.mxu0 0
      %1891 = vmatmul.mubr.bf16.gmra.mrb[0].mxu0 %v757
      %v1892 = vpop.f32.mrb[0].mxu0
      %v1893 = vadd.f32 0.0, %v1892
      %v1894 = vpop.f32.mrb[0].mxu0
      %v1895 = vpop.f32.mrb[0].mxu0
      %v1896 = vadd.f32 0.0, %v1895
      %v1897 = vpop.f32.mrb[0].mxu0
      %1898 = vmatprep.mubr.bf16.mxu0 0
      %1899 = vmatmul.mubr.bf16.gmra.mrb[0].mxu0 %v758
      %v1900 = vpop.f32.mrb[0].mxu0
      %v1901 = vadd.f32 0.0, %v1900
      %v1902 = vpop.f32.mrb[0].mxu0
      %v1903 = vpop.f32.mrb[0].mxu0
      %v1904 = vadd.f32 0.0, %v1903
      %v1905 = vpop.f32.mrb[0].mxu0
      %1906 = vmatprep.mubr.bf16.mxu0 0
      %1907 = vmatmul.mubr.bf16.gmra.mrb[0].mxu0 %v759
      %v1908 = vpop.f32.mrb[0].mxu0
      %v1909 = vadd.f32 0.0, %v1908
      %v1910 = vpop.f32.mrb[0].mxu0
      %v1911 = vpop.f32.mrb[0].mxu0
      %v1912 = vadd.f32 0.0, %v1911
      %v1913 = vpop.f32.mrb[0].mxu0
      %1914 = vmatprep.mubr.bf16.mxu0 0
      %1915 = vmatmul.mubr.bf16.gmra.mrb[0].mxu0 %v760
      %v1916 = vpop.f32.mrb[0].mxu0
      %v1917 = vadd.f32 0.0, %v1916
      %v1918 = vpop.f32.mrb[0].mxu0
      %v1919 = vpop.f32.mrb[0].mxu0
      %v1920 = vadd.f32 0.0, %v1919
      %v1921 = vpop.f32.mrb[0].mxu0
      %1922 = vmatprep.mubr.bf16.mxu0 0
      %1923 = vmatmul.mubr.bf16.gmra.mrb[0].mxu0 %v761
      %v1924 = vpop.f32.mrb[0].mxu0
      %v1925 = vadd.f32 0.0, %v1924
      %v1926 = vpop.f32.mrb[0].mxu0
      %v1927 = vpop.f32.mrb[0].mxu0
      %v1928 = vadd.f32 0.0, %v1927
      %v1929 = vpop.f32.mrb[0].mxu0
      %1930 = vmatprep.mubr.bf16.mxu0 0
      %1931 = vmatmul.mubr.bf16.gmra.mrb[0].mxu0 %v762
      %v1932 = vpop.f32.mrb[0].mxu0
      %v1933 = vadd.f32 0.0, %v1932
      %v1934 = vpop.f32.mrb[0].mxu0
      %v1935 = vpop.f32.mrb[0].mxu0
      %v1936 = vadd.f32 0.0, %v1935
      %v1937 = vpop.f32.mrb[0].mxu0
      %1938 = vmatprep.mubr.bf16.mxu0 0
      %1939 = vmatmul.mubr.bf16.gmra.mrb[0].mxu0 %v763
      %v1940 = vpop.f32.mrb[0].mxu0
      %v1941 = vadd.f32 0.0, %v1940
      %v1942 = vpop.f32.mrb[0].mxu0
      %v1943 = vpop.f32.mrb[0].mxu0
      %v1944 = vadd.f32 0.0, %v1943
      %v1945 = vpop.f32.mrb[0].mxu0
      %1946 = vmatprep.mubr.bf16.mxu0 0
      %1947 = vmatmul.mubr.bf16.gmra.mrb[0].mxu0 %v764
      %v1948 = vpop.f32.mrb[0].mxu0
      %v1949 = vadd.f32 0.0, %v1948
      %v1950 = vpop.f32.mrb[0].mxu0
      %v1951 = vpop.f32.mrb[0].mxu0
      %v1952 = vadd.f32 0.0, %v1951
      %v1953 = vpop.f32.mrb[0].mxu0
      %1954 = vmatprep.mubr.bf16.mxu0 0
      %1955 = vmatmul.mubr.bf16.gmra.mrb[0].mxu0 %v765
      %v1956 = vpop.f32.mrb[0].mxu0
      %v1957 = vadd.f32 0.0, %v1956
      %v1958 = vpop.f32.mrb[0].mxu0
      %v1959 = vpop.f32.mrb[0].mxu0
      %v1960 = vadd.f32 0.0, %v1959
      %v1961 = vpop.f32.mrb[0].mxu0
      %1962 = vmatprep.mubr.bf16.mxu0 0
      %1963 = vmatmul.mubr.bf16.gmra.mrb[0].mxu0 %v766
      %v1964 = vpop.f32.mrb[0].mxu0
      %v1965 = vadd.f32 0.0, %v1964
      %v1966 = vpop.f32.mrb[0].mxu0
      %v1967 = vpop.f32.mrb[0].mxu0
      %v1968 = vadd.f32 0.0, %v1967
      %v1969 = vpop.f32.mrb[0].mxu0
      %1970 = vmatprep.mubr.bf16.mxu0 0
      %1971 = vmatmul.mubr.bf16.gmra.mrb[0].mxu0 %v767
      %v1972 = vpop.f32.mrb[0].mxu0
      %v1973 = vadd.f32 0.0, %v1972
      %v1974 = vpop.f32.mrb[0].mxu0
      %v1975 = vpop.f32.mrb[0].mxu0
      %v1976 = vadd.f32 0.0, %v1975
      %v1977 = vpop.f32.mrb[0].mxu0
      %1978 = vmatprep.mubr.bf16.mxu0 0
      %1979 = vmatmul.mubr.bf16.gmra.mrb[0].mxu0 %v768
      %v1980 = vpop.f32.mrb[0].mxu0
      %v1981 = vadd.f32 0.0, %v1980
      %v1982 = vpop.f32.mrb[0].mxu0
      %v1983 = vpop.f32.mrb[0].mxu0
      %v1984 = vadd.f32 0.0, %v1983
      %v1985 = vpop.f32.mrb[0].mxu0
      %1986 = vmatprep.mubr.bf16.mxu0 0
      %1987 = vmatmul.mubr.bf16.gmra.mrb[0].mxu0 %v1768
      %v1988 = vpop.f32.mrb[0].mxu0
      %v1989 = vadd.f32 0.0, %v1988
      %v1990 = vpop.f32.mrb[0].mxu0
      %v1991 = vpop.f32.mrb[0].mxu0
      %v1992 = vadd.f32 0.0, %v1991
      %v1993 = vpop.f32.mrb[0].mxu0
      %1994 = vdwg.mxu0
      %v1995 = vadd.f32 %v1736, %v1869
      %v1996 = vadd.f32 %v1737, %v1872
      %v1997 = vadd.f32 %v1738, %v1877
      %v1998 = vadd.f32 %v1739, %v1880
      %v1999 = vadd.f32 %v1740, %v1885
      %v2000 = vadd.f32 %v1741, %v1888
      %v2001 = vadd.f32 %v1742, %v1893
      %v2002 = vadd.f32 %v1743, %v1896
      %v2003 = vadd.f32 %v1744, %v1901
      %v2004 = vadd.f32 %v1745, %v1904
      %v2005 = vadd.f32 %v1746, %v1909
      %v2006 = vadd.f32 %v1747, %v1912
      %v2007 = vadd.f32 %v1748, %v1917
      %v2008 = vadd.f32 %v1749, %v1920
      %v2009 = vadd.f32 %v1750, %v1925
      %v2010 = vadd.f32 %v1751, %v1928
      %v2011 = vadd.f32 %v1752, %v1933
      %v2012 = vadd.f32 %v1753, %v1936
      %v2013 = vadd.f32 %v1754, %v1941
      %v2014 = vadd.f32 %v1755, %v1944
      %v2015 = vadd.f32 %v1756, %v1949
      %v2016 = vadd.f32 %v1757, %v1952
      %v2017 = vadd.f32 %v1758, %v1957
      %v2018 = vadd.f32 %v1759, %v1960
      %v2019 = vadd.f32 %v1760, %v1965
      %v2020 = vadd.f32 %v1761, %v1968
      %v2021 = vadd.f32 %v1762, %v1973
      %v2022 = vadd.f32 %v1763, %v1976
      %v2023 = vadd.f32 %v1764, %v1981
      %v2024 = vadd.f32 %v1765, %v1984
      %v2025 = vadd.f32 %v1766, %v1989
      %v2026 = vadd.f32 %v1767, %v1992
      %v2029 = vrot.slane %v735, 1
      %v2030 = vrot.slane %v668, 1
      %v2031 = vsel %vm817, %v2029, %v2030
      %v2032 = vrot.slane %v752, 1
      %v2033 = vsel %vm817, %v2030, %v2032
      %v2036 = vpack.c.bf16 %v2033, %v2031
      %s2037 = scalar_lea.vmem %s3, 256
      %v2038 = vld [vmem:[%s2037] sm:$0xf]
      %v2039 = vld [vmem:[%s2037 + $0x4] sm:$0xf]
      %v2040 = vld [vmem:[%s2037 + $0x8] sm:$0xf]
      %v2041 = vld [vmem:[%s2037 + $0xc] sm:$0xf]
      %v2042 = vld [vmem:[%s2037 + $0x10] sm:$0xf]
      %v2043 = vld [vmem:[%s2037 + $0x14] sm:$0xf]
      %v2044 = vld [vmem:[%s2037 + $0x18] sm:$0xf]
      %v2045 = vld [vmem:[%s2037 + $0x1c] sm:$0xf]
      %v2046 = vld [vmem:[%s2037 + $0x20] sm:$0xf]
      %v2047 = vld [vmem:[%s2037 + $0x24] sm:$0xf]
      %v2048 = vld [vmem:[%s2037 + $0x28] sm:$0xf]
      %v2049 = vld [vmem:[%s2037 + $0x2c] sm:$0xf]
      %v2050 = vld [vmem:[%s2037 + $0x30] sm:$0xf]
      %v2051 = vld [vmem:[%s2037 + $0x34] sm:$0xf]
      %v2052 = vld [vmem:[%s2037 + $0x38] sm:$0xf]
      %v2053 = vld [vmem:[%s2037 + $0x3c] sm:$0xf]
      %v2070 = vunpack.c.l.b16 %v2038
      %v2071 = vunpack.c.l.b16 %v2039
      %v2072 = vunpack.c.l.b16 %v2040
      %v2073 = vunpack.c.l.b16 %v2041
      %v2074 = vunpack.c.l.b16 %v2042
      %v2075 = vunpack.c.l.b16 %v2043
      %v2076 = vunpack.c.l.b16 %v2044
      %v2077 = vunpack.c.l.b16 %v2045
      %v2078 = vunpack.c.l.b16 %v2046
      %v2079 = vunpack.c.l.b16 %v2047
      %v2080 = vunpack.c.l.b16 %v2048
      %v2081 = vunpack.c.l.b16 %v2049
      %v2082 = vunpack.c.l.b16 %v2050
      %v2083 = vunpack.c.l.b16 %v2051
      %v2084 = vunpack.c.l.b16 %v2052
      %v2085 = vunpack.c.l.b16 %v2053
      %v2086 = vpack.c.b16 %v2071, %v2070
      %v2087 = vpack.c.b16 %v2073, %v2072
      %v2088 = vpack.c.b16 %v2075, %v2074
      %v2089 = vpack.c.b16 %v2077, %v2076
      %v2090 = vpack.c.b16 %v2079, %v2078
      %v2091 = vpack.c.b16 %v2081, %v2080
      %v2092 = vpack.c.b16 %v2083, %v2082
      %v2093 = vpack.c.b16 %v2085, %v2084
      %2102 = vmatprep.subr.bf16.mxu0 0
      %2103 = vmatpush1.bf16.msra.mxu0 %v2086
      %2104 = vmatprep.subr.bf16.mxu0 0
      %2105 = vmatpush1.bf16.msra.mxu0 %v2087
      %2106 = vmatprep.subr.bf16.mxu0 0
      %2107 = vmatpush1.bf16.msra.mxu0 %v2088
      %2108 = vmatprep.subr.bf16.mxu0 0
      %2109 = vmatpush1.bf16.msra.mxu0 %v2089
      %2110 = vmatprep.subr.bf16.mxu0 0
      %2111 = vmatpush1.bf16.msra.mxu0 %v2090
      %2112 = vmatprep.subr.bf16.mxu0 0
      %2113 = vmatpush1.bf16.msra.mxu0 %v2091
      %2114 = vmatprep.subr.bf16.mxu0 0
      %2115 = vmatpush1.bf16.msra.mxu0 %v2092
      %2116 = vmatprep.subr.bf16.mxu0 0
      %2117 = vmatpush1.bf16.msra.mxu0 %v2093
      %2118 = vmatprep.subr.bf16.mxu0 0
      %2119 = vmatpush1.bf16.msra.mxu0 0
      %2120 = vmatprep.subr.bf16.mxu0 0
      %2121 = vmatpush1.bf16.msra.mxu0 0
      %2122 = vmatprep.subr.bf16.mxu0 0
      %2123 = vmatpush1.bf16.msra.mxu0 0
      %2124 = vmatprep.subr.bf16.mxu0 0
      %2125 = vmatpush1.bf16.msra.mxu0 0
      %2126 = vmatprep.subr.bf16.mxu0 0
      %2127 = vmatpush1.bf16.msra.mxu0 0
      %2128 = vmatprep.subr.bf16.mxu0 0
      %2129 = vmatpush1.bf16.msra.mxu0 0
      %2130 = vmatprep.subr.bf16.mxu0 0
      %2131 = vmatpush1.bf16.msra.mxu0 0
      %2132 = vmatprep.subr.bf16.mxu0 0
      %2133 = vmatpush1.bf16.msra.mxu0 0
      %2134 = vmatprep.mubr.bf16.mxu0 0
      %2135 = vmatmul.mubr.bf16.gmra.mrb[0].mxu0 %v931
      %v2136 = vpop.f32.mrb[0].mxu0
      %v2137 = vadd.f32 0.0, %v2136
      %v2138 = vpop.f32.mrb[0].mxu0
      %v2139 = vpop.f32.mrb[0].mxu0
      %v2140 = vadd.f32 0.0, %v2139
      %v2141 = vpop.f32.mrb[0].mxu0
      %2142 = vmatprep.mubr.bf16.mxu0 0
      %2143 = vmatmul.mubr.bf16.gmra.mrb[0].mxu0 %v932
      %v2144 = vpop.f32.mrb[0].mxu0
      %v2145 = vadd.f32 0.0, %v2144
      %v2146 = vpop.f32.mrb[0].mxu0
      %v2147 = vpop.f32.mrb[0].mxu0
      %v2148 = vadd.f32 0.0, %v2147
      %v2149 = vpop.f32.mrb[0].mxu0
      %2150 = vmatprep.mubr.bf16.mxu0 0
      %2151 = vmatmul.mubr.bf16.gmra.mrb[0].mxu0 %v933
      %v2152 = vpop.f32.mrb[0].mxu0
      %v2153 = vadd.f32 0.0, %v2152
      %v2154 = vpop.f32.mrb[0].mxu0
      %v2155 = vpop.f32.mrb[0].mxu0
      %v2156 = vadd.f32 0.0, %v2155
      %v2157 = vpop.f32.mrb[0].mxu0
      %2158 = vmatprep.mubr.bf16.mxu0 0
      %2159 = vmatmul.mubr.bf16.gmra.mrb[0].mxu0 %v934
      %v2160 = vpop.f32.mrb[0].mxu0
      %v2161 = vadd.f32 0.0, %v2160
      %v2162 = vpop.f32.mrb[0].mxu0
      %v2163 = vpop.f32.mrb[0].mxu0
      %v2164 = vadd.f32 0.0, %v2163
      %v2165 = vpop.f32.mrb[0].mxu0
      %2166 = vmatprep.mubr.bf16.mxu0 0
      %2167 = vmatmul.mubr.bf16.gmra.mrb[0].mxu0 %v935
      %v2168 = vpop.f32.mrb[0].mxu0
      %v2169 = vadd.f32 0.0, %v2168
      %v2170 = vpop.f32.mrb[0].mxu0
      %v2171 = vpop.f32.mrb[0].mxu0
      %v2172 = vadd.f32 0.0, %v2171
      %v2173 = vpop.f32.mrb[0].mxu0
      %2174 = vmatprep.mubr.bf16.mxu0 0
      %2175 = vmatmul.mubr.bf16.gmra.mrb[0].mxu0 %v936
      %v2176 = vpop.f32.mrb[0].mxu0
      %v2177 = vadd.f32 0.0, %v2176
      %v2178 = vpop.f32.mrb[0].mxu0
      %v2179 = vpop.f32.mrb[0].mxu0
      %v2180 = vadd.f32 0.0, %v2179
      %v2181 = vpop.f32.mrb[0].mxu0
      %2182 = vmatprep.mubr.bf16.mxu0 0
      %2183 = vmatmul.mubr.bf16.gmra.mrb[0].mxu0 %v937
      %v2184 = vpop.f32.mrb[0].mxu0
      %v2185 = vadd.f32 0.0, %v2184
      %v2186 = vpop.f32.mrb[0].mxu0
      %v2187 = vpop.f32.mrb[0].mxu0
      %v2188 = vadd.f32 0.0, %v2187
      %v2189 = vpop.f32.mrb[0].mxu0
      %2190 = vmatprep.mubr.bf16.mxu0 0
      %2191 = vmatmul.mubr.bf16.gmra.mrb[0].mxu0 %v938
      %v2192 = vpop.f32.mrb[0].mxu0
      %v2193 = vadd.f32 0.0, %v2192
      %v2194 = vpop.f32.mrb[0].mxu0
      %v2195 = vpop.f32.mrb[0].mxu0
      %v2196 = vadd.f32 0.0, %v2195
      %v2197 = vpop.f32.mrb[0].mxu0
      %2198 = vmatprep.mubr.bf16.mxu0 0
      %2199 = vmatmul.mubr.bf16.gmra.mrb[0].mxu0 %v939
      %v2200 = vpop.f32.mrb[0].mxu0
      %v2201 = vadd.f32 0.0, %v2200
      %v2202 = vpop.f32.mrb[0].mxu0
      %v2203 = vpop.f32.mrb[0].mxu0
      %v2204 = vadd.f32 0.0, %v2203
      %v2205 = vpop.f32.mrb[0].mxu0
      %2206 = vmatprep.mubr.bf16.mxu0 0
      %2207 = vmatmul.mubr.bf16.gmra.mrb[0].mxu0 %v940
      %v2208 = vpop.f32.mrb[0].mxu0
      %v2209 = vadd.f32 0.0, %v2208
      %v2210 = vpop.f32.mrb[0].mxu0
      %v2211 = vpop.f32.mrb[0].mxu0
      %v2212 = vadd.f32 0.0, %v2211
      %v2213 = vpop.f32.mrb[0].mxu0
      %2214 = vmatprep.mubr.bf16.mxu0 0
      %2215 = vmatmul.mubr.bf16.gmra.mrb[0].mxu0 %v941
      %v2216 = vpop.f32.mrb[0].mxu0
      %v2217 = vadd.f32 0.0, %v2216
      %v2218 = vpop.f32.mrb[0].mxu0
      %v2219 = vpop.f32.mrb[0].mxu0
      %v2220 = vadd.f32 0.0, %v2219
      %v2221 = vpop.f32.mrb[0].mxu0
      %2222 = vmatprep.mubr.bf16.mxu0 0
      %2223 = vmatmul.mubr.bf16.gmra.mrb[0].mxu0 %v942
      %v2224 = vpop.f32.mrb[0].mxu0
      %v2225 = vadd.f32 0.0, %v2224
      %v2226 = vpop.f32.mrb[0].mxu0
      %v2227 = vpop.f32.mrb[0].mxu0
      %v2228 = vadd.f32 0.0, %v2227
      %v2229 = vpop.f32.mrb[0].mxu0
      %2230 = vmatprep.mubr.bf16.mxu0 0
      %2231 = vmatmul.mubr.bf16.gmra.mrb[0].mxu0 %v943
      %v2232 = vpop.f32.mrb[0].mxu0
      %v2233 = vadd.f32 0.0, %v2232
      %v2234 = vpop.f32.mrb[0].mxu0
      %v2235 = vpop.f32.mrb[0].mxu0
      %v2236 = vadd.f32 0.0, %v2235
      %v2237 = vpop.f32.mrb[0].mxu0
      %2238 = vmatprep.mubr.bf16.mxu0 0
      %2239 = vmatmul.mubr.bf16.gmra.mrb[0].mxu0 %v944
      %v2240 = vpop.f32.mrb[0].mxu0
      %v2241 = vadd.f32 0.0, %v2240
      %v2242 = vpop.f32.mrb[0].mxu0
      %v2243 = vpop.f32.mrb[0].mxu0
      %v2244 = vadd.f32 0.0, %v2243
      %v2245 = vpop.f32.mrb[0].mxu0
      %2246 = vmatprep.mubr.bf16.mxu0 0
      %2247 = vmatmul.mubr.bf16.gmra.mrb[0].mxu0 %v945
      %v2248 = vpop.f32.mrb[0].mxu0
      %v2249 = vadd.f32 0.0, %v2248
      %v2250 = vpop.f32.mrb[0].mxu0
      %v2251 = vpop.f32.mrb[0].mxu0
      %v2252 = vadd.f32 0.0, %v2251
      %v2253 = vpop.f32.mrb[0].mxu0
      %2254 = vmatprep.mubr.bf16.mxu0 0
      %2255 = vmatmul.mubr.bf16.gmra.mrb[0].mxu0 %v2036
      %v2256 = vpop.f32.mrb[0].mxu0
      %v2257 = vadd.f32 0.0, %v2256
      %v2258 = vpop.f32.mrb[0].mxu0
      %v2259 = vpop.f32.mrb[0].mxu0
      %v2260 = vadd.f32 0.0, %v2259
      %v2261 = vpop.f32.mrb[0].mxu0
      %2262 = vdwg.mxu0
      %v2263 = vadd.f32 %v1995, %v2137
      %v2264 = vadd.f32 %v1996, %v2140
      %v2265 = vadd.f32 %v1997, %v2145
      %v2266 = vadd.f32 %v1998, %v2148
      %v2267 = vadd.f32 %v1999, %v2153
      %v2268 = vadd.f32 %v2000, %v2156
      %v2269 = vadd.f32 %v2001, %v2161
      %v2270 = vadd.f32 %v2002, %v2164
      %v2271 = vadd.f32 %v2003, %v2169
      %v2272 = vadd.f32 %v2004, %v2172
      %v2273 = vadd.f32 %v2005, %v2177
      %v2274 = vadd.f32 %v2006, %v2180
      %v2275 = vadd.f32 %v2007, %v2185
      %v2276 = vadd.f32 %v2008, %v2188
      %v2277 = vadd.f32 %v2009, %v2193
      %v2278 = vadd.f32 %v2010, %v2196
      %v2279 = vadd.f32 %v2011, %v2201
      %v2280 = vadd.f32 %v2012, %v2204
      %v2281 = vadd.f32 %v2013, %v2209
      %v2282 = vadd.f32 %v2014, %v2212
      %v2283 = vadd.f32 %v2015, %v2217
      %v2284 = vadd.f32 %v2016, %v2220
      %v2285 = vadd.f32 %v2017, %v2225
      %v2286 = vadd.f32 %v2018, %v2228
      %v2287 = vadd.f32 %v2019, %v2233
      %v2288 = vadd.f32 %v2020, %v2236
      %v2289 = vadd.f32 %v2021, %v2241
      %v2290 = vadd.f32 %v2022, %v2244
      %v2291 = vadd.f32 %v2023, %v2249
      %v2292 = vadd.f32 %v2024, %v2252
      %v2293 = vadd.f32 %v2025, %v2257
      %v2294 = vadd.f32 %v2026, %v2260
      %v2295 = vrot.slane %v735, 2
      %v2296 = vrot.slane %v668, 2
      %v2297 = vsel %vm1381, %v2295, %v2296
      %v2298 = vrot.slane %v752, 2
      %v2299 = vsel %vm1381, %v2296, %v2298
      %v2302 = vpack.c.bf16 %v2299, %v2297
      %s2303 = scalar_lea.vmem %s3, 320
      %v2304 = vld [vmem:[%s2303] sm:$0xf]
      %v2305 = vld [vmem:[%s2303 + $0x4] sm:$0xf]
      %v2306 = vld [vmem:[%s2303 + $0x8] sm:$0xf]
      %v2307 = vld [vmem:[%s2303 + $0xc] sm:$0xf]
      %v2308 = vld [vmem:[%s2303 + $0x10] sm:$0xf]
      %v2309 = vld [vmem:[%s2303 + $0x14] sm:$0xf]
      %v2310 = vld [vmem:[%s2303 + $0x18] sm:$0xf]
      %v2311 = vld [vmem:[%s2303 + $0x1c] sm:$0xf]
      %v2312 = vld [vmem:[%s2303 + $0x20] sm:$0xf]
      %v2313 = vld [vmem:[%s2303 + $0x24] sm:$0xf]
      %v2314 = vld [vmem:[%s2303 + $0x28] sm:$0xf]
      %v2315 = vld [vmem:[%s2303 + $0x2c] sm:$0xf]
      %v2316 = vld [vmem:[%s2303 + $0x30] sm:$0xf]
      %v2317 = vld [vmem:[%s2303 + $0x34] sm:$0xf]
      %v2318 = vld [vmem:[%s2303 + $0x38] sm:$0xf]
      %v2319 = vld [vmem:[%s2303 + $0x3c] sm:$0xf]
      %v2336 = vunpack.c.l.b16 %v2304
      %v2337 = vunpack.c.l.b16 %v2305
      %v2338 = vunpack.c.l.b16 %v2306
      %v2339 = vunpack.c.l.b16 %v2307
      %v2340 = vunpack.c.l.b16 %v2308
      %v2341 = vunpack.c.l.b16 %v2309
      %v2342 = vunpack.c.l.b16 %v2310
      %v2343 = vunpack.c.l.b16 %v2311
      %v2344 = vunpack.c.l.b16 %v2312
      %v2345 = vunpack.c.l.b16 %v2313
      %v2346 = vunpack.c.l.b16 %v2314
      %v2347 = vunpack.c.l.b16 %v2315
      %v2348 = vunpack.c.l.b16 %v2316
      %v2349 = vunpack.c.l.b16 %v2317
      %v2350 = vunpack.c.l.b16 %v2318
      %v2351 = vunpack.c.l.b16 %v2319
      %v2352 = vpack.c.b16 %v2337, %v2336
      %v2353 = vpack.c.b16 %v2339, %v2338
      %v2354 = vpack.c.b16 %v2341, %v2340
      %v2355 = vpack.c.b16 %v2343, %v2342
      %v2356 = vpack.c.b16 %v2345, %v2344
      %v2357 = vpack.c.b16 %v2347, %v2346
      %v2358 = vpack.c.b16 %v2349, %v2348
      %v2359 = vpack.c.b16 %v2351, %v2350
      %2368 = vmatprep.subr.bf16.mxu0 0
      %2369 = vmatpush1.bf16.msra.mxu0 %v2352
      %2370 = vmatprep.subr.bf16.mxu0 0
      %2371 = vmatpush1.bf16.msra.mxu0 %v2353
      %2372 = vmatprep.subr.bf16.mxu0 0
      %2373 = vmatpush1.bf16.msra.mxu0 %v2354
      %2374 = vmatprep.subr.bf16.mxu0 0
      %2375 = vmatpush1.bf16.msra.mxu0 %v2355
      %2376 = vmatprep.subr.bf16.mxu0 0
      %2377 = vmatpush1.bf16.msra.mxu0 %v2356
      %2378 = vmatprep.subr.bf16.mxu0 0
      %2379 = vmatpush1.bf16.msra.mxu0 %v2357
      %2380 = vmatprep.subr.bf16.mxu0 0
      %2381 = vmatpush1.bf16.msra.mxu0 %v2358
      %2382 = vmatprep.subr.bf16.mxu0 0
      %2383 = vmatpush1.bf16.msra.mxu0 %v2359
      %2384 = vmatprep.subr.bf16.mxu0 0
      %2385 = vmatpush1.bf16.msra.mxu0 0
      %2386 = vmatprep.subr.bf16.mxu0 0
      %2387 = vmatpush1.bf16.msra.mxu0 0
      %2388 = vmatprep.subr.bf16.mxu0 0
      %2389 = vmatpush1.bf16.msra.mxu0 0
      %2390 = vmatprep.subr.bf16.mxu0 0
      %2391 = vmatpush1.bf16.msra.mxu0 0
      %2392 = vmatprep.subr.bf16.mxu0 0
      %2393 = vmatpush1.bf16.msra.mxu0 0
      %2394 = vmatprep.subr.bf16.mxu0 0
      %2395 = vmatpush1.bf16.msra.mxu0 0
      %2396 = vmatprep.subr.bf16.mxu0 0
      %2397 = vmatpush1.bf16.msra.mxu0 0
      %2398 = vmatprep.subr.bf16.mxu0 0
      %2399 = vmatpush1.bf16.msra.mxu0 0
      %2400 = vmatprep.mubr.bf16.mxu0 0
      %2401 = vmatmul.mubr.bf16.gmra.mrb[0].mxu0 %v1495
      %v2402 = vpop.f32.mrb[0].mxu0
      %v2403 = vadd.f32 0.0, %v2402
      %v2404 = vpop.f32.mrb[0].mxu0
      %v2405 = vpop.f32.mrb[0].mxu0
      %v2406 = vadd.f32 0.0, %v2405
      %v2407 = vpop.f32.mrb[0].mxu0
      %2408 = vmatprep.mubr.bf16.mxu0 0
      %2409 = vmatmul.mubr.bf16.gmra.mrb[0].mxu0 %v1496
      %v2410 = vpop.f32.mrb[0].mxu0
      %v2411 = vadd.f32 0.0, %v2410
      %v2412 = vpop.f32.mrb[0].mxu0
      %v2413 = vpop.f32.mrb[0].mxu0
      %v2414 = vadd.f32 0.0, %v2413
      %v2415 = vpop.f32.mrb[0].mxu0
      %2416 = vmatprep.mubr.bf16.mxu0 0
      %2417 = vmatmul.mubr.bf16.gmra.mrb[0].mxu0 %v1497
      %v2418 = vpop.f32.mrb[0].mxu0
      %v2419 = vadd.f32 0.0, %v2418
      %v2420 = vpop.f32.mrb[0].mxu0
      %v2421 = vpop.f32.mrb[0].mxu0
      %v2422 = vadd.f32 0.0, %v2421
      %v2423 = vpop.f32.mrb[0].mxu0
      %2424 = vmatprep.mubr.bf16.mxu0 0
      %2425 = vmatmul.mubr.bf16.gmra.mrb[0].mxu0 %v1498
      %v2426 = vpop.f32.mrb[0].mxu0
      %v2427 = vadd.f32 0.0, %v2426
      %v2428 = vpop.f32.mrb[0].mxu0
      %v2429 = vpop.f32.mrb[0].mxu0
      %v2430 = vadd.f32 0.0, %v2429
      %v2431 = vpop.f32.mrb[0].mxu0
      %2432 = vmatprep.mubr.bf16.mxu0 0
      %2433 = vmatmul.mubr.bf16.gmra.mrb[0].mxu0 %v1499
      %v2434 = vpop.f32.mrb[0].mxu0
      %v2435 = vadd.f32 0.0, %v2434
      %v2436 = vpop.f32.mrb[0].mxu0
      %v2437 = vpop.f32.mrb[0].mxu0
      %v2438 = vadd.f32 0.0, %v2437
      %v2439 = vpop.f32.mrb[0].mxu0
      %2440 = vmatprep.mubr.bf16.mxu0 0
      %2441 = vmatmul.mubr.bf16.gmra.mrb[0].mxu0 %v1500
      %v2442 = vpop.f32.mrb[0].mxu0
      %v2443 = vadd.f32 0.0, %v2442
      %v2444 = vpop.f32.mrb[0].mxu0
      %v2445 = vpop.f32.mrb[0].mxu0
      %v2446 = vadd.f32 0.0, %v2445
      %v2447 = vpop.f32.mrb[0].mxu0
      %2448 = vmatprep.mubr.bf16.mxu0 0
      %2449 = vmatmul.mubr.bf16.gmra.mrb[0].mxu0 %v1501
      %v2450 = vpop.f32.mrb[0].mxu0
      %v2451 = vadd.f32 0.0, %v2450
      %v2452 = vpop.f32.mrb[0].mxu0
      %v2453 = vpop.f32.mrb[0].mxu0
      %v2454 = vadd.f32 0.0, %v2453
      %v2455 = vpop.f32.mrb[0].mxu0
      %2456 = vmatprep.mubr.bf16.mxu0 0
      %2457 = vmatmul.mubr.bf16.gmra.mrb[0].mxu0 %v1502
      %v2458 = vpop.f32.mrb[0].mxu0
      %v2459 = vadd.f32 0.0, %v2458
      %v2460 = vpop.f32.mrb[0].mxu0
      %v2461 = vpop.f32.mrb[0].mxu0
      %v2462 = vadd.f32 0.0, %v2461
      %v2463 = vpop.f32.mrb[0].mxu0
      %2464 = vmatprep.mubr.bf16.mxu0 0
      %2465 = vmatmul.mubr.bf16.gmra.mrb[0].mxu0 %v1503
      %v2466 = vpop.f32.mrb[0].mxu0
      %v2467 = vadd.f32 0.0, %v2466
      %v2468 = vpop.f32.mrb[0].mxu0
      %v2469 = vpop.f32.mrb[0].mxu0
      %v2470 = vadd.f32 0.0, %v2469
      %v2471 = vpop.f32.mrb[0].mxu0
      %2472 = vmatprep.mubr.bf16.mxu0 0
      %2473 = vmatmul.mubr.bf16.gmra.mrb[0].mxu0 %v1504
      %v2474 = vpop.f32.mrb[0].mxu0
      %v2475 = vadd.f32 0.0, %v2474
      %v2476 = vpop.f32.mrb[0].mxu0
      %v2477 = vpop.f32.mrb[0].mxu0
      %v2478 = vadd.f32 0.0, %v2477
      %v2479 = vpop.f32.mrb[0].mxu0
      %2480 = vmatprep.mubr.bf16.mxu0 0
      %2481 = vmatmul.mubr.bf16.gmra.mrb[0].mxu0 %v1505
      %v2482 = vpop.f32.mrb[0].mxu0
      %v2483 = vadd.f32 0.0, %v2482
      %v2484 = vpop.f32.mrb[0].mxu0
      %v2485 = vpop.f32.mrb[0].mxu0
      %v2486 = vadd.f32 0.0, %v2485
      %v2487 = vpop.f32.mrb[0].mxu0
      %2488 = vmatprep.mubr.bf16.mxu0 0
      %2489 = vmatmul.mubr.bf16.gmra.mrb[0].mxu0 %v1506
      %v2490 = vpop.f32.mrb[0].mxu0
      %v2491 = vadd.f32 0.0, %v2490
      %v2492 = vpop.f32.mrb[0].mxu0
      %v2493 = vpop.f32.mrb[0].mxu0
      %v2494 = vadd.f32 0.0, %v2493
      %v2495 = vpop.f32.mrb[0].mxu0
      %2496 = vmatprep.mubr.bf16.mxu0 0
      %2497 = vmatmul.mubr.bf16.gmra.mrb[0].mxu0 %v1507
      %v2498 = vpop.f32.mrb[0].mxu0
      %v2499 = vadd.f32 0.0, %v2498
      %v2500 = vpop.f32.mrb[0].mxu0
      %v2501 = vpop.f32.mrb[0].mxu0
      %v2502 = vadd.f32 0.0, %v2501
      %v2503 = vpop.f32.mrb[0].mxu0
      %2504 = vmatprep.mubr.bf16.mxu0 0
      %2505 = vmatmul.mubr.bf16.gmra.mrb[0].mxu0 %v1508
      %v2506 = vpop.f32.mrb[0].mxu0
      %v2507 = vadd.f32 0.0, %v2506
      %v2508 = vpop.f32.mrb[0].mxu0
      %v2509 = vpop.f32.mrb[0].mxu0
      %v2510 = vadd.f32 0.0, %v2509
      %v2511 = vpop.f32.mrb[0].mxu0
      %2512 = vmatprep.mubr.bf16.mxu0 0
      %2513 = vmatmul.mubr.bf16.gmra.mrb[0].mxu0 %v1509
      %v2514 = vpop.f32.mrb[0].mxu0
      %v2515 = vadd.f32 0.0, %v2514
      %v2516 = vpop.f32.mrb[0].mxu0
      %v2517 = vpop.f32.mrb[0].mxu0
      %v2518 = vadd.f32 0.0, %v2517
      %v2519 = vpop.f32.mrb[0].mxu0
      %2520 = vmatprep.mubr.bf16.mxu0 0
      %2521 = vmatmul.mubr.bf16.gmra.mrb[0].mxu0 %v2302
      %v2522 = vpop.f32.mrb[0].mxu0
      %v2523 = vadd.f32 0.0, %v2522
      %v2524 = vpop.f32.mrb[0].mxu0
      %v2525 = vpop.f32.mrb[0].mxu0
      %v2526 = vadd.f32 0.0, %v2525
      %v2527 = vpop.f32.mrb[0].mxu0
      %2528 = vdwg.mxu0
      %v2529 = vadd.f32 %v2263, %v2403
      %v2530 = vadd.f32 %v2264, %v2406
      %v2531 = vadd.f32 %v2265, %v2411
      %v2532 = vadd.f32 %v2266, %v2414
      %v2533 = vadd.f32 %v2267, %v2419
      %v2534 = vadd.f32 %v2268, %v2422
      %v2535 = vadd.f32 %v2269, %v2427
      %v2536 = vadd.f32 %v2270, %v2430
      %v2537 = vadd.f32 %v2271, %v2435
      %v2538 = vadd.f32 %v2272, %v2438
      %v2539 = vadd.f32 %v2273, %v2443
      %v2540 = vadd.f32 %v2274, %v2446
      %v2541 = vadd.f32 %v2275, %v2451
      %v2542 = vadd.f32 %v2276, %v2454
      %v2543 = vadd.f32 %v2277, %v2459
      %v2544 = vadd.f32 %v2278, %v2462
      %v2545 = vadd.f32 %v2279, %v2467
      %v2546 = vadd.f32 %v2280, %v2470
      %v2547 = vadd.f32 %v2281, %v2475
      %v2548 = vadd.f32 %v2282, %v2478
      %v2549 = vadd.f32 %v2283, %v2483
      %v2550 = vadd.f32 %v2284, %v2486
      %v2551 = vadd.f32 %v2285, %v2491
      %v2552 = vadd.f32 %v2286, %v2494
      %v2553 = vadd.f32 %v2287, %v2499
      %v2554 = vadd.f32 %v2288, %v2502
      %v2555 = vadd.f32 %v2289, %v2507
      %v2556 = vadd.f32 %v2290, %v2510
      %v2557 = vadd.f32 %v2291, %v2515
      %v2558 = vadd.f32 %v2292, %v2518
      %v2559 = vadd.f32 %v2293, %v2523
      %v2560 = vadd.f32 %v2294, %v2526
      %s2561 = scalar_lea.vmem %s3, 384
      %v2562 = vld [vmem:[%s2561] sm:$0xf]
      %v2563 = vld [vmem:[%s2561 + $0x4] sm:$0xf]
      %v2564 = vld [vmem:[%s2561 + $0x8] sm:$0xf]
      %v2565 = vld [vmem:[%s2561 + $0xc] sm:$0xf]
      %v2566 = vld [vmem:[%s2561 + $0x10] sm:$0xf]
      %v2567 = vld [vmem:[%s2561 + $0x14] sm:$0xf]
      %v2568 = vld [vmem:[%s2561 + $0x18] sm:$0xf]
      %v2569 = vld [vmem:[%s2561 + $0x1c] sm:$0xf]
      %v2570 = vld [vmem:[%s2561 + $0x20] sm:$0xf]
      %v2571 = vld [vmem:[%s2561 + $0x24] sm:$0xf]
      %v2572 = vld [vmem:[%s2561 + $0x28] sm:$0xf]
      %v2573 = vld [vmem:[%s2561 + $0x2c] sm:$0xf]
      %v2574 = vld [vmem:[%s2561 + $0x30] sm:$0xf]
      %v2575 = vld [vmem:[%s2561 + $0x34] sm:$0xf]
      %v2576 = vld [vmem:[%s2561 + $0x38] sm:$0xf]
      %v2577 = vld [vmem:[%s2561 + $0x3c] sm:$0xf]
      %v2594 = vunpack.c.l.b16 %v2562
      %v2595 = vunpack.c.l.b16 %v2563
      %v2596 = vunpack.c.l.b16 %v2564
      %v2597 = vunpack.c.l.b16 %v2565
      %v2598 = vunpack.c.l.b16 %v2566
      %v2599 = vunpack.c.l.b16 %v2567
      %v2600 = vunpack.c.l.b16 %v2568
      %v2601 = vunpack.c.l.b16 %v2569
      %v2602 = vunpack.c.l.b16 %v2570
      %v2603 = vunpack.c.l.b16 %v2571
      %v2604 = vunpack.c.l.b16 %v2572
      %v2605 = vunpack.c.l.b16 %v2573
      %v2606 = vunpack.c.l.b16 %v2574
      %v2607 = vunpack.c.l.b16 %v2575
      %v2608 = vunpack.c.l.b16 %v2576
      %v2609 = vunpack.c.l.b16 %v2577
      %v2610 = vpack.c.b16 %v2595, %v2594
      %v2611 = vpack.c.b16 %v2597, %v2596
      %v2612 = vpack.c.b16 %v2599, %v2598
      %v2613 = vpack.c.b16 %v2601, %v2600
      %v2614 = vpack.c.b16 %v2603, %v2602
      %v2615 = vpack.c.b16 %v2605, %v2604
      %v2616 = vpack.c.b16 %v2607, %v2606
      %v2617 = vpack.c.b16 %v2609, %v2608
      %2626 = vmatprep.subr.bf16.mxu0 0
      %2627 = vmatpush1.bf16.msra.mxu0 %v2610
      %2628 = vmatprep.subr.bf16.mxu0 0
      %2629 = vmatpush1.bf16.msra.mxu0 %v2611
      %2630 = vmatprep.subr.bf16.mxu0 0
      %2631 = vmatpush1.bf16.msra.mxu0 %v2612
      %2632 = vmatprep.subr.bf16.mxu0 0
      %2633 = vmatpush1.bf16.msra.mxu0 %v2613
      %2634 = vmatprep.subr.bf16.mxu0 0
      %2635 = vmatpush1.bf16.msra.mxu0 %v2614
      %2636 = vmatprep.subr.bf16.mxu0 0
      %2637 = vmatpush1.bf16.msra.mxu0 %v2615
      %2638 = vmatprep.subr.bf16.mxu0 0
      %2639 = vmatpush1.bf16.msra.mxu0 %v2616
      %2640 = vmatprep.subr.bf16.mxu0 0
      %2641 = vmatpush1.bf16.msra.mxu0 %v2617
      %2642 = vmatprep.subr.bf16.mxu0 0
      %2643 = vmatpush1.bf16.msra.mxu0 0
      %2644 = vmatprep.subr.bf16.mxu0 0
      %2645 = vmatpush1.bf16.msra.mxu0 0
      %2646 = vmatprep.subr.bf16.mxu0 0
      %2647 = vmatpush1.bf16.msra.mxu0 0
      %2648 = vmatprep.subr.bf16.mxu0 0
      %2649 = vmatpush1.bf16.msra.mxu0 0
      %2650 = vmatprep.subr.bf16.mxu0 0
      %2651 = vmatpush1.bf16.msra.mxu0 0
      %2652 = vmatprep.subr.bf16.mxu0 0
      %2653 = vmatpush1.bf16.msra.mxu0 0
      %2654 = vmatprep.subr.bf16.mxu0 0
      %2655 = vmatpush1.bf16.msra.mxu0 0
      %2656 = vmatprep.subr.bf16.mxu0 0
      %2657 = vmatpush1.bf16.msra.mxu0 0
      %2658 = vmatprep.mubr.bf16.mxu0 0
      %2659 = vmatmul.mubr.bf16.gmra.mrb[0].mxu0 %v755
      %v2660 = vpop.f32.mrb[0].mxu0
      %v2661 = vadd.f32 0.0, %v2660
      %v2662 = vpop.f32.mrb[0].mxu0
      %v2663 = vpop.f32.mrb[0].mxu0
      %v2664 = vadd.f32 0.0, %v2663
      %v2665 = vpop.f32.mrb[0].mxu0
      %2666 = vmatprep.mubr.bf16.mxu0 0
      %2667 = vmatmul.mubr.bf16.gmra.mrb[0].mxu0 %v756
      %v2668 = vpop.f32.mrb[0].mxu0
      %v2669 = vadd.f32 0.0, %v2668
      %v2670 = vpop.f32.mrb[0].mxu0
      %v2671 = vpop.f32.mrb[0].mxu0
      %v2672 = vadd.f32 0.0, %v2671
      %v2673 = vpop.f32.mrb[0].mxu0
      %2674 = vmatprep.mubr.bf16.mxu0 0
      %2675 = vmatmul.mubr.bf16.gmra.mrb[0].mxu0 %v757
      %v2676 = vpop.f32.mrb[0].mxu0
      %v2677 = vadd.f32 0.0, %v2676
      %v2678 = vpop.f32.mrb[0].mxu0
      %v2679 = vpop.f32.mrb[0].mxu0
      %v2680 = vadd.f32 0.0, %v2679
      %v2681 = vpop.f32.mrb[0].mxu0
      %2682 = vmatprep.mubr.bf16.mxu0 0
      %2683 = vmatmul.mubr.bf16.gmra.mrb[0].mxu0 %v758
      %v2684 = vpop.f32.mrb[0].mxu0
      %v2685 = vadd.f32 0.0, %v2684
      %v2686 = vpop.f32.mrb[0].mxu0
      %v2687 = vpop.f32.mrb[0].mxu0
      %v2688 = vadd.f32 0.0, %v2687
      %v2689 = vpop.f32.mrb[0].mxu0
      %2690 = vmatprep.mubr.bf16.mxu0 0
      %2691 = vmatmul.mubr.bf16.gmra.mrb[0].mxu0 %v759
      %v2692 = vpop.f32.mrb[0].mxu0
      %v2693 = vadd.f32 0.0, %v2692
      %v2694 = vpop.f32.mrb[0].mxu0
      %v2695 = vpop.f32.mrb[0].mxu0
      %v2696 = vadd.f32 0.0, %v2695
      %v2697 = vpop.f32.mrb[0].mxu0
      %2698 = vmatprep.mubr.bf16.mxu0 0
      %2699 = vmatmul.mubr.bf16.gmra.mrb[0].mxu0 %v760
      %v2700 = vpop.f32.mrb[0].mxu0
      %v2701 = vadd.f32 0.0, %v2700
      %v2702 = vpop.f32.mrb[0].mxu0
      %v2703 = vpop.f32.mrb[0].mxu0
      %v2704 = vadd.f32 0.0, %v2703
      %v2705 = vpop.f32.mrb[0].mxu0
      %2706 = vmatprep.mubr.bf16.mxu0 0
      %2707 = vmatmul.mubr.bf16.gmra.mrb[0].mxu0 %v761
      %v2708 = vpop.f32.mrb[0].mxu0
      %v2709 = vadd.f32 0.0, %v2708
      %v2710 = vpop.f32.mrb[0].mxu0
      %v2711 = vpop.f32.mrb[0].mxu0
      %v2712 = vadd.f32 0.0, %v2711
      %v2713 = vpop.f32.mrb[0].mxu0
      %2714 = vmatprep.mubr.bf16.mxu0 0
      %2715 = vmatmul.mubr.bf16.gmra.mrb[0].mxu0 %v762
      %v2716 = vpop.f32.mrb[0].mxu0
      %v2717 = vadd.f32 0.0, %v2716
      %v2718 = vpop.f32.mrb[0].mxu0
      %v2719 = vpop.f32.mrb[0].mxu0
      %v2720 = vadd.f32 0.0, %v2719
      %v2721 = vpop.f32.mrb[0].mxu0
      %2722 = vmatprep.mubr.bf16.mxu0 0
      %2723 = vmatmul.mubr.bf16.gmra.mrb[0].mxu0 %v763
      %v2724 = vpop.f32.mrb[0].mxu0
      %v2725 = vadd.f32 0.0, %v2724
      %v2726 = vpop.f32.mrb[0].mxu0
      %v2727 = vpop.f32.mrb[0].mxu0
      %v2728 = vadd.f32 0.0, %v2727
      %v2729 = vpop.f32.mrb[0].mxu0
      %2730 = vmatprep.mubr.bf16.mxu0 0
      %2731 = vmatmul.mubr.bf16.gmra.mrb[0].mxu0 %v764
      %v2732 = vpop.f32.mrb[0].mxu0
      %v2733 = vadd.f32 0.0, %v2732
      %v2734 = vpop.f32.mrb[0].mxu0
      %v2735 = vpop.f32.mrb[0].mxu0
      %v2736 = vadd.f32 0.0, %v2735
      %v2737 = vpop.f32.mrb[0].mxu0
      %2738 = vmatprep.mubr.bf16.mxu0 0
      %2739 = vmatmul.mubr.bf16.gmra.mrb[0].mxu0 %v765
      %v2740 = vpop.f32.mrb[0].mxu0
      %v2741 = vadd.f32 0.0, %v2740
      %v2742 = vpop.f32.mrb[0].mxu0
      %v2743 = vpop.f32.mrb[0].mxu0
      %v2744 = vadd.f32 0.0, %v2743
      %v2745 = vpop.f32.mrb[0].mxu0
      %2746 = vmatprep.mubr.bf16.mxu0 0
      %2747 = vmatmul.mubr.bf16.gmra.mrb[0].mxu0 %v766
      %v2748 = vpop.f32.mrb[0].mxu0
      %v2749 = vadd.f32 0.0, %v2748
      %v2750 = vpop.f32.mrb[0].mxu0
      %v2751 = vpop.f32.mrb[0].mxu0
      %v2752 = vadd.f32 0.0, %v2751
      %v2753 = vpop.f32.mrb[0].mxu0
      %2754 = vmatprep.mubr.bf16.mxu0 0
      %2755 = vmatmul.mubr.bf16.gmra.mrb[0].mxu0 %v767
      %v2756 = vpop.f32.mrb[0].mxu0
      %v2757 = vadd.f32 0.0, %v2756
      %v2758 = vpop.f32.mrb[0].mxu0
      %v2759 = vpop.f32.mrb[0].mxu0
      %v2760 = vadd.f32 0.0, %v2759
      %v2761 = vpop.f32.mrb[0].mxu0
      %2762 = vmatprep.mubr.bf16.mxu0 0
      %2763 = vmatmul.mubr.bf16.gmra.mrb[0].mxu0 %v768
      %v2764 = vpop.f32.mrb[0].mxu0
      %v2765 = vadd.f32 0.0, %v2764
      %v2766 = vpop.f32.mrb[0].mxu0
      %v2767 = vpop.f32.mrb[0].mxu0
      %v2768 = vadd.f32 0.0, %v2767
      %v2769 = vpop.f32.mrb[0].mxu0
      %2770 = vmatprep.mubr.bf16.mxu0 0
      %2771 = vmatmul.mubr.bf16.gmra.mrb[0].mxu0 %v1768
      %v2772 = vpop.f32.mrb[0].mxu0
      %v2773 = vadd.f32 0.0, %v2772
      %v2774 = vpop.f32.mrb[0].mxu0
      %v2775 = vpop.f32.mrb[0].mxu0
      %v2776 = vadd.f32 0.0, %v2775
      %v2777 = vpop.f32.mrb[0].mxu0
      %2778 = vmatprep.mubr.bf16.mxu0 0
      %2779 = vmatmul.mubr.bf16.gmra.mrb[0].mxu0 %v753
      %v2780 = vpop.f32.mrb[0].mxu0
      %v2781 = vadd.f32 0.0, %v2780
      %v2782 = vpop.f32.mrb[0].mxu0
      %v2783 = vpop.f32.mrb[0].mxu0
      %v2784 = vadd.f32 0.0, %v2783
      %v2785 = vpop.f32.mrb[0].mxu0
      %2786 = vdwg.mxu0
      %v2787 = vadd.f32 %v2529, %v2661
      %v2788 = vadd.f32 %v2530, %v2664
      %v2789 = vadd.f32 %v2531, %v2669
      %v2790 = vadd.f32 %v2532, %v2672
      %v2791 = vadd.f32 %v2533, %v2677
      %v2792 = vadd.f32 %v2534, %v2680
      %v2793 = vadd.f32 %v2535, %v2685
      %v2794 = vadd.f32 %v2536, %v2688
      %v2795 = vadd.f32 %v2537, %v2693
      %v2796 = vadd.f32 %v2538, %v2696
      %v2797 = vadd.f32 %v2539, %v2701
      %v2798 = vadd.f32 %v2540, %v2704
      %v2799 = vadd.f32 %v2541, %v2709
      %v2800 = vadd.f32 %v2542, %v2712
      %v2801 = vadd.f32 %v2543, %v2717
      %v2802 = vadd.f32 %v2544, %v2720
      %v2803 = vadd.f32 %v2545, %v2725
      %v2804 = vadd.f32 %v2546, %v2728
      %v2805 = vadd.f32 %v2547, %v2733
      %v2806 = vadd.f32 %v2548, %v2736
      %v2807 = vadd.f32 %v2549, %v2741
      %v2808 = vadd.f32 %v2550, %v2744
      %v2809 = vadd.f32 %v2551, %v2749
      %v2810 = vadd.f32 %v2552, %v2752
      %v2811 = vadd.f32 %v2553, %v2757
      %v2812 = vadd.f32 %v2554, %v2760
      %v2813 = vadd.f32 %v2555, %v2765
      %v2814 = vadd.f32 %v2556, %v2768
      %v2815 = vadd.f32 %v2557, %v2773
      %v2816 = vadd.f32 %v2558, %v2776
      %v2817 = vadd.f32 %v2559, %v2781
      %v2818 = vadd.f32 %v2560, %v2784
      %s2819 = scalar_lea.vmem %s3, 448
      %v2820 = vld [vmem:[%s2819] sm:$0xf]
      %v2821 = vld [vmem:[%s2819 + $0x4] sm:$0xf]
      %v2822 = vld [vmem:[%s2819 + $0x8] sm:$0xf]
      %v2823 = vld [vmem:[%s2819 + $0xc] sm:$0xf]
      %v2824 = vld [vmem:[%s2819 + $0x10] sm:$0xf]
      %v2825 = vld [vmem:[%s2819 + $0x14] sm:$0xf]
      %v2826 = vld [vmem:[%s2819 + $0x18] sm:$0xf]
      %v2827 = vld [vmem:[%s2819 + $0x1c] sm:$0xf]
      %v2828 = vld [vmem:[%s2819 + $0x20] sm:$0xf]
      %v2829 = vld [vmem:[%s2819 + $0x24] sm:$0xf]
      %v2830 = vld [vmem:[%s2819 + $0x28] sm:$0xf]
      %v2831 = vld [vmem:[%s2819 + $0x2c] sm:$0xf]
      %v2832 = vld [vmem:[%s2819 + $0x30] sm:$0xf]
      %v2833 = vld [vmem:[%s2819 + $0x34] sm:$0xf]
      %v2834 = vld [vmem:[%s2819 + $0x38] sm:$0xf]
      %v2835 = vld [vmem:[%s2819 + $0x3c] sm:$0xf]
      %v2852 = vunpack.c.l.b16 %v2820
      %v2853 = vunpack.c.l.b16 %v2821
      %v2854 = vunpack.c.l.b16 %v2822
      %v2855 = vunpack.c.l.b16 %v2823
      %v2856 = vunpack.c.l.b16 %v2824
      %v2857 = vunpack.c.l.b16 %v2825
      %v2858 = vunpack.c.l.b16 %v2826
      %v2859 = vunpack.c.l.b16 %v2827
      %v2860 = vunpack.c.l.b16 %v2828
      %v2861 = vunpack.c.l.b16 %v2829
      %v2862 = vunpack.c.l.b16 %v2830
      %v2863 = vunpack.c.l.b16 %v2831
      %v2864 = vunpack.c.l.b16 %v2832
      %v2865 = vunpack.c.l.b16 %v2833
      %v2866 = vunpack.c.l.b16 %v2834
      %v2867 = vunpack.c.l.b16 %v2835
      %v2868 = vpack.c.b16 %v2853, %v2852
      %v2869 = vpack.c.b16 %v2855, %v2854
      %v2870 = vpack.c.b16 %v2857, %v2856
      %v2871 = vpack.c.b16 %v2859, %v2858
      %v2872 = vpack.c.b16 %v2861, %v2860
      %v2873 = vpack.c.b16 %v2863, %v2862
      %v2874 = vpack.c.b16 %v2865, %v2864
      %v2875 = vpack.c.b16 %v2867, %v2866
      %2884 = vmatprep.subr.bf16.mxu0 0
      %2885 = vmatpush1.bf16.msra.mxu0 %v2868
      %2886 = vmatprep.subr.bf16.mxu0 0
      %2887 = vmatpush1.bf16.msra.mxu0 %v2869
      %2888 = vmatprep.subr.bf16.mxu0 0
      %2889 = vmatpush1.bf16.msra.mxu0 %v2870
      %2890 = vmatprep.subr.bf16.mxu0 0
      %2891 = vmatpush1.bf16.msra.mxu0 %v2871
      %2892 = vmatprep.subr.bf16.mxu0 0
      %2893 = vmatpush1.bf16.msra.mxu0 %v2872
      %2894 = vmatprep.subr.bf16.mxu0 0
      %2895 = vmatpush1.bf16.msra.mxu0 %v2873
      %2896 = vmatprep.subr.bf16.mxu0 0
      %2897 = vmatpush1.bf16.msra.mxu0 %v2874
      %2898 = vmatprep.subr.bf16.mxu0 0
      %2899 = vmatpush1.bf16.msra.mxu0 %v2875
      %2900 = vmatprep.subr.bf16.mxu0 0
      %2901 = vmatpush1.bf16.msra.mxu0 0
      %2902 = vmatprep.subr.bf16.mxu0 0
      %2903 = vmatpush1.bf16.msra.mxu0 0
      %2904 = vmatprep.subr.bf16.mxu0 0
      %2905 = vmatpush1.bf16.msra.mxu0 0
      %2906 = vmatprep.subr.bf16.mxu0 0
      %2907 = vmatpush1.bf16.msra.mxu0 0
      %2908 = vmatprep.subr.bf16.mxu0 0
      %2909 = vmatpush1.bf16.msra.mxu0 0
      %2910 = vmatprep.subr.bf16.mxu0 0
      %2911 = vmatpush1.bf16.msra.mxu0 0
      %2912 = vmatprep.subr.bf16.mxu0 0
      %2913 = vmatpush1.bf16.msra.mxu0 0
      %2914 = vmatprep.subr.bf16.mxu0 0
      %2915 = vmatpush1.bf16.msra.mxu0 0
      %2916 = vmatprep.mubr.bf16.mxu0 0
      %2917 = vmatmul.mubr.bf16.gmra.mrb[0].mxu0 %v932
      %v2918 = vpop.f32.mrb[0].mxu0
      %v2919 = vadd.f32 0.0, %v2918
      %v2920 = vpop.f32.mrb[0].mxu0
      %v2921 = vpop.f32.mrb[0].mxu0
      %v2922 = vadd.f32 0.0, %v2921
      %v2923 = vpop.f32.mrb[0].mxu0
      %2924 = vmatprep.mubr.bf16.mxu0 0
      %2925 = vmatmul.mubr.bf16.gmra.mrb[0].mxu0 %v933
      %v2926 = vpop.f32.mrb[0].mxu0
      %v2927 = vadd.f32 0.0, %v2926
      %v2928 = vpop.f32.mrb[0].mxu0
      %v2929 = vpop.f32.mrb[0].mxu0
      %v2930 = vadd.f32 0.0, %v2929
      %v2931 = vpop.f32.mrb[0].mxu0
      %2932 = vmatprep.mubr.bf16.mxu0 0
      %2933 = vmatmul.mubr.bf16.gmra.mrb[0].mxu0 %v934
      %v2934 = vpop.f32.mrb[0].mxu0
      %v2935 = vadd.f32 0.0, %v2934
      %v2936 = vpop.f32.mrb[0].mxu0
      %v2937 = vpop.f32.mrb[0].mxu0
      %v2938 = vadd.f32 0.0, %v2937
      %v2939 = vpop.f32.mrb[0].mxu0
      %2940 = vmatprep.mubr.bf16.mxu0 0
      %2941 = vmatmul.mubr.bf16.gmra.mrb[0].mxu0 %v935
      %v2942 = vpop.f32.mrb[0].mxu0
      %v2943 = vadd.f32 0.0, %v2942
      %v2944 = vpop.f32.mrb[0].mxu0
      %v2945 = vpop.f32.mrb[0].mxu0
      %v2946 = vadd.f32 0.0, %v2945
      %v2947 = vpop.f32.mrb[0].mxu0
      %2948 = vmatprep.mubr.bf16.mxu0 0
      %2949 = vmatmul.mubr.bf16.gmra.mrb[0].mxu0 %v936
      %v2950 = vpop.f32.mrb[0].mxu0
      %v2951 = vadd.f32 0.0, %v2950
      %v2952 = vpop.f32.mrb[0].mxu0
      %v2953 = vpop.f32.mrb[0].mxu0
      %v2954 = vadd.f32 0.0, %v2953
      %v2955 = vpop.f32.mrb[0].mxu0
      %2956 = vmatprep.mubr.bf16.mxu0 0
      %2957 = vmatmul.mubr.bf16.gmra.mrb[0].mxu0 %v937
      %v2958 = vpop.f32.mrb[0].mxu0
      %v2959 = vadd.f32 0.0, %v2958
      %v2960 = vpop.f32.mrb[0].mxu0
      %v2961 = vpop.f32.mrb[0].mxu0
      %v2962 = vadd.f32 0.0, %v2961
      %v2963 = vpop.f32.mrb[0].mxu0
      %2964 = vmatprep.mubr.bf16.mxu0 0
      %2965 = vmatmul.mubr.bf16.gmra.mrb[0].mxu0 %v938
      %v2966 = vpop.f32.mrb[0].mxu0
      %v2967 = vadd.f32 0.0, %v2966
      %v2968 = vpop.f32.mrb[0].mxu0
      %v2969 = vpop.f32.mrb[0].mxu0
      %v2970 = vadd.f32 0.0, %v2969
      %v2971 = vpop.f32.mrb[0].mxu0
      %2972 = vmatprep.mubr.bf16.mxu0 0
      %2973 = vmatmul.mubr.bf16.gmra.mrb[0].mxu0 %v939
      %v2974 = vpop.f32.mrb[0].mxu0
      %v2975 = vadd.f32 0.0, %v2974
      %v2976 = vpop.f32.mrb[0].mxu0
      %v2977 = vpop.f32.mrb[0].mxu0
      %v2978 = vadd.f32 0.0, %v2977
      %v2979 = vpop.f32.mrb[0].mxu0
      %2980 = vmatprep.mubr.bf16.mxu0 0
      %2981 = vmatmul.mubr.bf16.gmra.mrb[0].mxu0 %v940
      %v2982 = vpop.f32.mrb[0].mxu0
      %v2983 = vadd.f32 0.0, %v2982
      %v2984 = vpop.f32.mrb[0].mxu0
      %v2985 = vpop.f32.mrb[0].mxu0
      %v2986 = vadd.f32 0.0, %v2985
      %v2987 = vpop.f32.mrb[0].mxu0
      %2988 = vmatprep.mubr.bf16.mxu0 0
      %2989 = vmatmul.mubr.bf16.gmra.mrb[0].mxu0 %v941
      %v2990 = vpop.f32.mrb[0].mxu0
      %v2991 = vadd.f32 0.0, %v2990
      %v2992 = vpop.f32.mrb[0].mxu0
      %v2993 = vpop.f32.mrb[0].mxu0
      %v2994 = vadd.f32 0.0, %v2993
      %v2995 = vpop.f32.mrb[0].mxu0
      %2996 = vmatprep.mubr.bf16.mxu0 0
      %2997 = vmatmul.mubr.bf16.gmra.mrb[0].mxu0 %v942
      %v2998 = vpop.f32.mrb[0].mxu0
      %v2999 = vadd.f32 0.0, %v2998
      %v3000 = vpop.f32.mrb[0].mxu0
      %v3001 = vpop.f32.mrb[0].mxu0
      %v3002 = vadd.f32 0.0, %v3001
      %v3003 = vpop.f32.mrb[0].mxu0
      %3004 = vmatprep.mubr.bf16.mxu0 0
      %3005 = vmatmul.mubr.bf16.gmra.mrb[0].mxu0 %v943
      %v3006 = vpop.f32.mrb[0].mxu0
      %v3007 = vadd.f32 0.0, %v3006
      %v3008 = vpop.f32.mrb[0].mxu0
      %v3009 = vpop.f32.mrb[0].mxu0
      %v3010 = vadd.f32 0.0, %v3009
      %v3011 = vpop.f32.mrb[0].mxu0
      %3012 = vmatprep.mubr.bf16.mxu0 0
      %3013 = vmatmul.mubr.bf16.gmra.mrb[0].mxu0 %v944
      %v3014 = vpop.f32.mrb[0].mxu0
      %v3015 = vadd.f32 0.0, %v3014
      %v3016 = vpop.f32.mrb[0].mxu0
      %v3017 = vpop.f32.mrb[0].mxu0
      %v3018 = vadd.f32 0.0, %v3017
      %v3019 = vpop.f32.mrb[0].mxu0
      %3020 = vmatprep.mubr.bf16.mxu0 0
      %3021 = vmatmul.mubr.bf16.gmra.mrb[0].mxu0 %v945
      %v3022 = vpop.f32.mrb[0].mxu0
      %v3023 = vadd.f32 0.0, %v3022
      %v3024 = vpop.f32.mrb[0].mxu0
      %v3025 = vpop.f32.mrb[0].mxu0
      %v3026 = vadd.f32 0.0, %v3025
      %v3027 = vpop.f32.mrb[0].mxu0
      %3028 = vmatprep.mubr.bf16.mxu0 0
      %3029 = vmatmul.mubr.bf16.gmra.mrb[0].mxu0 %v2036
      %v3030 = vpop.f32.mrb[0].mxu0
      %v3031 = vadd.f32 0.0, %v3030
      %v3032 = vpop.f32.mrb[0].mxu0
      %v3033 = vpop.f32.mrb[0].mxu0
      %v3034 = vadd.f32 0.0, %v3033
      %v3035 = vpop.f32.mrb[0].mxu0
      %3036 = vmatprep.mubr.bf16.mxu0 0
      %3037 = vmatmul.mubr.bf16.gmra.mrb[0].mxu0 %v930
      %v3038 = vpop.f32.mrb[0].mxu0
      %v3039 = vadd.f32 0.0, %v3038
      %v3040 = vpop.f32.mrb[0].mxu0
      %v3041 = vpop.f32.mrb[0].mxu0
      %v3042 = vadd.f32 0.0, %v3041
      %v3043 = vpop.f32.mrb[0].mxu0
      %3044 = vdwg.mxu0
      %v3045 = vadd.f32 %v2787, %v2919
      %v3046 = vadd.f32 %v2788, %v2922
      %v3047 = vadd.f32 %v2789, %v2927
      %v3048 = vadd.f32 %v2790, %v2930
      %v3049 = vadd.f32 %v2791, %v2935
      %v3050 = vadd.f32 %v2792, %v2938
      %v3051 = vadd.f32 %v2793, %v2943
      %v3052 = vadd.f32 %v2794, %v2946
      %v3053 = vadd.f32 %v2795, %v2951
      %v3054 = vadd.f32 %v2796, %v2954
      %v3055 = vadd.f32 %v2797, %v2959
      %v3056 = vadd.f32 %v2798, %v2962
      %v3057 = vadd.f32 %v2799, %v2967
      %v3058 = vadd.f32 %v2800, %v2970
      %v3059 = vadd.f32 %v2801, %v2975
      %v3060 = vadd.f32 %v2802, %v2978
      %v3061 = vadd.f32 %v2803, %v2983
      %v3062 = vadd.f32 %v2804, %v2986
      %v3063 = vadd.f32 %v2805, %v2991
      %v3064 = vadd.f32 %v2806, %v2994
      %v3065 = vadd.f32 %v2807, %v2999
      %v3066 = vadd.f32 %v2808, %v3002
      %v3067 = vadd.f32 %v2809, %v3007
      %v3068 = vadd.f32 %v2810, %v3010
      %v3069 = vadd.f32 %v2811, %v3015
      %v3070 = vadd.f32 %v2812, %v3018
      %v3071 = vadd.f32 %v2813, %v3023
      %v3072 = vadd.f32 %v2814, %v3026
      %v3073 = vadd.f32 %v2815, %v3031
      %v3074 = vadd.f32 %v2816, %v3034
      %v3075 = vadd.f32 %v2817, %v3039
      %v3076 = vadd.f32 %v2818, %v3042
      %s3077 = scalar_lea.vmem %s3, 512
      %v3078 = vld [vmem:[%s3077] sm:$0xf]
      %v3079 = vld [vmem:[%s3077 + $0x4] sm:$0xf]
      %v3080 = vld [vmem:[%s3077 + $0x8] sm:$0xf]
      %v3081 = vld [vmem:[%s3077 + $0xc] sm:$0xf]
      %v3082 = vld [vmem:[%s3077 + $0x10] sm:$0xf]
      %v3083 = vld [vmem:[%s3077 + $0x14] sm:$0xf]
      %v3084 = vld [vmem:[%s3077 + $0x18] sm:$0xf]
      %v3085 = vld [vmem:[%s3077 + $0x1c] sm:$0xf]
      %v3086 = vld [vmem:[%s3077 + $0x20] sm:$0xf]
      %v3087 = vld [vmem:[%s3077 + $0x24] sm:$0xf]
      %v3088 = vld [vmem:[%s3077 + $0x28] sm:$0xf]
      %v3089 = vld [vmem:[%s3077 + $0x2c] sm:$0xf]
      %v3090 = vld [vmem:[%s3077 + $0x30] sm:$0xf]
      %v3091 = vld [vmem:[%s3077 + $0x34] sm:$0xf]
      %v3092 = vld [vmem:[%s3077 + $0x38] sm:$0xf]
      %v3093 = vld [vmem:[%s3077 + $0x3c] sm:$0xf]
      %v3110 = vunpack.c.l.b16 %v3078
      %v3111 = vunpack.c.l.b16 %v3079
      %v3112 = vunpack.c.l.b16 %v3080
      %v3113 = vunpack.c.l.b16 %v3081
      %v3114 = vunpack.c.l.b16 %v3082
      %v3115 = vunpack.c.l.b16 %v3083
      %v3116 = vunpack.c.l.b16 %v3084
      %v3117 = vunpack.c.l.b16 %v3085
      %v3118 = vunpack.c.l.b16 %v3086
      %v3119 = vunpack.c.l.b16 %v3087
      %v3120 = vunpack.c.l.b16 %v3088
      %v3121 = vunpack.c.l.b16 %v3089
      %v3122 = vunpack.c.l.b16 %v3090
      %v3123 = vunpack.c.l.b16 %v3091
      %v3124 = vunpack.c.l.b16 %v3092
      %v3125 = vunpack.c.l.b16 %v3093
      %v3126 = vpack.c.b16 %v3111, %v3110
      %v3127 = vpack.c.b16 %v3113, %v3112
      %v3128 = vpack.c.b16 %v3115, %v3114
      %v3129 = vpack.c.b16 %v3117, %v3116
      %v3130 = vpack.c.b16 %v3119, %v3118
      %v3131 = vpack.c.b16 %v3121, %v3120
      %v3132 = vpack.c.b16 %v3123, %v3122
      %v3133 = vpack.c.b16 %v3125, %v3124
      %3142 = vmatprep.subr.bf16.mxu0 0
      %3143 = vmatpush1.bf16.msra.mxu0 %v3126
      %3144 = vmatprep.subr.bf16.mxu0 0
      %3145 = vmatpush1.bf16.msra.mxu0 %v3127
      %3146 = vmatprep.subr.bf16.mxu0 0
      %3147 = vmatpush1.bf16.msra.mxu0 %v3128
      %3148 = vmatprep.subr.bf16.mxu0 0
      %3149 = vmatpush1.bf16.msra.mxu0 %v3129
      %3150 = vmatprep.subr.bf16.mxu0 0
      %3151 = vmatpush1.bf16.msra.mxu0 %v3130
      %3152 = vmatprep.subr.bf16.mxu0 0
      %3153 = vmatpush1.bf16.msra.mxu0 %v3131
      %3154 = vmatprep.subr.bf16.mxu0 0
      %3155 = vmatpush1.bf16.msra.mxu0 %v3132
      %3156 = vmatprep.subr.bf16.mxu0 0
      %3157 = vmatpush1.bf16.msra.mxu0 %v3133
      %3158 = vmatprep.subr.bf16.mxu0 0
      %3159 = vmatpush1.bf16.msra.mxu0 0
      %3160 = vmatprep.subr.bf16.mxu0 0
      %3161 = vmatpush1.bf16.msra.mxu0 0
      %3162 = vmatprep.subr.bf16.mxu0 0
      %3163 = vmatpush1.bf16.msra.mxu0 0
      %3164 = vmatprep.subr.bf16.mxu0 0
      %3165 = vmatpush1.bf16.msra.mxu0 0
      %3166 = vmatprep.subr.bf16.mxu0 0
      %3167 = vmatpush1.bf16.msra.mxu0 0
      %3168 = vmatprep.subr.bf16.mxu0 0
      %3169 = vmatpush1.bf16.msra.mxu0 0
      %3170 = vmatprep.subr.bf16.mxu0 0
      %3171 = vmatpush1.bf16.msra.mxu0 0
      %3172 = vmatprep.subr.bf16.mxu0 0
      %3173 = vmatpush1.bf16.msra.mxu0 0
      %3174 = vmatprep.mubr.bf16.mxu0 0
      %3175 = vmatmul.mubr.bf16.gmra.mrb[0].mxu0 %v1496
      %v3176 = vpop.f32.mrb[0].mxu0
      %v3177 = vadd.f32 0.0, %v3176
      %v3178 = vpop.f32.mrb[0].mxu0
      %v3179 = vpop.f32.mrb[0].mxu0
      %v3180 = vadd.f32 0.0, %v3179
      %v3181 = vpop.f32.mrb[0].mxu0
      %3182 = vmatprep.mubr.bf16.mxu0 0
      %3183 = vmatmul.mubr.bf16.gmra.mrb[0].mxu0 %v1497
      %v3184 = vpop.f32.mrb[0].mxu0
      %v3185 = vadd.f32 0.0, %v3184
      %v3186 = vpop.f32.mrb[0].mxu0
      %v3187 = vpop.f32.mrb[0].mxu0
      %v3188 = vadd.f32 0.0, %v3187
      %v3189 = vpop.f32.mrb[0].mxu0
      %3190 = vmatprep.mubr.bf16.mxu0 0
      %3191 = vmatmul.mubr.bf16.gmra.mrb[0].mxu0 %v1498
      %v3192 = vpop.f32.mrb[0].mxu0
      %v3193 = vadd.f32 0.0, %v3192
      %v3194 = vpop.f32.mrb[0].mxu0
      %v3195 = vpop.f32.mrb[0].mxu0
      %v3196 = vadd.f32 0.0, %v3195
      %v3197 = vpop.f32.mrb[0].mxu0
      %3198 = vmatprep.mubr.bf16.mxu0 0
      %3199 = vmatmul.mubr.bf16.gmra.mrb[0].mxu0 %v1499
      %v3200 = vpop.f32.mrb[0].mxu0
      %v3201 = vadd.f32 0.0, %v3200
      %v3202 = vpop.f32.mrb[0].mxu0
      %v3203 = vpop.f32.mrb[0].mxu0
      %v3204 = vadd.f32 0.0, %v3203
      %v3205 = vpop.f32.mrb[0].mxu0
      %3206 = vmatprep.mubr.bf16.mxu0 0
      %3207 = vmatmul.mubr.bf16.gmra.mrb[0].mxu0 %v1500
      %v3208 = vpop.f32.mrb[0].mxu0
      %v3209 = vadd.f32 0.0, %v3208
      %v3210 = vpop.f32.mrb[0].mxu0
      %v3211 = vpop.f32.mrb[0].mxu0
      %v3212 = vadd.f32 0.0, %v3211
      %v3213 = vpop.f32.mrb[0].mxu0
      %3214 = vmatprep.mubr.bf16.mxu0 0
      %3215 = vmatmul.mubr.bf16.gmra.mrb[0].mxu0 %v1501
      %v3216 = vpop.f32.mrb[0].mxu0
      %v3217 = vadd.f32 0.0, %v3216
      %v3218 = vpop.f32.mrb[0].mxu0
      %v3219 = vpop.f32.mrb[0].mxu0
      %v3220 = vadd.f32 0.0, %v3219
      %v3221 = vpop.f32.mrb[0].mxu0
      %3222 = vmatprep.mubr.bf16.mxu0 0
      %3223 = vmatmul.mubr.bf16.gmra.mrb[0].mxu0 %v1502
      %v3224 = vpop.f32.mrb[0].mxu0
      %v3225 = vadd.f32 0.0, %v3224
      %v3226 = vpop.f32.mrb[0].mxu0
      %v3227 = vpop.f32.mrb[0].mxu0
      %v3228 = vadd.f32 0.0, %v3227
      %v3229 = vpop.f32.mrb[0].mxu0
      %3230 = vmatprep.mubr.bf16.mxu0 0
      %3231 = vmatmul.mubr.bf16.gmra.mrb[0].mxu0 %v1503
      %v3232 = vpop.f32.mrb[0].mxu0
      %v3233 = vadd.f32 0.0, %v3232
      %v3234 = vpop.f32.mrb[0].mxu0
      %v3235 = vpop.f32.mrb[0].mxu0
      %v3236 = vadd.f32 0.0, %v3235
      %v3237 = vpop.f32.mrb[0].mxu0
      %3238 = vmatprep.mubr.bf16.mxu0 0
      %3239 = vmatmul.mubr.bf16.gmra.mrb[0].mxu0 %v1504
      %v3240 = vpop.f32.mrb[0].mxu0
      %v3241 = vadd.f32 0.0, %v3240
      %v3242 = vpop.f32.mrb[0].mxu0
      %v3243 = vpop.f32.mrb[0].mxu0
      %v3244 = vadd.f32 0.0, %v3243
      %v3245 = vpop.f32.mrb[0].mxu0
      %3246 = vmatprep.mubr.bf16.mxu0 0
      %3247 = vmatmul.mubr.bf16.gmra.mrb[0].mxu0 %v1505
      %v3248 = vpop.f32.mrb[0].mxu0
      %v3249 = vadd.f32 0.0, %v3248
      %v3250 = vpop.f32.mrb[0].mxu0
      %v3251 = vpop.f32.mrb[0].mxu0
      %v3252 = vadd.f32 0.0, %v3251
      %v3253 = vpop.f32.mrb[0].mxu0
      %3254 = vmatprep.mubr.bf16.mxu0 0
      %3255 = vmatmul.mubr.bf16.gmra.mrb[0].mxu0 %v1506
      %v3256 = vpop.f32.mrb[0].mxu0
      %v3257 = vadd.f32 0.0, %v3256
      %v3258 = vpop.f32.mrb[0].mxu0
      %v3259 = vpop.f32.mrb[0].mxu0
      %v3260 = vadd.f32 0.0, %v3259
      %v3261 = vpop.f32.mrb[0].mxu0
      %3262 = vmatprep.mubr.bf16.mxu0 0
      %3263 = vmatmul.mubr.bf16.gmra.mrb[0].mxu0 %v1507
      %v3264 = vpop.f32.mrb[0].mxu0
      %v3265 = vadd.f32 0.0, %v3264
      %v3266 = vpop.f32.mrb[0].mxu0
      %v3267 = vpop.f32.mrb[0].mxu0
      %v3268 = vadd.f32 0.0, %v3267
      %v3269 = vpop.f32.mrb[0].mxu0
      %3270 = vmatprep.mubr.bf16.mxu0 0
      %3271 = vmatmul.mubr.bf16.gmra.mrb[0].mxu0 %v1508
      %v3272 = vpop.f32.mrb[0].mxu0
      %v3273 = vadd.f32 0.0, %v3272
      %v3274 = vpop.f32.mrb[0].mxu0
      %v3275 = vpop.f32.mrb[0].mxu0
      %v3276 = vadd.f32 0.0, %v3275
      %v3277 = vpop.f32.mrb[0].mxu0
      %3278 = vmatprep.mubr.bf16.mxu0 0
      %3279 = vmatmul.mubr.bf16.gmra.mrb[0].mxu0 %v1509
      %v3280 = vpop.f32.mrb[0].mxu0
      %v3281 = vadd.f32 0.0, %v3280
      %v3282 = vpop.f32.mrb[0].mxu0
      %v3283 = vpop.f32.mrb[0].mxu0
      %v3284 = vadd.f32 0.0, %v3283
      %v3285 = vpop.f32.mrb[0].mxu0
      %3286 = vmatprep.mubr.bf16.mxu0 0
      %3287 = vmatmul.mubr.bf16.gmra.mrb[0].mxu0 %v2302
      %v3288 = vpop.f32.mrb[0].mxu0
      %v3289 = vadd.f32 0.0, %v3288
      %v3290 = vpop.f32.mrb[0].mxu0
      %v3291 = vpop.f32.mrb[0].mxu0
      %v3292 = vadd.f32 0.0, %v3291
      %v3293 = vpop.f32.mrb[0].mxu0
      %3294 = vmatprep.mubr.bf16.mxu0 0
      %3295 = vmatmul.mubr.bf16.gmra.mrb[0].mxu0 %v1494
      %v3296 = vpop.f32.mrb[0].mxu0
      %v3297 = vadd.f32 0.0, %v3296
      %v3298 = vpop.f32.mrb[0].mxu0
      %v3299 = vpop.f32.mrb[0].mxu0
      %v3300 = vadd.f32 0.0, %v3299
      %v3301 = vpop.f32.mrb[0].mxu0
      %3302 = vdwg.mxu0
      %v3303 = vadd.f32 %v3045, %v3177
      %v3304 = vadd.f32 %v3046, %v3180
      %v3305 = vadd.f32 %v3047, %v3185
      %v3306 = vadd.f32 %v3048, %v3188
      %v3307 = vadd.f32 %v3049, %v3193
      %v3308 = vadd.f32 %v3050, %v3196
      %v3309 = vadd.f32 %v3051, %v3201
      %v3310 = vadd.f32 %v3052, %v3204
      %v3311 = vadd.f32 %v3053, %v3209
      %v3312 = vadd.f32 %v3054, %v3212
      %v3313 = vadd.f32 %v3055, %v3217
      %v3314 = vadd.f32 %v3056, %v3220
      %v3315 = vadd.f32 %v3057, %v3225
      %v3316 = vadd.f32 %v3058, %v3228
      %v3317 = vadd.f32 %v3059, %v3233
      %v3318 = vadd.f32 %v3060, %v3236
      %v3319 = vadd.f32 %v3061, %v3241
      %v3320 = vadd.f32 %v3062, %v3244
      %v3321 = vadd.f32 %v3063, %v3249
      %v3322 = vadd.f32 %v3064, %v3252
      %v3323 = vadd.f32 %v3065, %v3257
      %v3324 = vadd.f32 %v3066, %v3260
      %v3325 = vadd.f32 %v3067, %v3265
      %v3326 = vadd.f32 %v3068, %v3268
      %v3327 = vadd.f32 %v3069, %v3273
      %v3328 = vadd.f32 %v3070, %v3276
      %v3329 = vadd.f32 %v3071, %v3281
      %v3330 = vadd.f32 %v3072, %v3284
      %v3331 = vadd.f32 %v3073, %v3289
      %v3332 = vadd.f32 %v3074, %v3292
      %v3333 = vadd.f32 %v3075, %v3297
      %v3334 = vadd.f32 %v3076, %v3300
      %v3335 = vld [vmem:[%s4] sm:$0x1]
      %v3337 = vlaneseq
      %v3338 = vshrl.u32 %v3337, 7
      %v3339 = vsub.s32 0, %v3338
      %v3340 = vrot.slane %v3335, %v3339
      %v3342 = vadd.f32 %v3303, %v3340
      %v3343 = vadd.f32 %v3304, %v3340
      %v3344 = vadd.f32 %v3305, %v3340
      %v3345 = vadd.f32 %v3306, %v3340
      %v3346 = vadd.f32 %v3307, %v3340
      %v3347 = vadd.f32 %v3308, %v3340
      %v3348 = vadd.f32 %v3309, %v3340
      %v3349 = vadd.f32 %v3310, %v3340
      %v3350 = vadd.f32 %v3311, %v3340
      %v3351 = vadd.f32 %v3312, %v3340
      %v3352 = vadd.f32 %v3313, %v3340
      %v3353 = vadd.f32 %v3314, %v3340
      %v3354 = vadd.f32 %v3315, %v3340
      %v3355 = vadd.f32 %v3316, %v3340
      %v3356 = vadd.f32 %v3317, %v3340
      %v3357 = vadd.f32 %v3318, %v3340
      %v3358 = vadd.f32 %v3319, %v3340
      %v3359 = vadd.f32 %v3320, %v3340
      %v3360 = vadd.f32 %v3321, %v3340
      %v3361 = vadd.f32 %v3322, %v3340
      %v3362 = vadd.f32 %v3323, %v3340
      %v3363 = vadd.f32 %v3324, %v3340
      %v3364 = vadd.f32 %v3325, %v3340
      %v3365 = vadd.f32 %v3326, %v3340
      %v3366 = vadd.f32 %v3327, %v3340
      %v3367 = vadd.f32 %v3328, %v3340
      %v3368 = vadd.f32 %v3329, %v3340
      %v3369 = vadd.f32 %v3330, %v3340
      %v3370 = vadd.f32 %v3331, %v3340
      %v3371 = vadd.f32 %v3332, %v3340
      %v3372 = vadd.f32 %v3333, %v3340
      %v3373 = vadd.f32 %v3334, %v3340
      %v3374 = vmax.f32 %v3342, 0.0
      %v3375 = vmax.f32 %v3343, 0.0
      %v3376 = vmax.f32 %v3344, 0.0
      %v3377 = vmax.f32 %v3345, 0.0
      %v3378 = vmax.f32 %v3346, 0.0
      %v3379 = vmax.f32 %v3347, 0.0
      %v3380 = vmax.f32 %v3348, 0.0
      %v3381 = vmax.f32 %v3349, 0.0
      %v3382 = vmax.f32 %v3350, 0.0
      %v3383 = vmax.f32 %v3351, 0.0
      %v3384 = vmax.f32 %v3352, 0.0
      %v3385 = vmax.f32 %v3353, 0.0
      %v3386 = vmax.f32 %v3354, 0.0
      %v3387 = vmax.f32 %v3355, 0.0
      %v3388 = vmax.f32 %v3356, 0.0
      %v3389 = vmax.f32 %v3357, 0.0
      %v3390 = vmax.f32 %v3358, 0.0
      %v3391 = vmax.f32 %v3359, 0.0
      %v3392 = vmax.f32 %v3360, 0.0
      %v3393 = vmax.f32 %v3361, 0.0
      %v3394 = vmax.f32 %v3362, 0.0
      %v3395 = vmax.f32 %v3363, 0.0
      %v3396 = vmax.f32 %v3364, 0.0
      %v3397 = vmax.f32 %v3365, 0.0
      %v3398 = vmax.f32 %v3366, 0.0
      %v3399 = vmax.f32 %v3367, 0.0
      %v3400 = vmax.f32 %v3368, 0.0
      %v3401 = vmax.f32 %v3369, 0.0
      %v3402 = vmax.f32 %v3370, 0.0
      %v3403 = vmax.f32 %v3371, 0.0
      %v3404 = vmax.f32 %v3372, 0.0
      %v3405 = vmax.f32 %v3373, 0.0
      %v3406 = vpack.c.bf16 %v3375, %v3374
      %v3407 = vpack.c.bf16 %v3377, %v3376
      %v3408 = vpack.c.bf16 %v3379, %v3378
      %v3409 = vpack.c.bf16 %v3381, %v3380
      %v3410 = vpack.c.bf16 %v3383, %v3382
      %v3411 = vpack.c.bf16 %v3385, %v3384
      %v3412 = vpack.c.bf16 %v3387, %v3386
      %v3413 = vpack.c.bf16 %v3389, %v3388
      %v3414 = vpack.c.bf16 %v3391, %v3390
      %v3415 = vpack.c.bf16 %v3393, %v3392
      %v3416 = vpack.c.bf16 %v3395, %v3394
      %v3417 = vpack.c.bf16 %v3397, %v3396
      %v3418 = vpack.c.bf16 %v3399, %v3398
      %v3419 = vpack.c.bf16 %v3401, %v3400
      %v3420 = vpack.c.bf16 %v3403, %v3402
      %v3421 = vpack.c.bf16 %v3405, %v3404
      %v3422 = vld [vmem:[%s5] sm:$0xf]
      %v3423 = vld [vmem:[%s5 + $0x4] sm:$0xf]
      %v3424 = vld [vmem:[%s5 + $0x8] sm:$0xf]
      %v3425 = vld [vmem:[%s5 + $0xc] sm:$0xf]
      %v3426 = vld [vmem:[%s5 + $0x10] sm:$0xf]
      %v3427 = vld [vmem:[%s5 + $0x14] sm:$0xf]
      %v3428 = vld [vmem:[%s5 + $0x18] sm:$0xf]
      %v3429 = vld [vmem:[%s5 + $0x1c] sm:$0xf]
      %v3430 = vld [vmem:[%s5 + $0x20] sm:$0xf]
      %v3431 = vld [vmem:[%s5 + $0x24] sm:$0xf]
      %v3432 = vld [vmem:[%s5 + $0x28] sm:$0xf]
      %v3433 = vld [vmem:[%s5 + $0x2c] sm:$0xf]
      %v3434 = vld [vmem:[%s5 + $0x30] sm:$0xf]
      %v3435 = vld [vmem:[%s5 + $0x34] sm:$0xf]
      %v3436 = vld [vmem:[%s5 + $0x38] sm:$0xf]
      %v3437 = vld [vmem:[%s5 + $0x3c] sm:$0xf]
      %v3438 = vld [vmem:[%s6] sm:$0x1]
      %v3440 = vlaneseq
      %v3441 = vshrl.u32 %v3440, 7
      %v3442 = vsub.s32 0, %v3441
      %v3443 = vrot.slane %v3438, %v3442
      %v3461 = vunpack.c.l.b16 %v3422
      %v3462 = vunpack.c.l.b16 %v3423
      %v3463 = vunpack.c.l.b16 %v3424
      %v3464 = vunpack.c.l.b16 %v3425
      %v3465 = vunpack.c.l.b16 %v3426
      %v3466 = vunpack.c.l.b16 %v3427
      %v3467 = vunpack.c.l.b16 %v3428
      %v3468 = vunpack.c.l.b16 %v3429
      %v3469 = vunpack.c.l.b16 %v3430
      %v3470 = vunpack.c.l.b16 %v3431
      %v3471 = vunpack.c.l.b16 %v3432
      %v3472 = vunpack.c.l.b16 %v3433
      %v3473 = vunpack.c.l.b16 %v3434
      %v3474 = vunpack.c.l.b16 %v3435
      %v3475 = vunpack.c.l.b16 %v3436
      %v3476 = vunpack.c.l.b16 %v3437
      %v3477 = vpack.c.b16 %v3462, %v3461
      %v3478 = vpack.c.b16 %v3464, %v3463
      %v3479 = vpack.c.b16 %v3466, %v3465
      %v3480 = vpack.c.b16 %v3468, %v3467
      %v3481 = vpack.c.b16 %v3470, %v3469
      %v3482 = vpack.c.b16 %v3472, %v3471
      %v3483 = vpack.c.b16 %v3474, %v3473
      %v3484 = vpack.c.b16 %v3476, %v3475
      %3493 = vmatprep.subr.bf16.mxu0 0
      %3494 = vmatpush1.bf16.msra.mxu0 %v3477
      %3495 = vmatprep.subr.bf16.mxu0 0
      %3496 = vmatpush1.bf16.msra.mxu0 %v3478
      %3497 = vmatprep.subr.bf16.mxu0 0
      %3498 = vmatpush1.bf16.msra.mxu0 %v3479
      %3499 = vmatprep.subr.bf16.mxu0 0
      %3500 = vmatpush1.bf16.msra.mxu0 %v3480
      %3501 = vmatprep.subr.bf16.mxu0 0
      %3502 = vmatpush1.bf16.msra.mxu0 %v3481
      %3503 = vmatprep.subr.bf16.mxu0 0
      %3504 = vmatpush1.bf16.msra.mxu0 %v3482
      %3505 = vmatprep.subr.bf16.mxu0 0
      %3506 = vmatpush1.bf16.msra.mxu0 %v3483
      %3507 = vmatprep.subr.bf16.mxu0 0
      %3508 = vmatpush1.bf16.msra.mxu0 %v3484
      %3509 = vmatprep.subr.bf16.mxu0 0
      %3510 = vmatpush1.bf16.msra.mxu0 0
      %3511 = vmatprep.subr.bf16.mxu0 0
      %3512 = vmatpush1.bf16.msra.mxu0 0
      %3513 = vmatprep.subr.bf16.mxu0 0
      %3514 = vmatpush1.bf16.msra.mxu0 0
      %3515 = vmatprep.subr.bf16.mxu0 0
      %3516 = vmatpush1.bf16.msra.mxu0 0
      %3517 = vmatprep.subr.bf16.mxu0 0
      %3518 = vmatpush1.bf16.msra.mxu0 0
      %3519 = vmatprep.subr.bf16.mxu0 0
      %3520 = vmatpush1.bf16.msra.mxu0 0
      %3521 = vmatprep.subr.bf16.mxu0 0
      %3522 = vmatpush1.bf16.msra.mxu0 0
      %3523 = vmatprep.subr.bf16.mxu0 0
      %3524 = vmatpush1.bf16.msra.mxu0 0
      %3525 = vmatprep.mubr.bf16.mxu0 0
      %3526 = vmatmul.mubr.bf16.gmra.mrb[0].mxu0 %v3406
      %v3527 = vpop.f32.mrb[0].mxu0
      %v3528 = vadd.f32 %v3443, %v3527
      %v3529 = vpop.f32.mrb[0].mxu0
      %v3530 = vpop.f32.mrb[0].mxu0
      %v3531 = vadd.f32 %v3443, %v3530
      %v3532 = vpop.f32.mrb[0].mxu0
      %3533 = vmatprep.mubr.bf16.mxu0 0
      %3534 = vmatmul.mubr.bf16.gmra.mrb[0].mxu0 %v3407
      %v3535 = vpop.f32.mrb[0].mxu0
      %v3536 = vadd.f32 %v3443, %v3535
      %v3537 = vpop.f32.mrb[0].mxu0
      %v3538 = vpop.f32.mrb[0].mxu0
      %v3539 = vadd.f32 %v3443, %v3538
      %v3540 = vpop.f32.mrb[0].mxu0
      %3541 = vmatprep.mubr.bf16.mxu0 0
      %3542 = vmatmul.mubr.bf16.gmra.mrb[0].mxu0 %v3408
      %v3543 = vpop.f32.mrb[0].mxu0
      %v3544 = vadd.f32 %v3443, %v3543
      %v3545 = vpop.f32.mrb[0].mxu0
      %v3546 = vpop.f32.mrb[0].mxu0
      %v3547 = vadd.f32 %v3443, %v3546
      %v3548 = vpop.f32.mrb[0].mxu0
      %3549 = vmatprep.mubr.bf16.mxu0 0
      %3550 = vmatmul.mubr.bf16.gmra.mrb[0].mxu0 %v3409
      %v3551 = vpop.f32.mrb[0].mxu0
      %v3552 = vadd.f32 %v3443, %v3551
      %v3553 = vpop.f32.mrb[0].mxu0
      %v3554 = vpop.f32.mrb[0].mxu0
      %v3555 = vadd.f32 %v3443, %v3554
      %v3556 = vpop.f32.mrb[0].mxu0
      %3557 = vmatprep.mubr.bf16.mxu0 0
      %3558 = vmatmul.mubr.bf16.gmra.mrb[0].mxu0 %v3410
      %v3559 = vpop.f32.mrb[0].mxu0
      %v3560 = vadd.f32 %v3443, %v3559
      %v3561 = vpop.f32.mrb[0].mxu0
      %v3562 = vpop.f32.mrb[0].mxu0
      %v3563 = vadd.f32 %v3443, %v3562
      %v3564 = vpop.f32.mrb[0].mxu0
      %3565 = vmatprep.mubr.bf16.mxu0 0
      %3566 = vmatmul.mubr.bf16.gmra.mrb[0].mxu0 %v3411
      %v3567 = vpop.f32.mrb[0].mxu0
      %v3568 = vadd.f32 %v3443, %v3567
      %v3569 = vpop.f32.mrb[0].mxu0
      %v3570 = vpop.f32.mrb[0].mxu0
      %v3571 = vadd.f32 %v3443, %v3570
      %v3572 = vpop.f32.mrb[0].mxu0
      %3573 = vmatprep.mubr.bf16.mxu0 0
      %3574 = vmatmul.mubr.bf16.gmra.mrb[0].mxu0 %v3412
      %v3575 = vpop.f32.mrb[0].mxu0
      %v3576 = vadd.f32 %v3443, %v3575
      %v3577 = vpop.f32.mrb[0].mxu0
      %v3578 = vpop.f32.mrb[0].mxu0
      %v3579 = vadd.f32 %v3443, %v3578
      %v3580 = vpop.f32.mrb[0].mxu0
      %3581 = vmatprep.mubr.bf16.mxu0 0
      %3582 = vmatmul.mubr.bf16.gmra.mrb[0].mxu0 %v3413
      %v3583 = vpop.f32.mrb[0].mxu0
      %v3584 = vadd.f32 %v3443, %v3583
      %v3585 = vpop.f32.mrb[0].mxu0
      %v3586 = vpop.f32.mrb[0].mxu0
      %v3587 = vadd.f32 %v3443, %v3586
      %v3588 = vpop.f32.mrb[0].mxu0
      %3589 = vmatprep.mubr.bf16.mxu0 0
      %3590 = vmatmul.mubr.bf16.gmra.mrb[0].mxu0 %v3414
      %v3591 = vpop.f32.mrb[0].mxu0
      %v3592 = vadd.f32 %v3443, %v3591
      %v3593 = vpop.f32.mrb[0].mxu0
      %v3594 = vpop.f32.mrb[0].mxu0
      %v3595 = vadd.f32 %v3443, %v3594
      %v3596 = vpop.f32.mrb[0].mxu0
      %3597 = vmatprep.mubr.bf16.mxu0 0
      %3598 = vmatmul.mubr.bf16.gmra.mrb[0].mxu0 %v3415
      %v3599 = vpop.f32.mrb[0].mxu0
      %v3600 = vadd.f32 %v3443, %v3599
      %v3601 = vpop.f32.mrb[0].mxu0
      %v3602 = vpop.f32.mrb[0].mxu0
      %v3603 = vadd.f32 %v3443, %v3602
      %v3604 = vpop.f32.mrb[0].mxu0
      %3605 = vmatprep.mubr.bf16.mxu0 0
      %3606 = vmatmul.mubr.bf16.gmra.mrb[0].mxu0 %v3416
      %v3607 = vpop.f32.mrb[0].mxu0
      %v3608 = vadd.f32 %v3443, %v3607
      %v3609 = vpop.f32.mrb[0].mxu0
      %v3610 = vpop.f32.mrb[0].mxu0
      %v3611 = vadd.f32 %v3443, %v3610
      %v3612 = vpop.f32.mrb[0].mxu0
      %3613 = vmatprep.mubr.bf16.mxu0 0
      %3614 = vmatmul.mubr.bf16.gmra.mrb[0].mxu0 %v3417
      %v3615 = vpop.f32.mrb[0].mxu0
      %v3616 = vadd.f32 %v3443, %v3615
      %v3617 = vpop.f32.mrb[0].mxu0
      %v3618 = vpop.f32.mrb[0].mxu0
      %v3619 = vadd.f32 %v3443, %v3618
      %v3620 = vpop.f32.mrb[0].mxu0
      %3621 = vmatprep.mubr.bf16.mxu0 0
      %3622 = vmatmul.mubr.bf16.gmra.mrb[0].mxu0 %v3418
      %v3623 = vpop.f32.mrb[0].mxu0
      %v3624 = vadd.f32 %v3443, %v3623
      %v3625 = vpop.f32.mrb[0].mxu0
      %v3626 = vpop.f32.mrb[0].mxu0
      %v3627 = vadd.f32 %v3443, %v3626
      %v3628 = vpop.f32.mrb[0].mxu0
      %3629 = vmatprep.mubr.bf16.mxu0 0
      %3630 = vmatmul.mubr.bf16.gmra.mrb[0].mxu0 %v3419
      %v3631 = vpop.f32.mrb[0].mxu0
      %v3632 = vadd.f32 %v3443, %v3631
      %v3633 = vpop.f32.mrb[0].mxu0
      %v3634 = vpop.f32.mrb[0].mxu0
      %v3635 = vadd.f32 %v3443, %v3634
      %v3636 = vpop.f32.mrb[0].mxu0
      %3637 = vmatprep.mubr.bf16.mxu0 0
      %3638 = vmatmul.mubr.bf16.gmra.mrb[0].mxu0 %v3420
      %v3639 = vpop.f32.mrb[0].mxu0
      %v3640 = vadd.f32 %v3443, %v3639
      %v3641 = vpop.f32.mrb[0].mxu0
      %v3642 = vpop.f32.mrb[0].mxu0
      %v3643 = vadd.f32 %v3443, %v3642
      %v3644 = vpop.f32.mrb[0].mxu0
      %3645 = vmatprep.mubr.bf16.mxu0 0
      %3646 = vmatmul.mubr.bf16.gmra.mrb[0].mxu0 %v3421
      %v3647 = vpop.f32.mrb[0].mxu0
      %v3648 = vadd.f32 %v3443, %v3647
      %v3649 = vpop.f32.mrb[0].mxu0
      %v3650 = vpop.f32.mrb[0].mxu0
      %v3651 = vadd.f32 %v3443, %v3650
      %v3652 = vpop.f32.mrb[0].mxu0
      %3653 = vdwg.mxu0
      %v3654 = vadd.f32 %v3528, %v280
      %v3655 = vadd.f32 %v3531, %v281
      %v3656 = vadd.f32 %v3536, %v282
      %v3657 = vadd.f32 %v3539, %v283
      %v3658 = vadd.f32 %v3544, %v284
      %v3659 = vadd.f32 %v3547, %v285
      %v3660 = vadd.f32 %v3552, %v286
      %v3661 = vadd.f32 %v3555, %v287
      %v3662 = vadd.f32 %v3560, %v288
      %v3663 = vadd.f32 %v3563, %v289
      %v3664 = vadd.f32 %v3568, %v290
      %v3665 = vadd.f32 %v3571, %v291
      %v3666 = vadd.f32 %v3576, %v292
      %v3667 = vadd.f32 %v3579, %v293
      %v3668 = vadd.f32 %v3584, %v294
      %v3669 = vadd.f32 %v3587, %v295
      %v3670 = vadd.f32 %v3592, %v296
      %v3671 = vadd.f32 %v3595, %v297
      %v3672 = vadd.f32 %v3600, %v298
      %v3673 = vadd.f32 %v3603, %v299
      %v3674 = vadd.f32 %v3608, %v300
      %v3675 = vadd.f32 %v3611, %v301
      %v3676 = vadd.f32 %v3616, %v302
      %v3677 = vadd.f32 %v3619, %v303
      %v3678 = vadd.f32 %v3624, %v304
      %v3679 = vadd.f32 %v3627, %v305
      %v3680 = vadd.f32 %v3632, %v306
      %v3681 = vadd.f32 %v3635, %v307
      %v3682 = vadd.f32 %v3640, %v308
      %v3683 = vadd.f32 %v3643, %v309
      %v3684 = vadd.f32 %v3648, %v310
      %v3685 = vadd.f32 %v3651, %v311
      %v3686 = vmax.f32 %v3654, 0.0
      %v3687 = vmax.f32 %v3655, 0.0
      %v3688 = vmax.f32 %v3656, 0.0
      %v3689 = vmax.f32 %v3657, 0.0
      %v3690 = vmax.f32 %v3658, 0.0
      %v3691 = vmax.f32 %v3659, 0.0
      %v3692 = vmax.f32 %v3660, 0.0
      %v3693 = vmax.f32 %v3661, 0.0
      %v3694 = vmax.f32 %v3662, 0.0
      %v3695 = vmax.f32 %v3663, 0.0
      %v3696 = vmax.f32 %v3664, 0.0
      %v3697 = vmax.f32 %v3665, 0.0
      %v3698 = vmax.f32 %v3666, 0.0
      %v3699 = vmax.f32 %v3667, 0.0
      %v3700 = vmax.f32 %v3668, 0.0
      %v3701 = vmax.f32 %v3669, 0.0
      %v3702 = vmax.f32 %v3670, 0.0
      %v3703 = vmax.f32 %v3671, 0.0
      %v3704 = vmax.f32 %v3672, 0.0
      %v3705 = vmax.f32 %v3673, 0.0
      %v3706 = vmax.f32 %v3674, 0.0
      %v3707 = vmax.f32 %v3675, 0.0
      %v3708 = vmax.f32 %v3676, 0.0
      %v3709 = vmax.f32 %v3677, 0.0
      %v3710 = vmax.f32 %v3678, 0.0
      %v3711 = vmax.f32 %v3679, 0.0
      %v3712 = vmax.f32 %v3680, 0.0
      %v3713 = vmax.f32 %v3681, 0.0
      %v3714 = vmax.f32 %v3682, 0.0
      %v3715 = vmax.f32 %v3683, 0.0
      %v3716 = vmax.f32 %v3684, 0.0
      %v3717 = vmax.f32 %v3685, 0.0
      %3718 = vst.msk [vmem:[%s278] sm:$0xff] %vm343, %v3686
      %3719 = vst.msk [vmem:[%s278 + $0x8] sm:$0xff] %vm343, %v3687
      %3720 = vst.msk [vmem:[%s278 + $0x10] sm:$0xff] %vm343, %v3688
      %3721 = vst.msk [vmem:[%s278 + $0x18] sm:$0xff] %vm343, %v3689
      %3722 = vst.msk [vmem:[%s278 + $0x20] sm:$0xff] %vm343, %v3690
      %3723 = vst.msk [vmem:[%s278 + $0x28] sm:$0xff] %vm343, %v3691
      %3724 = vst.msk [vmem:[%s278 + $0x30] sm:$0xff] %vm343, %v3692
      %3725 = vst.msk [vmem:[%s278 + $0x38] sm:$0xff] %vm343, %v3693
      %3726 = vst.msk [vmem:[%s278 + $0x40] sm:$0xff] %vm343, %v3694
      %3727 = vst.msk [vmem:[%s278 + $0x48] sm:$0xff] %vm343, %v3695
      %3728 = vst.msk [vmem:[%s278 + $0x50] sm:$0xff] %vm343, %v3696
      %3729 = vst.msk [vmem:[%s278 + $0x58] sm:$0xff] %vm343, %v3697
      %3730 = vst.msk [vmem:[%s278 + $0x60] sm:$0xff] %vm343, %v3698
      %3731 = vst.msk [vmem:[%s278 + $0x68] sm:$0xff] %vm343, %v3699
      %3732 = vst.msk [vmem:[%s278 + $0x70] sm:$0xff] %vm343, %v3700
      %3733 = vst.msk [vmem:[%s278 + $0x78] sm:$0xff] %vm343, %v3701
      %3734 = vst.msk [vmem:[%s278 + $0x80] sm:$0xff] %vm343, %v3702
      %3735 = vst.msk [vmem:[%s278 + $0x88] sm:$0xff] %vm343, %v3703
      %3736 = vst.msk [vmem:[%s278 + $0x90] sm:$0xff] %vm343, %v3704
      %3737 = vst.msk [vmem:[%s278 + $0x98] sm:$0xff] %vm343, %v3705
      %3738 = vst.msk [vmem:[%s278 + $0xa0] sm:$0xff] %vm343, %v3706
      %3739 = vst.msk [vmem:[%s278 + $0xa8] sm:$0xff] %vm343, %v3707
      %3740 = vst.msk [vmem:[%s278 + $0xb0] sm:$0xff] %vm343, %v3708
      %3741 = vst.msk [vmem:[%s278 + $0xb8] sm:$0xff] %vm343, %v3709
      %3742 = vst.msk [vmem:[%s278 + $0xc0] sm:$0xff] %vm343, %v3710
      %3743 = vst.msk [vmem:[%s278 + $0xc8] sm:$0xff] %vm343, %v3711
      %3744 = vst.msk [vmem:[%s278 + $0xd0] sm:$0xff] %vm343, %v3712
      %3745 = vst.msk [vmem:[%s278 + $0xd8] sm:$0xff] %vm343, %v3713
      %3746 = vst.msk [vmem:[%s278 + $0xe0] sm:$0xff] %vm343, %v3714
      %3747 = vst.msk [vmem:[%s278 + $0xe8] sm:$0xff] %vm343, %v3715
      %3748 = vst.msk [vmem:[%s278 + $0xf0] sm:$0xff] %vm343, %v3716
      %3749 = vst.msk [vmem:[%s278 + $0xf8] sm:$0xff] %vm343, %v3717
      %p3750 = scmp.lt.s32.totalorder %s18, 1
      %s3751 = scalar_select %p3750, %s18, 1
      %s3752 = smul.addr %s3751, 32
      %s3753 = smul.addr %s3752, 8
      %s3754 = scalar_lea.vmem %s7, %s3753
      // Predicated region
      $region49: #{bottleneck_forward.1} parent=47 // pred_check
        %p3755 = pneg %p188
      $region50: #{bottleneck_forward.1} parent=47 // pred_check_branch
        %3757 = sbr.rel (%p3755) target = $region52
      $region51: #{bottleneck_forward.1} parent=47 // pred_region
        _
      $region52: #{bottleneck_forward.1} parent=47 // pred_fallthru
        _
    $region48: #{bottleneck_forward.1} parent=5 // pred_fallthru
      _
    %p3758 = scmp.le.s32.totalorder 2, %s13
    // Predicated region
    $region53: #{bottleneck_forward.1} parent=5 // pred_check
      %p3759 = pneg %p3758
    $region54: #{bottleneck_forward.1} parent=5 // pred_check_branch
      %3761 = sbr.rel (%p3759) target = $region56
    $region55: #{bottleneck_forward.1} parent=5 // pred_region
      %s3762 = ssub.s32 %s13, 2
      // Predicated region
      $region57: #{bottleneck_forward.1} parent=55 // pred_check
        %p3763 = pneg %p194
      $region58: #{bottleneck_forward.1} parent=55 // pred_check_branch
        %3765 = sbr.rel (%p3763) target = $region60
      $region59: #{bottleneck_forward.1} parent=55 // pred_region
        %p3766 = scmp.lt.s32.totalorder %s19, 1
        %s3767 = scalar_select %p3766, %s19, 1
        %s3768 = smul.addr %s3767, 32
        %s3769 = smul.addr %s3768, 8
        %s3770 = scalar_lea.vmem %s7, %s3769
      $region60: #{bottleneck_forward.1} parent=55 // pred_fallthru
        _
    $region56: #{bottleneck_forward.1} parent=5 // pred_fallthru
      _
  $region6: #{bottleneck_forward.1} parent=0 // loop_footer
    %s17 = sadd.s32 1, %s13
  $region7: #{bottleneck_forward.1} parent=0 // loop_footer_branch
    %12 = sbr.rel target = $region3
  $region8: #{bottleneck_forward.1} parent=0 // loop_exit
    _

</llo_original>
